<compile_context>
chip_gen: v7x
topology: tpu7x:2x2x1
jax: 0.10.0
libtpu: 0.0.40
codegen_flags: <defaults>
</compile_context>

<pallas_src>
import functools

import jax
import jax.numpy as jnp
from jax.experimental import pallas as pl
from jax.experimental.pallas import tpu as pltpu

# ---------------- scaled-down deit3_small config ----------------
BATCH = 2
IN_CHANS = 3
IMG_SIZE = 32
PATCH = 16
EMBED_DIM = 64
NUM_HEADS = 2
HEAD_DIM = EMBED_DIM // NUM_HEADS
DEPTH = 2
MLP_DIM = 4 * EMBED_DIM
BACKBONE_CLASSES = 1000        # timm ImageNet-1k head
NUM_CLASSES = 43               # nn.Linear(1000, 43)
LN_EPS = 1e-6
INIT_VALUES = 1e-6             # deit3 LayerScale init

NUM_PATCHES = (IMG_SIZE // PATCH) ** 2   # 4
SEQ_LEN = NUM_PATCHES + 1                # 5 real tokens (cls + patches)
T_PAD = 8                                # padded tokens per image (sublane aligned, power of 2)


# ---------------- in-kernel helpers (values, not refs) ----------------

def _ln(x, g, b):
    mean = jnp.mean(x, axis=-1, keepdims=True)
    var = jnp.mean(jnp.square(x - mean), axis=-1, keepdims=True)
    return (x - mean) * jax.lax.rsqrt(var + LN_EPS) * g + b


def _gelu(x):
    # exact (erf-based) GELU, matching torch.nn.GELU default in timm Mlp
    return 0.5 * x * (1.0 + jax.lax.erf(x * 0.7071067811865476))


# ---------------- single fused kernel ----------------

def _deit_fused_kernel(
    p_ref, pw_ref, ea_ref,
    qkvw_ref, projw_ref, fc1w_ref, fc2w_ref,
    vec_ref, bias_ref, headw_ref, fin_ref,
    out_ref,
    *, batch,
):
    f32 = jnp.float32
    bf16 = jnp.bfloat16
    D = EMBED_DIM
    BT = batch * T_PAD

    # patch embed + (cls token | patch bias + pos embed) additive; padded rows stay 0
    xs = jnp.dot(p_ref[...], pw_ref[...], preferred_element_type=f32) + ea_ref[...]   # (BT, D)

    # block-diagonal attention mask: same image AND key token is a real token
    lg = T_PAD.bit_length() - 1                      # T_PAD is a power of two
    row_ids = jax.lax.broadcasted_iota(jnp.int32, (BT, BT), 0)
    col_ids = jax.lax.broadcasted_iota(jnp.int32, (BT, BT), 1)
    same_img = jax.lax.shift_right_logical(row_ids, lg) == jax.lax.shift_right_logical(col_ids, lg)
    valid_key = jnp.bitwise_and(col_ids, T_PAD - 1) < SEQ_LEN
    attn_mask = jnp.logical_and(same_img, valid_key)

    for d in range(DEPTH):
        vec = vec_ref[d]          # (8, D)   f32 vector params for this block
        bia = bias_ref[d]         # (2, MLP) f32 wide biases for this block
        ln1_g, ln1_b = vec[0:1, :], vec[1:2, :]
        proj_b, ls1 = vec[2:3, :], vec[3:4, :]
        ln2_g, ln2_b = vec[4:5, :], vec[5:6, :]
        fc2_b, ls2 = vec[6:7, :], vec[7:8, :]
        qkv_b = bia[0:1, 0:3 * D]                     # scale already folded into the q third
        fc1_b = bia[1:2, :]

        # ---------------- attention branch ----------------
        y = _ln(xs, ln1_g, ln1_b)
        qkv = jnp.dot(y.astype(bf16), qkvw_ref[d], preferred_element_type=f32) + qkv_b  # (BT, 3D)

        heads = []
        for h in range(NUM_HEADS):
            lo = h * HEAD_DIM
            q = qkv[:, 0 * D + lo:0 * D + lo + HEAD_DIM]          # (BT, Dh) f32, q pre-scaled
            k = qkv[:, 1 * D + lo:1 * D + lo + HEAD_DIM]
            v = qkv[:, 2 * D + lo:2 * D + lo + HEAD_DIM]
            s = jax.lax.dot_general(q, k, (((1,), (1,)), ((), ())),
                                    preferred_element_type=f32)   # (BT, BT)
            s = jnp.where(attn_mask, s, jnp.float32(-1e30))
            m = jnp.max(s, axis=-1, keepdims=True)
            e = jnp.exp(s - m)
            p = e * pl.reciprocal(jnp.sum(e, axis=-1, keepdims=True), approx=True)
            heads.append(jnp.dot(p, v, preferred_element_type=f32))               # (BT, Dh)
        o = jnp.concatenate(heads, axis=1)                                         # (BT, D)
        proj = jnp.dot(o.astype(bf16), projw_ref[d], preferred_element_type=f32) + proj_b
        xs = xs + ls1 * proj                                                       # LayerScale + residual

        # ---------------- MLP branch ----------------
        y = _ln(xs, ln2_g, ln2_b)
        hdn = jnp.dot(y.astype(bf16), fc1w_ref[d], preferred_element_type=f32) + fc1_b
        hdn = _gelu(hdn)
        mo = jnp.dot(hdn.astype(bf16), fc2w_ref[d], preferred_element_type=f32) + fc2_b
        xs = xs + ls2 * mo

    # final norm + collapsed head (64 -> 43), kept f32 for parity (tiny matmul)
    fin = fin_ref[...]                                # (3, D): norm_g, norm_b, head_b (padded)
    y = _ln(xs, fin[0:1, :], fin[1:2, :])
    logits = jnp.dot(y, headw_ref[...], preferred_element_type=f32) + fin[2:3, 0:NUM_CLASSES]

    # nn.Softmax(dim=0): gather the cls row of each image, normalize over the batch axis,
    # exact divide, single store.
    cls = jnp.concatenate([logits[b * T_PAD:b * T_PAD + 1, :] for b in range(batch)], axis=0)
    m = jnp.max(cls, axis=0, keepdims=True)
    e = jnp.exp(cls - m)
    out_ref[...] = e / jnp.sum(e, axis=0, keepdims=True)


# ---------------- pallas_call wrapper ----------------

def _full_spec(shape):
    rank = len(shape)
    return pl.BlockSpec(tuple(shape), lambda i, _r=rank: (0,) * _r)


def deit_forward(prep, x):
    B, C, Himg, Wimg = x.shape
    gh, gw = Himg // PATCH, Wimg // PATCH
    P = gh * gw
    patch_in = C * PATCH * PATCH
    BT = B * T_PAD

    # patchify (layout glue) and place patches at token rows 1..P of a T_PAD-padded slab
    patches = x.reshape(B, C, gh, PATCH, gw, PATCH).transpose(0, 2, 4, 1, 3, 5)
    patches = patches.reshape(B, P, patch_in)
    p_pad = jnp.zeros((B, T_PAD, patch_in), jnp.float32).at[:, 1:1 + P, :].set(patches)
    p_pad = p_pad.reshape(BT, patch_in).astype(jnp.bfloat16)

    args = [
        p_pad, prep["patch_w"], prep["embed_add"],
        prep["qkv_w"], prep["proj_w"], prep["fc1_w"], prep["fc2_w"],
        prep["vec64"], prep["bias_wide"], prep["head_w"], prep["final_vec"],
    ]

    flops = 2 * (
        BT * patch_in * EMBED_DIM
        + DEPTH * (BT * EMBED_DIM * 3 * EMBED_DIM
                   + 2 * NUM_HEADS * BT * BT * HEAD_DIM
                   + BT * EMBED_DIM * EMBED_DIM
                   + 2 * BT * EMBED_DIM * MLP_DIM)
        + BT * EMBED_DIM * NUM_CLASSES
    )
    transcendentals = DEPTH * (NUM_HEADS * BT * BT + BT * MLP_DIM) + B * NUM_CLASSES
    bytes_accessed = int(sum(a.size * a.dtype.itemsize for a in args)
                         + B * NUM_CLASSES * 4)

    return pl.pallas_call(
        functools.partial(_deit_fused_kernel, batch=B),
        out_shape=jax.ShapeDtypeStruct((B, NUM_CLASSES), jnp.float32),
        grid=(1,),
        in_specs=[_full_spec(a.shape) for a in args],
        out_specs=_full_spec((B, NUM_CLASSES)),
        compiler_params=pltpu.CompilerParams(dimension_semantics=("arbitrary",)),
        cost_estimate=pl.CostEstimate(flops=int(flops),
                                      transcendentals=int(transcendentals),
                                      bytes_accessed=bytes_accessed),
    )(*args)


# ---------------- parameters ----------------

def init_params(key):
    D = EMBED_DIM
    num_patches = NUM_PATCHES
    patch_in = IN_CHANS * PATCH * PATCH
    keys = jax.random.split(key, 5 + DEPTH)

    def nrm(k, shape, s=0.02):
        return (s * jax.random.normal(k, shape)).astype(jnp.float32)

    params = {
        "patch_w": nrm(keys[0], (patch_in, D)),          # conv (D,C,16,16) flattened & transposed
        "patch_b": jnp.zeros((D,), jnp.float32),
        "pos_embed": nrm(keys[1], (1, num_patches, D)),  # deit3: pos embed for patch tokens only
        "cls_token": nrm(keys[2], (1, 1, D)),
        "norm_g": jnp.ones((D,), jnp.float32),
        "norm_b": jnp.zeros((D,), jnp.float32),
        "head_w": nrm(keys[3], (D, BACKBONE_CLASSES)),
        "head_b": jnp.zeros((BACKBONE_CLASSES,), jnp.float32),
        "lin_w": nrm(keys[4], (BACKBONE_CLASSES, NUM_CLASSES)),
        "lin_b": jnp.zeros((NUM_CLASSES,), jnp.float32),
        "blocks": [],
    }
    for d in range(DEPTH):
        bk = jax.random.split(keys[5 + d], 4)
        params["blocks"].append({
            "ln1_g": jnp.ones((D,), jnp.float32),
            "ln1_b": jnp.zeros((D,), jnp.float32),
            "qkv_w": nrm(bk[0], (D, 3 * D)),
            "qkv_b": jnp.zeros((3 * D,), jnp.float32),
            "proj_w": nrm(bk[1], (D, D)),
            "proj_b": jnp.zeros((D,), jnp.float32),
            "ls1": jnp.full((D,), INIT_VALUES, jnp.float32),
            "ln2_g": jnp.ones((D,), jnp.float32),
            "ln2_b": jnp.zeros((D,), jnp.float32),
            "fc1_w": nrm(bk[2], (D, MLP_DIM)),
            "fc1_b": jnp.zeros((MLP_DIM,), jnp.float32),
            "fc2_w": nrm(bk[3], (MLP_DIM, D)),
            "fc2_b": jnp.zeros((D,), jnp.float32),
            "ls2": jnp.full((D,), INIT_VALUES, jnp.float32),
        })
    return params


def prepare_params(params):
    """One-time repack: per-depth weight stacks (bf16), attention scale folded into q,
    head(64->1000)+linear(1000->43) collapsed (kept f32), vector params consolidated into
    a (DEPTH,8,64) slab + a (DEPTH,2,256) wide-bias slab + a (3,64) final slab."""
    D = EMBED_DIM
    P = NUM_PATCHES
    bf16 = jnp.bfloat16
    f32 = jnp.float32
    blocks = params["blocks"]
    scale = HEAD_DIM ** -0.5

    qkv_w, proj_w, fc1_w, fc2_w, vec_rows, bias_rows = [], [], [], [], [], []
    for blk in blocks:
        W = blk["qkv_w"].at[:, :D].multiply(scale)       # fold attention scale into q columns
        Bi = blk["qkv_b"].at[:D].multiply(scale)
        qkv_w.append(W)
        proj_w.append(blk["proj_w"])
        fc1_w.append(blk["fc1_w"])
        fc2_w.append(blk["fc2_w"])
        vec_rows.append(jnp.stack([
            blk["ln1_g"], blk["ln1_b"], blk["proj_b"], blk["ls1"],
            blk["ln2_g"], blk["ln2_b"], blk["fc2_b"], blk["ls2"]], axis=0))      # (8, D)
        brow = jnp.zeros((2, MLP_DIM), f32)
        brow = brow.at[0, :3 * D].set(Bi)
        brow = brow.at[1, :].set(blk["fc1_b"])
        bias_rows.append(brow)                                                    # (2, MLP)

    # cls / pos-embed / patch-bias additive slab (padded rows = 0), tiled over batch
    ea = jnp.zeros((T_PAD, D), f32)
    ea = ea.at[0].set(params["cls_token"].reshape(D))
    ea = ea.at[1:1 + P].set(params["pos_embed"].reshape(P, D) + params["patch_b"][None, :])
    embed_add = jnp.tile(ea, (BATCH, 1))                                           # (B*T_PAD, D)

    # collapse head (64->1000) and linear (1000->43): no nonlinearity between them
    head_w = params["head_w"] @ params["lin_w"]                                    # (D, 43) f32
    head_b = params["head_b"] @ params["lin_w"] + params["lin_b"]                  # (43,)
    fin = jnp.zeros((3, D), f32)
    fin = fin.at[0].set(params["norm_g"])
    fin = fin.at[1].set(params["norm_b"])
    fin = fin.at[2, :NUM_CLASSES].set(head_b)

    return {
        "patch_w": params["patch_w"].astype(bf16),
        "embed_add": embed_add,
        "qkv_w": jnp.stack(qkv_w).astype(bf16),        # (DEPTH, D, 3D)
        "proj_w": jnp.stack(proj_w).astype(bf16),      # (DEPTH, D, D)
        "fc1_w": jnp.stack(fc1_w).astype(bf16),        # (DEPTH, D, MLP)
        "fc2_w": jnp.stack(fc2_w).astype(bf16),        # (DEPTH, MLP, D)
        "vec64": jnp.stack(vec_rows),                  # (DEPTH, 8, D) f32
        "bias_wide": jnp.stack(bias_rows),             # (DEPTH, 2, MLP) f32
        "head_w": head_w.astype(f32),                  # (D, 43) f32 (kept f32 for parity)
        "final_vec": fin,                              # (3, D) f32
    }


if __name__ == "__main__":
    key = jax.random.PRNGKey(0)
    pkey, xkey = jax.random.split(key)
    params = init_params(pkey)
    prep = prepare_params(params)
    x = jax.random.normal(xkey, (BATCH, IN_CHANS, IMG_SIZE, IMG_SIZE), dtype=jnp.float32)

    out = jax.jit(deit_forward)(prep, x)
    out = jax.block_until_ready(out)

    assert out.shape == (BATCH, NUM_CLASSES)
    assert out.dtype == jnp.float32
    assert bool(jnp.all(jnp.isfinite(out)))
    # softmax over dim=0: each column sums to 1
    assert jnp.allclose(jnp.sum(out, axis=0), jnp.ones((NUM_CLASSES,)), atol=1e-4)
    print("KERNEL_OK")
</pallas_src>

<mosaic_0001>
module attributes {stable_mosaic.version = 11 : i64} {
  func.func @_deit_fused_kernel(%arg0: i32, %arg1: memref<16x768xbf16, #tpu.memory_space<vmem>>, %arg2: memref<768x64xbf16, #tpu.memory_space<vmem>>, %arg3: memref<16x64xf32, #tpu.memory_space<vmem>>, %arg4: memref<2x64x192xbf16, #tpu.memory_space<vmem>>, %arg5: memref<2x64x64xbf16, #tpu.memory_space<vmem>>, %arg6: memref<2x64x256xbf16, #tpu.memory_space<vmem>>, %arg7: memref<2x256x64xbf16, #tpu.memory_space<vmem>>, %arg8: memref<2x8x64xf32, #tpu.memory_space<vmem>>, %arg9: memref<2x2x256xf32, #tpu.memory_space<vmem>>, %arg10: memref<64x43xf32, #tpu.memory_space<vmem>>, %arg11: memref<3x64xf32, #tpu.memory_space<vmem>>, %arg12: memref<2x43xf32, #tpu.memory_space<vmem>>) attributes {dimension_semantics = [#tpu.dimension_semantics<arbitrary>], iteration_bounds = array<i64: 1>, scalar_prefetch = 0 : i64, scratch_operands = 0 : i64, tpu.core_type = #tpu.core_type<tc>, window_params = [{pipeline_mode = #tpu.pipeline_mode<synchronous>, transform_indices = @transform_0, window_bounds = array<i64: 16, 768>}, {pipeline_mode = #tpu.pipeline_mode<synchronous>, transform_indices = @transform_1, window_bounds = array<i64: 768, 64>}, {pipeline_mode = #tpu.pipeline_mode<synchronous>, transform_indices = @transform_2, window_bounds = array<i64: 16, 64>}, {pipeline_mode = #tpu.pipeline_mode<synchronous>, transform_indices = @transform_3, window_bounds = array<i64: 2, 64, 192>}, {pipeline_mode = #tpu.pipeline_mode<synchronous>, transform_indices = @transform_4, window_bounds = array<i64: 2, 64, 64>}, {pipeline_mode = #tpu.pipeline_mode<synchronous>, transform_indices = @transform_5, window_bounds = array<i64: 2, 64, 256>}, {pipeline_mode = #tpu.pipeline_mode<synchronous>, transform_indices = @transform_6, window_bounds = array<i64: 2, 256, 64>}, {pipeline_mode = #tpu.pipeline_mode<synchronous>, transform_indices = @transform_7, window_bounds = array<i64: 2, 8, 64>}, {pipeline_mode = #tpu.pipeline_mode<synchronous>, transform_indices = @transform_8, window_bounds = array<i64: 2, 2, 256>}, {pipeline_mode = #tpu.pipeline_mode<synchronous>, transform_indices = @transform_9, window_bounds = array<i64: 64, 43>}, {pipeline_mode = #tpu.pipeline_mode<synchronous>, transform_indices = @transform_10, window_bounds = array<i64: 3, 64>}, {pipeline_mode = #tpu.pipeline_mode<synchronous>, transform_indices = @transform_11, window_bounds = array<i64: 2, 43>}]} {
    %c0 = arith.constant 0 : index
    %c0_0 = arith.constant 0 : index
    %0 = vector.load %arg1[%c0, %c0_0] : memref<16x768xbf16, #tpu.memory_space<vmem>>, vector<16x768xbf16>
    %c0_1 = arith.constant 0 : index
    %c0_2 = arith.constant 0 : index
    %1 = vector.load %arg2[%c0_1, %c0_2] : memref<768x64xbf16, #tpu.memory_space<vmem>>, vector<768x64xbf16>
    %cst = arith.constant dense<0.000000e+00> : vector<16x64xf32>
    %2 = tpu.matmul %0, %1, %cst {dimension_numbers = #tpu.dot_dimension_numbers<[1], [0], [0], [1], [0, 0, 1, 1], [], []>} : vector<16x768xbf16>, vector<768x64xbf16>, vector<16x64xf32> -> vector<16x64xf32>
    %c0_3 = arith.constant 0 : index
    %c0_4 = arith.constant 0 : index
    %3 = vector.load %arg3[%c0_3, %c0_4] : memref<16x64xf32, #tpu.memory_space<vmem>>, vector<16x64xf32>
    %4 = arith.addf %2, %3 : vector<16x64xf32>
    %5 = tpu.iota {dimensions = array<i32: 0>} : vector<16x16xi32>
    %6 = tpu.iota {dimensions = array<i32: 1>} : vector<16x16xi32>
    %c3_i32 = arith.constant 3 : i32
    %7 = vector.broadcast %c3_i32 : i32 to vector<16x16xi32>
    %8 = arith.shrui %5, %7 : vector<16x16xi32>
    %c3_i32_5 = arith.constant 3 : i32
    %9 = vector.broadcast %c3_i32_5 : i32 to vector<16x16xi32>
    %10 = arith.shrui %6, %9 : vector<16x16xi32>
    %11 = arith.cmpi eq, %8, %10 : vector<16x16xi32>
    %c7_i32 = arith.constant 7 : i32
    %12 = vector.broadcast %c7_i32 : i32 to vector<16x16xi32>
    %13 = arith.andi %6, %12 : vector<16x16xi32>
    %c5_i32 = arith.constant 5 : i32
    %14 = vector.broadcast %c5_i32 : i32 to vector<16x16xi32>
    %15 = arith.cmpi slt, %13, %14 : vector<16x16xi32>
    %16 = arith.andi %11, %15 : vector<16x16xi1>
    %c0_6 = arith.constant 0 : index
    %c0_7 = arith.constant 0 : index
    %c0_8 = arith.constant 0 : index
    %17 = vector.load %arg8[%c0_6, %c0_7, %c0_8] : memref<2x8x64xf32, #tpu.memory_space<vmem>>, vector<1x8x64xf32>
    %18 = vector.shape_cast %17 : vector<1x8x64xf32> to vector<8x64xf32>
    %c0_9 = arith.constant 0 : index
    %c0_10 = arith.constant 0 : index
    %c0_11 = arith.constant 0 : index
    %19 = vector.load %arg9[%c0_9, %c0_10, %c0_11] : memref<2x2x256xf32, #tpu.memory_space<vmem>>, vector<1x2x256xf32>
    %20 = vector.shape_cast %19 : vector<1x2x256xf32> to vector<2x256xf32>
    %21 = vector.extract_strided_slice %18 {offsets = [0, 0], sizes = [1, 64], strides = [1, 1]} : vector<8x64xf32> to vector<1x64xf32>
    %22 = vector.extract_strided_slice %18 {offsets = [1, 0], sizes = [1, 64], strides = [1, 1]} : vector<8x64xf32> to vector<1x64xf32>
    %23 = vector.extract_strided_slice %18 {offsets = [2, 0], sizes = [1, 64], strides = [1, 1]} : vector<8x64xf32> to vector<1x64xf32>
    %24 = vector.extract_strided_slice %18 {offsets = [3, 0], sizes = [1, 64], strides = [1, 1]} : vector<8x64xf32> to vector<1x64xf32>
    %25 = vector.extract_strided_slice %18 {offsets = [4, 0], sizes = [1, 64], strides = [1, 1]} : vector<8x64xf32> to vector<1x64xf32>
    %26 = vector.extract_strided_slice %18 {offsets = [5, 0], sizes = [1, 64], strides = [1, 1]} : vector<8x64xf32> to vector<1x64xf32>
    %27 = vector.extract_strided_slice %18 {offsets = [6, 0], sizes = [1, 64], strides = [1, 1]} : vector<8x64xf32> to vector<1x64xf32>
    %28 = vector.extract_strided_slice %18 {offsets = [7, 0], sizes = [1, 64], strides = [1, 1]} : vector<8x64xf32> to vector<1x64xf32>
    %29 = vector.extract_strided_slice %20 {offsets = [0, 0], sizes = [1, 192], strides = [1, 1]} : vector<2x256xf32> to vector<1x192xf32>
    %30 = vector.extract_strided_slice %20 {offsets = [1, 0], sizes = [1, 256], strides = [1, 1]} : vector<2x256xf32> to vector<1x256xf32>
    %cst_12 = arith.constant dense<0.000000e+00> : vector<16xf32>
    %31 = vector.multi_reduction <add>, %4, %cst_12 [1] : vector<16x64xf32> to vector<16xf32>
    %32 = vector.shape_cast %31 : vector<16xf32> to vector<16x1xf32>
    %cst_13 = arith.constant 6.400000e+01 : f32
    %33 = vector.broadcast %cst_13 : f32 to vector<16x1xf32>
    %34 = arith.divf %32, %33 : vector<16x1xf32>
    %35 = vector.broadcast %34 : vector<16x1xf32> to vector<16x64xf32>
    %36 = arith.subf %4, %35 : vector<16x64xf32>
    %37 = arith.mulf %36, %36 : vector<16x64xf32>
    %cst_14 = arith.constant dense<0.000000e+00> : vector<16xf32>
    %38 = vector.multi_reduction <add>, %37, %cst_14 [1] : vector<16x64xf32> to vector<16xf32>
    %39 = vector.shape_cast %38 : vector<16xf32> to vector<16x1xf32>
    %cst_15 = arith.constant 6.400000e+01 : f32
    %40 = vector.broadcast %cst_15 : f32 to vector<16x1xf32>
    %41 = arith.divf %39, %40 : vector<16x1xf32>
    %42 = vector.broadcast %34 : vector<16x1xf32> to vector<16x64xf32>
    %43 = arith.subf %4, %42 : vector<16x64xf32>
    %cst_16 = arith.constant 9.99999997E-7 : f32
    %44 = vector.broadcast %cst_16 : f32 to vector<16x1xf32>
    %45 = arith.addf %41, %44 : vector<16x1xf32>
    %46 = math.rsqrt %45 : vector<16x1xf32>
    %47 = vector.broadcast %46 : vector<16x1xf32> to vector<16x64xf32>
    %48 = arith.mulf %43, %47 : vector<16x64xf32>
    %49 = vector.broadcast %21 : vector<1x64xf32> to vector<16x64xf32>
    %50 = arith.mulf %48, %49 : vector<16x64xf32>
    %51 = vector.broadcast %22 : vector<1x64xf32> to vector<16x64xf32>
    %52 = arith.addf %50, %51 : vector<16x64xf32>
    %53 = arith.truncf %52 : vector<16x64xf32> to vector<16x64xbf16>
    %c0_17 = arith.constant 0 : index
    %c0_18 = arith.constant 0 : index
    %c0_19 = arith.constant 0 : index
    %54 = vector.load %arg4[%c0_17, %c0_18, %c0_19] : memref<2x64x192xbf16, #tpu.memory_space<vmem>>, vector<1x64x192xbf16>
    %55 = vector.shape_cast %54 : vector<1x64x192xbf16> to vector<64x192xbf16>
    %cst_20 = arith.constant dense<0.000000e+00> : vector<16x192xf32>
    %56 = tpu.matmul %53, %55, %cst_20 {dimension_numbers = #tpu.dot_dimension_numbers<[1], [0], [0], [1], [0, 0, 1, 1], [], []>} : vector<16x64xbf16>, vector<64x192xbf16>, vector<16x192xf32> -> vector<16x192xf32>
    %57 = vector.broadcast %29 : vector<1x192xf32> to vector<16x192xf32>
    %58 = arith.addf %56, %57 : vector<16x192xf32>
    %59 = vector.extract_strided_slice %58 {offsets = [0, 0], sizes = [16, 32], strides = [1, 1]} : vector<16x192xf32> to vector<16x32xf32>
    %60 = vector.extract_strided_slice %58 {offsets = [0, 64], sizes = [16, 32], strides = [1, 1]} : vector<16x192xf32> to vector<16x32xf32>
    %61 = vector.extract_strided_slice %58 {offsets = [0, 128], sizes = [16, 32], strides = [1, 1]} : vector<16x192xf32> to vector<16x32xf32>
    %cst_21 = arith.constant dense<0.000000e+00> : vector<16x16xf32>
    %62 = tpu.matmul %59, %60, %cst_21 {dimension_numbers = #tpu.dot_dimension_numbers<[1], [1], [0], [0], [0, 0, 1, 0], [], []>} : vector<16x32xf32>, vector<16x32xf32>, vector<16x16xf32> -> vector<16x16xf32>
    %cst_22 = arith.constant -1.000000e+30 : f32
    %63 = vector.broadcast %cst_22 : f32 to vector<16x16xf32>
    %64 = arith.select %16, %62, %63 : vector<16x16xi1>, vector<16x16xf32>
    %cst_23 = arith.constant dense<0xFF800000> : vector<16xf32>
    %65 = vector.multi_reduction <maximumf>, %64, %cst_23 [1] : vector<16x16xf32> to vector<16xf32>
    %66 = vector.shape_cast %65 : vector<16xf32> to vector<16x1xf32>
    %67 = vector.broadcast %66 : vector<16x1xf32> to vector<16x16xf32>
    %68 = arith.subf %64, %67 : vector<16x16xf32>
    %69 = math.exp %68 : vector<16x16xf32>
    %cst_24 = arith.constant dense<0.000000e+00> : vector<16xf32>
    %70 = vector.multi_reduction <add>, %69, %cst_24 [1] : vector<16x16xf32> to vector<16xf32>
    %71 = vector.shape_cast %70 : vector<16xf32> to vector<16x1xf32>
    %72 = tpu.reciprocal %71 {approx = true} : vector<16x1xf32> -> vector<16x1xf32>
    %73 = vector.broadcast %72 : vector<16x1xf32> to vector<16x16xf32>
    %74 = arith.mulf %69, %73 : vector<16x16xf32>
    %cst_25 = arith.constant dense<0.000000e+00> : vector<16x32xf32>
    %75 = tpu.matmul %74, %61, %cst_25 {dimension_numbers = #tpu.dot_dimension_numbers<[1], [0], [0], [1], [0, 0, 1, 1], [], []>} : vector<16x16xf32>, vector<16x32xf32>, vector<16x32xf32> -> vector<16x32xf32>
    %76 = vector.extract_strided_slice %58 {offsets = [0, 32], sizes = [16, 32], strides = [1, 1]} : vector<16x192xf32> to vector<16x32xf32>
    %77 = vector.extract_strided_slice %58 {offsets = [0, 96], sizes = [16, 32], strides = [1, 1]} : vector<16x192xf32> to vector<16x32xf32>
    %78 = vector.extract_strided_slice %58 {offsets = [0, 160], sizes = [16, 32], strides = [1, 1]} : vector<16x192xf32> to vector<16x32xf32>
    %cst_26 = arith.constant dense<0.000000e+00> : vector<16x16xf32>
    %79 = tpu.matmul %76, %77, %cst_26 {dimension_numbers = #tpu.dot_dimension_numbers<[1], [1], [0], [0], [0, 0, 1, 0], [], []>} : vector<16x32xf32>, vector<16x32xf32>, vector<16x16xf32> -> vector<16x16xf32>
    %cst_27 = arith.constant -1.000000e+30 : f32
    %80 = vector.broadcast %cst_27 : f32 to vector<16x16xf32>
    %81 = arith.select %16, %79, %80 : vector<16x16xi1>, vector<16x16xf32>
    %cst_28 = arith.constant dense<0xFF800000> : vector<16xf32>
    %82 = vector.multi_reduction <maximumf>, %81, %cst_28 [1] : vector<16x16xf32> to vector<16xf32>
    %83 = vector.shape_cast %82 : vector<16xf32> to vector<16x1xf32>
    %84 = vector.broadcast %83 : vector<16x1xf32> to vector<16x16xf32>
    %85 = arith.subf %81, %84 : vector<16x16xf32>
    %86 = math.exp %85 : vector<16x16xf32>
    %cst_29 = arith.constant dense<0.000000e+00> : vector<16xf32>
    %87 = vector.multi_reduction <add>, %86, %cst_29 [1] : vector<16x16xf32> to vector<16xf32>
    %88 = vector.shape_cast %87 : vector<16xf32> to vector<16x1xf32>
    %89 = tpu.reciprocal %88 {approx = true} : vector<16x1xf32> -> vector<16x1xf32>
    %90 = vector.broadcast %89 : vector<16x1xf32> to vector<16x16xf32>
    %91 = arith.mulf %86, %90 : vector<16x16xf32>
    %cst_30 = arith.constant dense<0.000000e+00> : vector<16x32xf32>
    %92 = tpu.matmul %91, %78, %cst_30 {dimension_numbers = #tpu.dot_dimension_numbers<[1], [0], [0], [1], [0, 0, 1, 1], [], []>} : vector<16x16xf32>, vector<16x32xf32>, vector<16x32xf32> -> vector<16x32xf32>
    %93 = tpu.concatenate %75, %92 in 1 : vector<16x32xf32>, vector<16x32xf32> -> vector<16x64xf32>
    %94 = arith.truncf %93 : vector<16x64xf32> to vector<16x64xbf16>
    %c0_31 = arith.constant 0 : index
    %c0_32 = arith.constant 0 : index
    %c0_33 = arith.constant 0 : index
    %95 = vector.load %arg5[%c0_31, %c0_32, %c0_33] : memref<2x64x64xbf16, #tpu.memory_space<vmem>>, vector<1x64x64xbf16>
    %96 = vector.shape_cast %95 : vector<1x64x64xbf16> to vector<64x64xbf16>
    %cst_34 = arith.constant dense<0.000000e+00> : vector<16x64xf32>
    %97 = tpu.matmul %94, %96, %cst_34 {dimension_numbers = #tpu.dot_dimension_numbers<[1], [0], [0], [1], [0, 0, 1, 1], [], []>} : vector<16x64xbf16>, vector<64x64xbf16>, vector<16x64xf32> -> vector<16x64xf32>
    %98 = vector.broadcast %23 : vector<1x64xf32> to vector<16x64xf32>
    %99 = arith.addf %97, %98 : vector<16x64xf32>
    %100 = vector.broadcast %24 : vector<1x64xf32> to vector<16x64xf32>
    %101 = arith.mulf %100, %99 : vector<16x64xf32>
    %102 = arith.addf %4, %101 : vector<16x64xf32>
    %cst_35 = arith.constant dense<0.000000e+00> : vector<16xf32>
    %103 = vector.multi_reduction <add>, %102, %cst_35 [1] : vector<16x64xf32> to vector<16xf32>
    %104 = vector.shape_cast %103 : vector<16xf32> to vector<16x1xf32>
    %cst_36 = arith.constant 6.400000e+01 : f32
    %105 = vector.broadcast %cst_36 : f32 to vector<16x1xf32>
    %106 = arith.divf %104, %105 : vector<16x1xf32>
    %107 = vector.broadcast %106 : vector<16x1xf32> to vector<16x64xf32>
    %108 = arith.subf %102, %107 : vector<16x64xf32>
    %109 = arith.mulf %108, %108 : vector<16x64xf32>
    %cst_37 = arith.constant dense<0.000000e+00> : vector<16xf32>
    %110 = vector.multi_reduction <add>, %109, %cst_37 [1] : vector<16x64xf32> to vector<16xf32>
    %111 = vector.shape_cast %110 : vector<16xf32> to vector<16x1xf32>
    %cst_38 = arith.constant 6.400000e+01 : f32
    %112 = vector.broadcast %cst_38 : f32 to vector<16x1xf32>
    %113 = arith.divf %111, %112 : vector<16x1xf32>
    %114 = vector.broadcast %106 : vector<16x1xf32> to vector<16x64xf32>
    %115 = arith.subf %102, %114 : vector<16x64xf32>
    %cst_39 = arith.constant 9.99999997E-7 : f32
    %116 = vector.broadcast %cst_39 : f32 to vector<16x1xf32>
    %117 = arith.addf %113, %116 : vector<16x1xf32>
    %118 = math.rsqrt %117 : vector<16x1xf32>
    %119 = vector.broadcast %118 : vector<16x1xf32> to vector<16x64xf32>
    %120 = arith.mulf %115, %119 : vector<16x64xf32>
    %121 = vector.broadcast %25 : vector<1x64xf32> to vector<16x64xf32>
    %122 = arith.mulf %120, %121 : vector<16x64xf32>
    %123 = vector.broadcast %26 : vector<1x64xf32> to vector<16x64xf32>
    %124 = arith.addf %122, %123 : vector<16x64xf32>
    %125 = arith.truncf %124 : vector<16x64xf32> to vector<16x64xbf16>
    %c0_40 = arith.constant 0 : index
    %c0_41 = arith.constant 0 : index
    %c0_42 = arith.constant 0 : index
    %126 = vector.load %arg6[%c0_40, %c0_41, %c0_42] : memref<2x64x256xbf16, #tpu.memory_space<vmem>>, vector<1x64x256xbf16>
    %127 = vector.shape_cast %126 : vector<1x64x256xbf16> to vector<64x256xbf16>
    %cst_43 = arith.constant dense<0.000000e+00> : vector<16x256xf32>
    %128 = tpu.matmul %125, %127, %cst_43 {dimension_numbers = #tpu.dot_dimension_numbers<[1], [0], [0], [1], [0, 0, 1, 1], [], []>} : vector<16x64xbf16>, vector<64x256xbf16>, vector<16x256xf32> -> vector<16x256xf32>
    %129 = vector.broadcast %30 : vector<1x256xf32> to vector<16x256xf32>
    %130 = arith.addf %128, %129 : vector<16x256xf32>
    %cst_44 = arith.constant 5.000000e-01 : f32
    %131 = vector.broadcast %cst_44 : f32 to vector<16x256xf32>
    %132 = arith.mulf %131, %130 : vector<16x256xf32>
    %cst_45 = arith.constant 0.707106769 : f32
    %133 = vector.broadcast %cst_45 : f32 to vector<16x256xf32>
    %134 = arith.mulf %130, %133 : vector<16x256xf32>
    %135 = math.erf %134 : vector<16x256xf32>
    %cst_46 = arith.constant 1.000000e+00 : f32
    %136 = vector.broadcast %cst_46 : f32 to vector<16x256xf32>
    %137 = arith.addf %136, %135 : vector<16x256xf32>
    %138 = arith.mulf %132, %137 : vector<16x256xf32>
    %139 = arith.truncf %138 : vector<16x256xf32> to vector<16x256xbf16>
    %c0_47 = arith.constant 0 : index
    %c0_48 = arith.constant 0 : index
    %c0_49 = arith.constant 0 : index
    %140 = vector.load %arg7[%c0_47, %c0_48, %c0_49] : memref<2x256x64xbf16, #tpu.memory_space<vmem>>, vector<1x256x64xbf16>
    %141 = vector.shape_cast %140 : vector<1x256x64xbf16> to vector<256x64xbf16>
    %cst_50 = arith.constant dense<0.000000e+00> : vector<16x64xf32>
    %142 = tpu.matmul %139, %141, %cst_50 {dimension_numbers = #tpu.dot_dimension_numbers<[1], [0], [0], [1], [0, 0, 1, 1], [], []>} : vector<16x256xbf16>, vector<256x64xbf16>, vector<16x64xf32> -> vector<16x64xf32>
    %143 = vector.broadcast %27 : vector<1x64xf32> to vector<16x64xf32>
    %144 = arith.addf %142, %143 : vector<16x64xf32>
    %145 = vector.broadcast %28 : vector<1x64xf32> to vector<16x64xf32>
    %146 = arith.mulf %145, %144 : vector<16x64xf32>
    %147 = arith.addf %102, %146 : vector<16x64xf32>
    %c1 = arith.constant 1 : index
    %c0_51 = arith.constant 0 : index
    %c0_52 = arith.constant 0 : index
    %148 = vector.load %arg8[%c1, %c0_51, %c0_52] : memref<2x8x64xf32, #tpu.memory_space<vmem>>, vector<1x8x64xf32>
    %149 = vector.shape_cast %148 : vector<1x8x64xf32> to vector<8x64xf32>
    %c1_53 = arith.constant 1 : index
    %c0_54 = arith.constant 0 : index
    %c0_55 = arith.constant 0 : index
    %150 = vector.load %arg9[%c1_53, %c0_54, %c0_55] : memref<2x2x256xf32, #tpu.memory_space<vmem>>, vector<1x2x256xf32>
    %151 = vector.shape_cast %150 : vector<1x2x256xf32> to vector<2x256xf32>
    %152 = vector.extract_strided_slice %149 {offsets = [0, 0], sizes = [1, 64], strides = [1, 1]} : vector<8x64xf32> to vector<1x64xf32>
    %153 = vector.extract_strided_slice %149 {offsets = [1, 0], sizes = [1, 64], strides = [1, 1]} : vector<8x64xf32> to vector<1x64xf32>
    %154 = vector.extract_strided_slice %149 {offsets = [2, 0], sizes = [1, 64], strides = [1, 1]} : vector<8x64xf32> to vector<1x64xf32>
    %155 = vector.extract_strided_slice %149 {offsets = [3, 0], sizes = [1, 64], strides = [1, 1]} : vector<8x64xf32> to vector<1x64xf32>
    %156 = vector.extract_strided_slice %149 {offsets = [4, 0], sizes = [1, 64], strides = [1, 1]} : vector<8x64xf32> to vector<1x64xf32>
    %157 = vector.extract_strided_slice %149 {offsets = [5, 0], sizes = [1, 64], strides = [1, 1]} : vector<8x64xf32> to vector<1x64xf32>
    %158 = vector.extract_strided_slice %149 {offsets = [6, 0], sizes = [1, 64], strides = [1, 1]} : vector<8x64xf32> to vector<1x64xf32>
    %159 = vector.extract_strided_slice %149 {offsets = [7, 0], sizes = [1, 64], strides = [1, 1]} : vector<8x64xf32> to vector<1x64xf32>
    %160 = vector.extract_strided_slice %151 {offsets = [0, 0], sizes = [1, 192], strides = [1, 1]} : vector<2x256xf32> to vector<1x192xf32>
    %161 = vector.extract_strided_slice %151 {offsets = [1, 0], sizes = [1, 256], strides = [1, 1]} : vector<2x256xf32> to vector<1x256xf32>
    %cst_56 = arith.constant dense<0.000000e+00> : vector<16xf32>
    %162 = vector.multi_reduction <add>, %147, %cst_56 [1] : vector<16x64xf32> to vector<16xf32>
    %163 = vector.shape_cast %162 : vector<16xf32> to vector<16x1xf32>
    %cst_57 = arith.constant 6.400000e+01 : f32
    %164 = vector.broadcast %cst_57 : f32 to vector<16x1xf32>
    %165 = arith.divf %163, %164 : vector<16x1xf32>
    %166 = vector.broadcast %165 : vector<16x1xf32> to vector<16x64xf32>
    %167 = arith.subf %147, %166 : vector<16x64xf32>
    %168 = arith.mulf %167, %167 : vector<16x64xf32>
    %cst_58 = arith.constant dense<0.000000e+00> : vector<16xf32>
    %169 = vector.multi_reduction <add>, %168, %cst_58 [1] : vector<16x64xf32> to vector<16xf32>
    %170 = vector.shape_cast %169 : vector<16xf32> to vector<16x1xf32>
    %cst_59 = arith.constant 6.400000e+01 : f32
    %171 = vector.broadcast %cst_59 : f32 to vector<16x1xf32>
    %172 = arith.divf %170, %171 : vector<16x1xf32>
    %173 = vector.broadcast %165 : vector<16x1xf32> to vector<16x64xf32>
    %174 = arith.subf %147, %173 : vector<16x64xf32>
    %cst_60 = arith.constant 9.99999997E-7 : f32
    %175 = vector.broadcast %cst_60 : f32 to vector<16x1xf32>
    %176 = arith.addf %172, %175 : vector<16x1xf32>
    %177 = math.rsqrt %176 : vector<16x1xf32>
    %178 = vector.broadcast %177 : vector<16x1xf32> to vector<16x64xf32>
    %179 = arith.mulf %174, %178 : vector<16x64xf32>
    %180 = vector.broadcast %152 : vector<1x64xf32> to vector<16x64xf32>
    %181 = arith.mulf %179, %180 : vector<16x64xf32>
    %182 = vector.broadcast %153 : vector<1x64xf32> to vector<16x64xf32>
    %183 = arith.addf %181, %182 : vector<16x64xf32>
    %184 = arith.truncf %183 : vector<16x64xf32> to vector<16x64xbf16>
    %c1_61 = arith.constant 1 : index
    %c0_62 = arith.constant 0 : index
    %c0_63 = arith.constant 0 : index
    %185 = vector.load %arg4[%c1_61, %c0_62, %c0_63] : memref<2x64x192xbf16, #tpu.memory_space<vmem>>, vector<1x64x192xbf16>
    %186 = vector.shape_cast %185 : vector<1x64x192xbf16> to vector<64x192xbf16>
    %cst_64 = arith.constant dense<0.000000e+00> : vector<16x192xf32>
    %187 = tpu.matmul %184, %186, %cst_64 {dimension_numbers = #tpu.dot_dimension_numbers<[1], [0], [0], [1], [0, 0, 1, 1], [], []>} : vector<16x64xbf16>, vector<64x192xbf16>, vector<16x192xf32> -> vector<16x192xf32>
    %188 = vector.broadcast %160 : vector<1x192xf32> to vector<16x192xf32>
    %189 = arith.addf %187, %188 : vector<16x192xf32>
    %190 = vector.extract_strided_slice %189 {offsets = [0, 0], sizes = [16, 32], strides = [1, 1]} : vector<16x192xf32> to vector<16x32xf32>
    %191 = vector.extract_strided_slice %189 {offsets = [0, 64], sizes = [16, 32], strides = [1, 1]} : vector<16x192xf32> to vector<16x32xf32>
    %192 = vector.extract_strided_slice %189 {offsets = [0, 128], sizes = [16, 32], strides = [1, 1]} : vector<16x192xf32> to vector<16x32xf32>
    %cst_65 = arith.constant dense<0.000000e+00> : vector<16x16xf32>
    %193 = tpu.matmul %190, %191, %cst_65 {dimension_numbers = #tpu.dot_dimension_numbers<[1], [1], [0], [0], [0, 0, 1, 0], [], []>} : vector<16x32xf32>, vector<16x32xf32>, vector<16x16xf32> -> vector<16x16xf32>
    %cst_66 = arith.constant -1.000000e+30 : f32
    %194 = vector.broadcast %cst_66 : f32 to vector<16x16xf32>
    %195 = arith.select %16, %193, %194 : vector<16x16xi1>, vector<16x16xf32>
    %cst_67 = arith.constant dense<0xFF800000> : vector<16xf32>
    %196 = vector.multi_reduction <maximumf>, %195, %cst_67 [1] : vector<16x16xf32> to vector<16xf32>
    %197 = vector.shape_cast %196 : vector<16xf32> to vector<16x1xf32>
    %198 = vector.broadcast %197 : vector<16x1xf32> to vector<16x16xf32>
    %199 = arith.subf %195, %198 : vector<16x16xf32>
    %200 = math.exp %199 : vector<16x16xf32>
    %cst_68 = arith.constant dense<0.000000e+00> : vector<16xf32>
    %201 = vector.multi_reduction <add>, %200, %cst_68 [1] : vector<16x16xf32> to vector<16xf32>
    %202 = vector.shape_cast %201 : vector<16xf32> to vector<16x1xf32>
    %203 = tpu.reciprocal %202 {approx = true} : vector<16x1xf32> -> vector<16x1xf32>
    %204 = vector.broadcast %203 : vector<16x1xf32> to vector<16x16xf32>
    %205 = arith.mulf %200, %204 : vector<16x16xf32>
    %cst_69 = arith.constant dense<0.000000e+00> : vector<16x32xf32>
    %206 = tpu.matmul %205, %192, %cst_69 {dimension_numbers = #tpu.dot_dimension_numbers<[1], [0], [0], [1], [0, 0, 1, 1], [], []>} : vector<16x16xf32>, vector<16x32xf32>, vector<16x32xf32> -> vector<16x32xf32>
    %207 = vector.extract_strided_slice %189 {offsets = [0, 32], sizes = [16, 32], strides = [1, 1]} : vector<16x192xf32> to vector<16x32xf32>
    %208 = vector.extract_strided_slice %189 {offsets = [0, 96], sizes = [16, 32], strides = [1, 1]} : vector<16x192xf32> to vector<16x32xf32>
    %209 = vector.extract_strided_slice %189 {offsets = [0, 160], sizes = [16, 32], strides = [1, 1]} : vector<16x192xf32> to vector<16x32xf32>
    %cst_70 = arith.constant dense<0.000000e+00> : vector<16x16xf32>
    %210 = tpu.matmul %207, %208, %cst_70 {dimension_numbers = #tpu.dot_dimension_numbers<[1], [1], [0], [0], [0, 0, 1, 0], [], []>} : vector<16x32xf32>, vector<16x32xf32>, vector<16x16xf32> -> vector<16x16xf32>
    %cst_71 = arith.constant -1.000000e+30 : f32
    %211 = vector.broadcast %cst_71 : f32 to vector<16x16xf32>
    %212 = arith.select %16, %210, %211 : vector<16x16xi1>, vector<16x16xf32>
    %cst_72 = arith.constant dense<0xFF800000> : vector<16xf32>
    %213 = vector.multi_reduction <maximumf>, %212, %cst_72 [1] : vector<16x16xf32> to vector<16xf32>
    %214 = vector.shape_cast %213 : vector<16xf32> to vector<16x1xf32>
    %215 = vector.broadcast %214 : vector<16x1xf32> to vector<16x16xf32>
    %216 = arith.subf %212, %215 : vector<16x16xf32>
    %217 = math.exp %216 : vector<16x16xf32>
    %cst_73 = arith.constant dense<0.000000e+00> : vector<16xf32>
    %218 = vector.multi_reduction <add>, %217, %cst_73 [1] : vector<16x16xf32> to vector<16xf32>
    %219 = vector.shape_cast %218 : vector<16xf32> to vector<16x1xf32>
    %220 = tpu.reciprocal %219 {approx = true} : vector<16x1xf32> -> vector<16x1xf32>
    %221 = vector.broadcast %220 : vector<16x1xf32> to vector<16x16xf32>
    %222 = arith.mulf %217, %221 : vector<16x16xf32>
    %cst_74 = arith.constant dense<0.000000e+00> : vector<16x32xf32>
    %223 = tpu.matmul %222, %209, %cst_74 {dimension_numbers = #tpu.dot_dimension_numbers<[1], [0], [0], [1], [0, 0, 1, 1], [], []>} : vector<16x16xf32>, vector<16x32xf32>, vector<16x32xf32> -> vector<16x32xf32>
    %224 = tpu.concatenate %206, %223 in 1 : vector<16x32xf32>, vector<16x32xf32> -> vector<16x64xf32>
    %225 = arith.truncf %224 : vector<16x64xf32> to vector<16x64xbf16>
    %c1_75 = arith.constant 1 : index
    %c0_76 = arith.constant 0 : index
    %c0_77 = arith.constant 0 : index
    %226 = vector.load %arg5[%c1_75, %c0_76, %c0_77] : memref<2x64x64xbf16, #tpu.memory_space<vmem>>, vector<1x64x64xbf16>
    %227 = vector.shape_cast %226 : vector<1x64x64xbf16> to vector<64x64xbf16>
    %cst_78 = arith.constant dense<0.000000e+00> : vector<16x64xf32>
    %228 = tpu.matmul %225, %227, %cst_78 {dimension_numbers = #tpu.dot_dimension_numbers<[1], [0], [0], [1], [0, 0, 1, 1], [], []>} : vector<16x64xbf16>, vector<64x64xbf16>, vector<16x64xf32> -> vector<16x64xf32>
    %229 = vector.broadcast %154 : vector<1x64xf32> to vector<16x64xf32>
    %230 = arith.addf %228, %229 : vector<16x64xf32>
    %231 = vector.broadcast %155 : vector<1x64xf32> to vector<16x64xf32>
    %232 = arith.mulf %231, %230 : vector<16x64xf32>
    %233 = arith.addf %147, %232 : vector<16x64xf32>
    %cst_79 = arith.constant dense<0.000000e+00> : vector<16xf32>
    %234 = vector.multi_reduction <add>, %233, %cst_79 [1] : vector<16x64xf32> to vector<16xf32>
    %235 = vector.shape_cast %234 : vector<16xf32> to vector<16x1xf32>
    %cst_80 = arith.constant 6.400000e+01 : f32
    %236 = vector.broadcast %cst_80 : f32 to vector<16x1xf32>
    %237 = arith.divf %235, %236 : vector<16x1xf32>
    %238 = vector.broadcast %237 : vector<16x1xf32> to vector<16x64xf32>
    %239 = arith.subf %233, %238 : vector<16x64xf32>
    %240 = arith.mulf %239, %239 : vector<16x64xf32>
    %cst_81 = arith.constant dense<0.000000e+00> : vector<16xf32>
    %241 = vector.multi_reduction <add>, %240, %cst_81 [1] : vector<16x64xf32> to vector<16xf32>
    %242 = vector.shape_cast %241 : vector<16xf32> to vector<16x1xf32>
    %cst_82 = arith.constant 6.400000e+01 : f32
    %243 = vector.broadcast %cst_82 : f32 to vector<16x1xf32>
    %244 = arith.divf %242, %243 : vector<16x1xf32>
    %245 = vector.broadcast %237 : vector<16x1xf32> to vector<16x64xf32>
    %246 = arith.subf %233, %245 : vector<16x64xf32>
    %cst_83 = arith.constant 9.99999997E-7 : f32
    %247 = vector.broadcast %cst_83 : f32 to vector<16x1xf32>
    %248 = arith.addf %244, %247 : vector<16x1xf32>
    %249 = math.rsqrt %248 : vector<16x1xf32>
    %250 = vector.broadcast %249 : vector<16x1xf32> to vector<16x64xf32>
    %251 = arith.mulf %246, %250 : vector<16x64xf32>
    %252 = vector.broadcast %156 : vector<1x64xf32> to vector<16x64xf32>
    %253 = arith.mulf %251, %252 : vector<16x64xf32>
    %254 = vector.broadcast %157 : vector<1x64xf32> to vector<16x64xf32>
    %255 = arith.addf %253, %254 : vector<16x64xf32>
    %256 = arith.truncf %255 : vector<16x64xf32> to vector<16x64xbf16>
    %c1_84 = arith.constant 1 : index
    %c0_85 = arith.constant 0 : index
    %c0_86 = arith.constant 0 : index
    %257 = vector.load %arg6[%c1_84, %c0_85, %c0_86] : memref<2x64x256xbf16, #tpu.memory_space<vmem>>, vector<1x64x256xbf16>
    %258 = vector.shape_cast %257 : vector<1x64x256xbf16> to vector<64x256xbf16>
    %cst_87 = arith.constant dense<0.000000e+00> : vector<16x256xf32>
    %259 = tpu.matmul %256, %258, %cst_87 {dimension_numbers = #tpu.dot_dimension_numbers<[1], [0], [0], [1], [0, 0, 1, 1], [], []>} : vector<16x64xbf16>, vector<64x256xbf16>, vector<16x256xf32> -> vector<16x256xf32>
    %260 = vector.broadcast %161 : vector<1x256xf32> to vector<16x256xf32>
    %261 = arith.addf %259, %260 : vector<16x256xf32>
    %cst_88 = arith.constant 5.000000e-01 : f32
    %262 = vector.broadcast %cst_88 : f32 to vector<16x256xf32>
    %263 = arith.mulf %262, %261 : vector<16x256xf32>
    %cst_89 = arith.constant 0.707106769 : f32
    %264 = vector.broadcast %cst_89 : f32 to vector<16x256xf32>
    %265 = arith.mulf %261, %264 : vector<16x256xf32>
    %266 = math.erf %265 : vector<16x256xf32>
    %cst_90 = arith.constant 1.000000e+00 : f32
    %267 = vector.broadcast %cst_90 : f32 to vector<16x256xf32>
    %268 = arith.addf %267, %266 : vector<16x256xf32>
    %269 = arith.mulf %263, %268 : vector<16x256xf32>
    %270 = arith.truncf %269 : vector<16x256xf32> to vector<16x256xbf16>
    %c1_91 = arith.constant 1 : index
    %c0_92 = arith.constant 0 : index
    %c0_93 = arith.constant 0 : index
    %271 = vector.load %arg7[%c1_91, %c0_92, %c0_93] : memref<2x256x64xbf16, #tpu.memory_space<vmem>>, vector<1x256x64xbf16>
    %272 = vector.shape_cast %271 : vector<1x256x64xbf16> to vector<256x64xbf16>
    %cst_94 = arith.constant dense<0.000000e+00> : vector<16x64xf32>
    %273 = tpu.matmul %270, %272, %cst_94 {dimension_numbers = #tpu.dot_dimension_numbers<[1], [0], [0], [1], [0, 0, 1, 1], [], []>} : vector<16x256xbf16>, vector<256x64xbf16>, vector<16x64xf32> -> vector<16x64xf32>
    %274 = vector.broadcast %158 : vector<1x64xf32> to vector<16x64xf32>
    %275 = arith.addf %273, %274 : vector<16x64xf32>
    %276 = vector.broadcast %159 : vector<1x64xf32> to vector<16x64xf32>
    %277 = arith.mulf %276, %275 : vector<16x64xf32>
    %278 = arith.addf %233, %277 : vector<16x64xf32>
    %c0_95 = arith.constant 0 : index
    %c0_96 = arith.constant 0 : index
    %279 = vector.load %arg11[%c0_95, %c0_96] : memref<3x64xf32, #tpu.memory_space<vmem>>, vector<3x64xf32>
    %280 = vector.extract_strided_slice %279 {offsets = [0, 0], sizes = [1, 64], strides = [1, 1]} : vector<3x64xf32> to vector<1x64xf32>
    %281 = vector.extract_strided_slice %279 {offsets = [1, 0], sizes = [1, 64], strides = [1, 1]} : vector<3x64xf32> to vector<1x64xf32>
    %cst_97 = arith.constant dense<0.000000e+00> : vector<16xf32>
    %282 = vector.multi_reduction <add>, %278, %cst_97 [1] : vector<16x64xf32> to vector<16xf32>
    %283 = vector.shape_cast %282 : vector<16xf32> to vector<16x1xf32>
    %cst_98 = arith.constant 6.400000e+01 : f32
    %284 = vector.broadcast %cst_98 : f32 to vector<16x1xf32>
    %285 = arith.divf %283, %284 : vector<16x1xf32>
    %286 = vector.broadcast %285 : vector<16x1xf32> to vector<16x64xf32>
    %287 = arith.subf %278, %286 : vector<16x64xf32>
    %288 = arith.mulf %287, %287 : vector<16x64xf32>
    %cst_99 = arith.constant dense<0.000000e+00> : vector<16xf32>
    %289 = vector.multi_reduction <add>, %288, %cst_99 [1] : vector<16x64xf32> to vector<16xf32>
    %290 = vector.shape_cast %289 : vector<16xf32> to vector<16x1xf32>
    %cst_100 = arith.constant 6.400000e+01 : f32
    %291 = vector.broadcast %cst_100 : f32 to vector<16x1xf32>
    %292 = arith.divf %290, %291 : vector<16x1xf32>
    %293 = vector.broadcast %285 : vector<16x1xf32> to vector<16x64xf32>
    %294 = arith.subf %278, %293 : vector<16x64xf32>
    %cst_101 = arith.constant 9.99999997E-7 : f32
    %295 = vector.broadcast %cst_101 : f32 to vector<16x1xf32>
    %296 = arith.addf %292, %295 : vector<16x1xf32>
    %297 = math.rsqrt %296 : vector<16x1xf32>
    %298 = vector.broadcast %297 : vector<16x1xf32> to vector<16x64xf32>
    %299 = arith.mulf %294, %298 : vector<16x64xf32>
    %300 = vector.broadcast %280 : vector<1x64xf32> to vector<16x64xf32>
    %301 = arith.mulf %299, %300 : vector<16x64xf32>
    %302 = vector.broadcast %281 : vector<1x64xf32> to vector<16x64xf32>
    %303 = arith.addf %301, %302 : vector<16x64xf32>
    %c0_102 = arith.constant 0 : index
    %c0_103 = arith.constant 0 : index
    %304 = vector.load %arg10[%c0_102, %c0_103] : memref<64x43xf32, #tpu.memory_space<vmem>>, vector<64x43xf32>
    %cst_104 = arith.constant dense<0.000000e+00> : vector<16x43xf32>
    %305 = tpu.matmul %303, %304, %cst_104 {dimension_numbers = #tpu.dot_dimension_numbers<[1], [0], [0], [1], [0, 0, 1, 1], [], []>} : vector<16x64xf32>, vector<64x43xf32>, vector<16x43xf32> -> vector<16x43xf32>
    %306 = vector.extract_strided_slice %279 {offsets = [2, 0], sizes = [1, 43], strides = [1, 1]} : vector<3x64xf32> to vector<1x43xf32>
    %307 = vector.broadcast %306 : vector<1x43xf32> to vector<16x43xf32>
    %308 = arith.addf %305, %307 : vector<16x43xf32>
    %309 = vector.extract_strided_slice %308 {offsets = [0, 0], sizes = [1, 43], strides = [1, 1]} : vector<16x43xf32> to vector<1x43xf32>
    %310 = vector.extract_strided_slice %308 {offsets = [8, 0], sizes = [1, 43], strides = [1, 1]} : vector<16x43xf32> to vector<1x43xf32>
    %311 = tpu.concatenate %309, %310 in 0 : vector<1x43xf32>, vector<1x43xf32> -> vector<2x43xf32>
    %cst_105 = arith.constant dense<0xFF800000> : vector<43xf32>
    %312 = vector.multi_reduction <maximumf>, %311, %cst_105 [0] : vector<2x43xf32> to vector<43xf32>
    %313 = vector.shape_cast %312 : vector<43xf32> to vector<1x43xf32>
    %314 = vector.broadcast %313 : vector<1x43xf32> to vector<2x43xf32>
    %315 = arith.subf %311, %314 : vector<2x43xf32>
    %316 = math.exp %315 : vector<2x43xf32>
    %cst_106 = arith.constant dense<0.000000e+00> : vector<43xf32>
    %317 = vector.multi_reduction <add>, %316, %cst_106 [0] : vector<2x43xf32> to vector<43xf32>
    %318 = vector.shape_cast %317 : vector<43xf32> to vector<1x43xf32>
    %319 = vector.broadcast %318 : vector<1x43xf32> to vector<2x43xf32>
    %320 = arith.divf %316, %319 : vector<2x43xf32>
    %c0_107 = arith.constant 0 : index
    %c0_108 = arith.constant 0 : index
    %321 = vector.load %arg12[%c0_107, %c0_108] : memref<2x43xf32, #tpu.memory_space<vmem>>, vector<2x43xf32>
    tpu.vector_store %arg12[%c0_107, %c0_108], %320 {strides = array<i32>} : memref<2x43xf32, #tpu.memory_space<vmem>>, vector<2x43xf32>,
    return
  }
  func.func @transform_0(%arg0: i32) -> (i32, i32) {
    %c0_i32 = arith.constant 0 : i32
    %c0_i32_0 = arith.constant 0 : i32
    %c0_i32_1 = arith.constant 0 : i32
    return %c0_i32, %c0_i32_0 : i32, i32
  }
  func.func @transform_1(%arg0: i32) -> (i32, i32) {
    %c0_i32 = arith.constant 0 : i32
    %c0_i32_0 = arith.constant 0 : i32
    %c0_i32_1 = arith.constant 0 : i32
    return %c0_i32, %c0_i32_0 : i32, i32
  }
  func.func @transform_2(%arg0: i32) -> (i32, i32) {
    %c0_i32 = arith.constant 0 : i32
    %c0_i32_0 = arith.constant 0 : i32
    %c0_i32_1 = arith.constant 0 : i32
    return %c0_i32, %c0_i32_0 : i32, i32
  }
  func.func @transform_3(%arg0: i32) -> (i32, i32, i32) {
    %c0_i32 = arith.constant 0 : i32
    %c0_i32_0 = arith.constant 0 : i32
    %c0_i32_1 = arith.constant 0 : i32
    %c0_i32_2 = arith.constant 0 : i32
    return %c0_i32, %c0_i32_0, %c0_i32_1 : i32, i32, i32
  }
  func.func @transform_4(%arg0: i32) -> (i32, i32, i32) {
    %c0_i32 = arith.constant 0 : i32
    %c0_i32_0 = arith.constant 0 : i32
    %c0_i32_1 = arith.constant 0 : i32
    %c0_i32_2 = arith.constant 0 : i32
    return %c0_i32, %c0_i32_0, %c0_i32_1 : i32, i32, i32
  }
  func.func @transform_5(%arg0: i32) -> (i32, i32, i32) {
    %c0_i32 = arith.constant 0 : i32
    %c0_i32_0 = arith.constant 0 : i32
    %c0_i32_1 = arith.constant 0 : i32
    %c0_i32_2 = arith.constant 0 : i32
    return %c0_i32, %c0_i32_0, %c0_i32_1 : i32, i32, i32
  }
  func.func @transform_6(%arg0: i32) -> (i32, i32, i32) {
    %c0_i32 = arith.constant 0 : i32
    %c0_i32_0 = arith.constant 0 : i32
    %c0_i32_1 = arith.constant 0 : i32
    %c0_i32_2 = arith.constant 0 : i32
    return %c0_i32, %c0_i32_0, %c0_i32_1 : i32, i32, i32
  }
  func.func @transform_7(%arg0: i32) -> (i32, i32, i32) {
    %c0_i32 = arith.constant 0 : i32
    %c0_i32_0 = arith.constant 0 : i32
    %c0_i32_1 = arith.constant 0 : i32
    %c0_i32_2 = arith.constant 0 : i32
    return %c0_i32, %c0_i32_0, %c0_i32_1 : i32, i32, i32
  }
  func.func @transform_8(%arg0: i32) -> (i32, i32, i32) {
    %c0_i32 = arith.constant 0 : i32
    %c0_i32_0 = arith.constant 0 : i32
    %c0_i32_1 = arith.constant 0 : i32
    %c0_i32_2 = arith.constant 0 : i32
    return %c0_i32, %c0_i32_0, %c0_i32_1 : i32, i32, i32
  }
  func.func @transform_9(%arg0: i32) -> (i32, i32) {
    %c0_i32 = arith.constant 0 : i32
    %c0_i32_0 = arith.constant 0 : i32
    %c0_i32_1 = arith.constant 0 : i32
    return %c0_i32, %c0_i32_0 : i32, i32
  }
  func.func @transform_10(%arg0: i32) -> (i32, i32) {
    %c0_i32 = arith.constant 0 : i32
    %c0_i32_0 = arith.constant 0 : i32
    %c0_i32_1 = arith.constant 0 : i32
    return %c0_i32, %c0_i32_0 : i32, i32
  }
  func.func @transform_11(%arg0: i32) -> (i32, i32) {
    %c0_i32 = arith.constant 0 : i32
    %c0_i32_0 = arith.constant 0 : i32
    %c0_i32_1 = arith.constant 0 : i32
    return %c0_i32, %c0_i32_0 : i32, i32
  }
}

</mosaic_0001>

<llo_original>
// kernel: deit_forward.1
$region0: #{deit_forward.1}
  #allocation0 [shape = 'u32[]', space=smem, size = 0x4, offset = 0x4, fixed_abs, tag = 'smem constant byte address 0x4 - core index']
  #allocation1 [shape = 'u32[144,128]{1,0:T(1,128)}', space=vmem, size = 0x12000, scoped, tag = 'internal scratch']
  %s0 = inlined_call_operand.vmem [shape: bf16[16,768], index: 0, kind: input, shape index: {}]
  %s1 = inlined_call_operand.vmem [shape: bf16[768,64], index: 1, kind: input, shape index: {}]
  %s2 = inlined_call_operand.vmem [shape: f32[16,64], index: 2, kind: input, shape index: {}]
  %s3 = inlined_call_operand.vmem [shape: bf16[2,64,192], index: 3, kind: input, shape index: {}]
  %s4 = inlined_call_operand.vmem [shape: bf16[2,64,64], index: 4, kind: input, shape index: {}]
  %s5 = inlined_call_operand.vmem [shape: bf16[2,64,256], index: 5, kind: input, shape index: {}]
  %s6 = inlined_call_operand.vmem [shape: bf16[2,256,64], index: 6, kind: input, shape index: {}]
  %s7 = inlined_call_operand.vmem [shape: f32[2,8,64], index: 7, kind: input, shape index: {}]
  %s8 = inlined_call_operand.vmem [shape: f32[2,2,256], index: 8, kind: input, shape index: {}]
  %s9 = inlined_call_operand.vmem [shape: f32[64,43], index: 9, kind: input, shape index: {}]
  %s10 = inlined_call_operand.vmem [shape: f32[3,64], index: 10, kind: input, shape index: {}]
  %s11 = inlined_call_operand.hbm [shape: f32[2,43], index: 11, kind: output, shape index: {}]
  %s12 = sld [smem:[#allocation0]]
  $region54: #{deit_forward.1} parent=0
    _
  %s14 = ssub.s32 1, %s12
  %s15 = scalar_select 0, %s14, %s12
  $region1: #{deit_forward.1} parent=0
    #allocation2 [shape = 'u8[1024]{0}', space=vmem, size = 0x400, scoped, tag = 'output window, operand 0, single buffered']
    #allocation3 [shape = 's32[1]{0}', space=sflag, size = 0x4, scoped, tag = 'scoped memory for deit_forward.1']
    %16 = vsyncpa [#allocation3], 0
    // Predicated region
    $region2: #{deit_forward.1} parent=1 // pred_check
      _
    $region3: #{deit_forward.1} parent=1 // pred_check_branch
      %18 = sbr.rel (0) target = $region5
    $region4: #{deit_forward.1} parent=1 // pred_region
      _
    $region5: #{deit_forward.1} parent=1 // pred_fallthru
      _
    // Predicated region
    $region6: #{deit_forward.1} parent=1 // pred_check
      _
    $region7: #{deit_forward.1} parent=1 // pred_check_branch
      %20 = sbr.rel (0) target = $region9
    $region8: #{deit_forward.1} parent=1 // pred_region
      _
    $region9: #{deit_forward.1} parent=1 // pred_fallthru
      _
    // Predicated region
    $region10: #{deit_forward.1} parent=1 // pred_check
      _
    $region11: #{deit_forward.1} parent=1 // pred_check_branch
      %22 = sbr.rel (0) target = $region13
    $region12: #{deit_forward.1} parent=1 // pred_region
      _
    $region13: #{deit_forward.1} parent=1 // pred_fallthru
      _
    // Predicated region
    $region14: #{deit_forward.1} parent=1 // pred_check
      _
    $region15: #{deit_forward.1} parent=1 // pred_check_branch
      %24 = sbr.rel (0) target = $region17
    $region16: #{deit_forward.1} parent=1 // pred_region
      _
    $region17: #{deit_forward.1} parent=1 // pred_fallthru
      _
    // Predicated region
    $region18: #{deit_forward.1} parent=1 // pred_check
      _
    $region19: #{deit_forward.1} parent=1 // pred_check_branch
      %26 = sbr.rel (0) target = $region21
    $region20: #{deit_forward.1} parent=1 // pred_region
      _
    $region21: #{deit_forward.1} parent=1 // pred_fallthru
      _
    // Predicated region
    $region22: #{deit_forward.1} parent=1 // pred_check
      _
    $region23: #{deit_forward.1} parent=1 // pred_check_branch
      %28 = sbr.rel (0) target = $region25
    $region24: #{deit_forward.1} parent=1 // pred_region
      _
    $region25: #{deit_forward.1} parent=1 // pred_fallthru
      _
    // Predicated region
    $region26: #{deit_forward.1} parent=1 // pred_check
      _
    $region27: #{deit_forward.1} parent=1 // pred_check_branch
      %30 = sbr.rel (0) target = $region29
    $region28: #{deit_forward.1} parent=1 // pred_region
      _
    $region29: #{deit_forward.1} parent=1 // pred_fallthru
      _
    // Predicated region
    $region30: #{deit_forward.1} parent=1 // pred_check
      _
    $region31: #{deit_forward.1} parent=1 // pred_check_branch
      %32 = sbr.rel (0) target = $region33
    $region32: #{deit_forward.1} parent=1 // pred_region
      _
    $region33: #{deit_forward.1} parent=1 // pred_fallthru
      _
    // Predicated region
    $region34: #{deit_forward.1} parent=1 // pred_check
      _
    $region35: #{deit_forward.1} parent=1 // pred_check_branch
      %34 = sbr.rel (0) target = $region37
    $region36: #{deit_forward.1} parent=1 // pred_region
      _
    $region37: #{deit_forward.1} parent=1 // pred_fallthru
      _
    // Predicated region
    $region38: #{deit_forward.1} parent=1 // pred_check
      _
    $region39: #{deit_forward.1} parent=1 // pred_check_branch
      %36 = sbr.rel (0) target = $region41
    $region40: #{deit_forward.1} parent=1 // pred_region
      _
    $region41: #{deit_forward.1} parent=1 // pred_fallthru
      _
    // Predicated region
    $region42: #{deit_forward.1} parent=1 // pred_check
      _
    $region43: #{deit_forward.1} parent=1 // pred_check_branch
      %38 = sbr.rel (0) target = $region45
    $region44: #{deit_forward.1} parent=1 // pred_region
      _
    $region45: #{deit_forward.1} parent=1 // pred_fallthru
      _
    %v40 = vld [vmem:[%s0] sm:$0xff]
    %v41 = vld [vmem:[%s0 + $0x8] sm:$0xff]
    %v42 = vld [vmem:[%s0 + $0x10] sm:$0xff]
    %v43 = vld [vmem:[%s0 + $0x18] sm:$0xff]
    %v44 = vld [vmem:[%s0 + $0x20] sm:$0xff]
    %v45 = vld [vmem:[%s0 + $0x28] sm:$0xff]
    %v46 = vld [vmem:[%s1] sm:$0xf]
    %v47 = vld [vmem:[%s1 + $0x4] sm:$0xf]
    %v48 = vld [vmem:[%s1 + $0x8] sm:$0xf]
    %v49 = vld [vmem:[%s1 + $0xc] sm:$0xf]
    %v50 = vld [vmem:[%s1 + $0x10] sm:$0xf]
    %v51 = vld [vmem:[%s1 + $0x14] sm:$0xf]
    %v52 = vld [vmem:[%s1 + $0x18] sm:$0xf]
    %v53 = vld [vmem:[%s1 + $0x1c] sm:$0xf]
    %v54 = vld [vmem:[%s1 + $0x20] sm:$0xf]
    %v55 = vld [vmem:[%s1 + $0x24] sm:$0xf]
    %v56 = vld [vmem:[%s1 + $0x28] sm:$0xf]
    %v57 = vld [vmem:[%s1 + $0x2c] sm:$0xf]
    %v58 = vld [vmem:[%s1 + $0x30] sm:$0xf]
    %v59 = vld [vmem:[%s1 + $0x34] sm:$0xf]
    %v60 = vld [vmem:[%s1 + $0x38] sm:$0xf]
    %v61 = vld [vmem:[%s1 + $0x3c] sm:$0xf]
    %v62 = vld [vmem:[%s1 + $0x40] sm:$0xf]
    %v63 = vld [vmem:[%s1 + $0x44] sm:$0xf]
    %v64 = vld [vmem:[%s1 + $0x48] sm:$0xf]
    %v65 = vld [vmem:[%s1 + $0x4c] sm:$0xf]
    %v66 = vld [vmem:[%s1 + $0x50] sm:$0xf]
    %v67 = vld [vmem:[%s1 + $0x54] sm:$0xf]
    %v68 = vld [vmem:[%s1 + $0x58] sm:$0xf]
    %v69 = vld [vmem:[%s1 + $0x5c] sm:$0xf]
    %v70 = vld [vmem:[%s1 + $0x60] sm:$0xf]
    %v71 = vld [vmem:[%s1 + $0x64] sm:$0xf]
    %v72 = vld [vmem:[%s1 + $0x68] sm:$0xf]
    %v73 = vld [vmem:[%s1 + $0x6c] sm:$0xf]
    %v74 = vld [vmem:[%s1 + $0x70] sm:$0xf]
    %v75 = vld [vmem:[%s1 + $0x74] sm:$0xf]
    %v76 = vld [vmem:[%s1 + $0x78] sm:$0xf]
    %v77 = vld [vmem:[%s1 + $0x7c] sm:$0xf]
    %v78 = vld [vmem:[%s1 + $0x80] sm:$0xf]
    %v79 = vld [vmem:[%s1 + $0x84] sm:$0xf]
    %v80 = vld [vmem:[%s1 + $0x88] sm:$0xf]
    %v81 = vld [vmem:[%s1 + $0x8c] sm:$0xf]
    %v82 = vld [vmem:[%s1 + $0x90] sm:$0xf]
    %v83 = vld [vmem:[%s1 + $0x94] sm:$0xf]
    %v84 = vld [vmem:[%s1 + $0x98] sm:$0xf]
    %v85 = vld [vmem:[%s1 + $0x9c] sm:$0xf]
    %v86 = vld [vmem:[%s1 + $0xa0] sm:$0xf]
    %v87 = vld [vmem:[%s1 + $0xa4] sm:$0xf]
    %v88 = vld [vmem:[%s1 + $0xa8] sm:$0xf]
    %v89 = vld [vmem:[%s1 + $0xac] sm:$0xf]
    %v90 = vld [vmem:[%s1 + $0xb0] sm:$0xf]
    %v91 = vld [vmem:[%s1 + $0xb4] sm:$0xf]
    %v92 = vld [vmem:[%s1 + $0xb8] sm:$0xf]
    %v93 = vld [vmem:[%s1 + $0xbc] sm:$0xf]
    %v94 = vld [vmem:[%s1 + $0xc0] sm:$0xf]
    %v95 = vld [vmem:[%s1 + $0xc4] sm:$0xf]
    %v96 = vld [vmem:[%s1 + $0xc8] sm:$0xf]
    %v97 = vld [vmem:[%s1 + $0xcc] sm:$0xf]
    %v98 = vld [vmem:[%s1 + $0xd0] sm:$0xf]
    %v99 = vld [vmem:[%s1 + $0xd4] sm:$0xf]
    %v100 = vld [vmem:[%s1 + $0xd8] sm:$0xf]
    %v101 = vld [vmem:[%s1 + $0xdc] sm:$0xf]
    %v102 = vld [vmem:[%s1 + $0xe0] sm:$0xf]
    %v103 = vld [vmem:[%s1 + $0xe4] sm:$0xf]
    %v104 = vld [vmem:[%s1 + $0xe8] sm:$0xf]
    %v105 = vld [vmem:[%s1 + $0xec] sm:$0xf]
    %v106 = vld [vmem:[%s1 + $0xf0] sm:$0xf]
    %v107 = vld [vmem:[%s1 + $0xf4] sm:$0xf]
    %v108 = vld [vmem:[%s1 + $0xf8] sm:$0xf]
    %v109 = vld [vmem:[%s1 + $0xfc] sm:$0xf]
    %v110 = vld [vmem:[%s1 + $0x100] sm:$0xf]
    %v111 = vld [vmem:[%s1 + $0x104] sm:$0xf]
    %v112 = vld [vmem:[%s1 + $0x108] sm:$0xf]
    %v113 = vld [vmem:[%s1 + $0x10c] sm:$0xf]
    %v114 = vld [vmem:[%s1 + $0x110] sm:$0xf]
    %v115 = vld [vmem:[%s1 + $0x114] sm:$0xf]
    %v116 = vld [vmem:[%s1 + $0x118] sm:$0xf]
    %v117 = vld [vmem:[%s1 + $0x11c] sm:$0xf]
    %v118 = vld [vmem:[%s1 + $0x120] sm:$0xf]
    %v119 = vld [vmem:[%s1 + $0x124] sm:$0xf]
    %v120 = vld [vmem:[%s1 + $0x128] sm:$0xf]
    %v121 = vld [vmem:[%s1 + $0x12c] sm:$0xf]
    %v122 = vld [vmem:[%s1 + $0x130] sm:$0xf]
    %v123 = vld [vmem:[%s1 + $0x134] sm:$0xf]
    %v124 = vld [vmem:[%s1 + $0x138] sm:$0xf]
    %v125 = vld [vmem:[%s1 + $0x13c] sm:$0xf]
    %v126 = vld [vmem:[%s1 + $0x140] sm:$0xf]
    %v127 = vld [vmem:[%s1 + $0x144] sm:$0xf]
    %v128 = vld [vmem:[%s1 + $0x148] sm:$0xf]
    %v129 = vld [vmem:[%s1 + $0x14c] sm:$0xf]
    %v130 = vld [vmem:[%s1 + $0x150] sm:$0xf]
    %v131 = vld [vmem:[%s1 + $0x154] sm:$0xf]
    %v132 = vld [vmem:[%s1 + $0x158] sm:$0xf]
    %v133 = vld [vmem:[%s1 + $0x15c] sm:$0xf]
    %v134 = vld [vmem:[%s1 + $0x160] sm:$0xf]
    %v135 = vld [vmem:[%s1 + $0x164] sm:$0xf]
    %v136 = vld [vmem:[%s1 + $0x168] sm:$0xf]
    %v137 = vld [vmem:[%s1 + $0x16c] sm:$0xf]
    %v138 = vld [vmem:[%s1 + $0x170] sm:$0xf]
    %v139 = vld [vmem:[%s1 + $0x174] sm:$0xf]
    %v140 = vld [vmem:[%s1 + $0x178] sm:$0xf]
    %v141 = vld [vmem:[%s1 + $0x17c] sm:$0xf]
    %v142 = vld [vmem:[%s2] sm:$0xff]
    %v143 = vld [vmem:[%s2 + $0x8] sm:$0xff]
    %v150 = vunpack.c.l.b16 %v40
    %v151 = vunpack.c.h.b16 %v40
    %v152 = vunpack.c.l.b16 %v41
    %v153 = vunpack.c.h.b16 %v41
    %v154 = vunpack.c.l.b16 %v42
    %v155 = vunpack.c.h.b16 %v42
    %v156 = vunpack.c.l.b16 %v43
    %v157 = vunpack.c.h.b16 %v43
    %v158 = vunpack.c.l.b16 %v44
    %v159 = vunpack.c.h.b16 %v44
    %v160 = vunpack.c.l.b16 %v45
    %v161 = vunpack.c.h.b16 %v45
    %v162 = vpack.c.b16 %v156, %v150
    %v163 = vpack.c.b16 %v157, %v151
    %v164 = vpack.c.b16 %v158, %v152
    %v165 = vpack.c.b16 %v159, %v153
    %v166 = vpack.c.b16 %v160, %v154
    %v167 = vpack.c.b16 %v161, %v155
    %v270 = vunpack.c.l.b16 %v46
    %v271 = vunpack.c.l.b16 %v47
    %v272 = vunpack.c.l.b16 %v48
    %v273 = vunpack.c.l.b16 %v49
    %v274 = vunpack.c.l.b16 %v50
    %v275 = vunpack.c.l.b16 %v51
    %v276 = vunpack.c.l.b16 %v52
    %v277 = vunpack.c.l.b16 %v53
    %v278 = vunpack.c.l.b16 %v54
    %v279 = vunpack.c.l.b16 %v55
    %v280 = vunpack.c.l.b16 %v56
    %v281 = vunpack.c.l.b16 %v57
    %v282 = vunpack.c.l.b16 %v58
    %v283 = vunpack.c.l.b16 %v59
    %v284 = vunpack.c.l.b16 %v60
    %v285 = vunpack.c.l.b16 %v61
    %v286 = vunpack.c.l.b16 %v62
    %v287 = vunpack.c.l.b16 %v63
    %v288 = vunpack.c.l.b16 %v64
    %v289 = vunpack.c.l.b16 %v65
    %v290 = vunpack.c.l.b16 %v66
    %v291 = vunpack.c.l.b16 %v67
    %v292 = vunpack.c.l.b16 %v68
    %v293 = vunpack.c.l.b16 %v69
    %v294 = vunpack.c.l.b16 %v70
    %v295 = vunpack.c.l.b16 %v71
    %v296 = vunpack.c.l.b16 %v72
    %v297 = vunpack.c.l.b16 %v73
    %v298 = vunpack.c.l.b16 %v74
    %v299 = vunpack.c.l.b16 %v75
    %v300 = vunpack.c.l.b16 %v76
    %v301 = vunpack.c.l.b16 %v77
    %v302 = vunpack.c.l.b16 %v78
    %v303 = vunpack.c.l.b16 %v79
    %v304 = vunpack.c.l.b16 %v80
    %v305 = vunpack.c.l.b16 %v81
    %v306 = vunpack.c.l.b16 %v82
    %v307 = vunpack.c.l.b16 %v83
    %v308 = vunpack.c.l.b16 %v84
    %v309 = vunpack.c.l.b16 %v85
    %v310 = vunpack.c.l.b16 %v86
    %v311 = vunpack.c.l.b16 %v87
    %v312 = vunpack.c.l.b16 %v88
    %v313 = vunpack.c.l.b16 %v89
    %v314 = vunpack.c.l.b16 %v90
    %v315 = vunpack.c.l.b16 %v91
    %v316 = vunpack.c.l.b16 %v92
    %v317 = vunpack.c.l.b16 %v93
    %v318 = vunpack.c.l.b16 %v94
    %v319 = vunpack.c.l.b16 %v95
    %v320 = vunpack.c.l.b16 %v96
    %v321 = vunpack.c.l.b16 %v97
    %v322 = vunpack.c.l.b16 %v98
    %v323 = vunpack.c.l.b16 %v99
    %v324 = vunpack.c.l.b16 %v100
    %v325 = vunpack.c.l.b16 %v101
    %v326 = vunpack.c.l.b16 %v102
    %v327 = vunpack.c.l.b16 %v103
    %v328 = vunpack.c.l.b16 %v104
    %v329 = vunpack.c.l.b16 %v105
    %v330 = vunpack.c.l.b16 %v106
    %v331 = vunpack.c.l.b16 %v107
    %v332 = vunpack.c.l.b16 %v108
    %v333 = vunpack.c.l.b16 %v109
    %v334 = vunpack.c.l.b16 %v110
    %v335 = vunpack.c.l.b16 %v111
    %v336 = vunpack.c.l.b16 %v112
    %v337 = vunpack.c.l.b16 %v113
    %v338 = vunpack.c.l.b16 %v114
    %v339 = vunpack.c.l.b16 %v115
    %v340 = vunpack.c.l.b16 %v116
    %v341 = vunpack.c.l.b16 %v117
    %v342 = vunpack.c.l.b16 %v118
    %v343 = vunpack.c.l.b16 %v119
    %v344 = vunpack.c.l.b16 %v120
    %v345 = vunpack.c.l.b16 %v121
    %v346 = vunpack.c.l.b16 %v122
    %v347 = vunpack.c.l.b16 %v123
    %v348 = vunpack.c.l.b16 %v124
    %v349 = vunpack.c.l.b16 %v125
    %v350 = vunpack.c.l.b16 %v126
    %v351 = vunpack.c.l.b16 %v127
    %v352 = vunpack.c.l.b16 %v128
    %v353 = vunpack.c.l.b16 %v129
    %v354 = vunpack.c.l.b16 %v130
    %v355 = vunpack.c.l.b16 %v131
    %v356 = vunpack.c.l.b16 %v132
    %v357 = vunpack.c.l.b16 %v133
    %v358 = vunpack.c.l.b16 %v134
    %v359 = vunpack.c.l.b16 %v135
    %v360 = vunpack.c.l.b16 %v136
    %v361 = vunpack.c.l.b16 %v137
    %v362 = vunpack.c.l.b16 %v138
    %v363 = vunpack.c.l.b16 %v139
    %v364 = vunpack.c.l.b16 %v140
    %v365 = vunpack.c.l.b16 %v141
    %v366 = vpack.c.b16 %v271, %v270
    %v367 = vpack.c.b16 %v273, %v272
    %v368 = vpack.c.b16 %v275, %v274
    %v369 = vpack.c.b16 %v277, %v276
    %v370 = vpack.c.b16 %v279, %v278
    %v371 = vpack.c.b16 %v281, %v280
    %v372 = vpack.c.b16 %v283, %v282
    %v373 = vpack.c.b16 %v285, %v284
    %v374 = vpack.c.b16 %v287, %v286
    %v375 = vpack.c.b16 %v289, %v288
    %v376 = vpack.c.b16 %v291, %v290
    %v377 = vpack.c.b16 %v293, %v292
    %v378 = vpack.c.b16 %v295, %v294
    %v379 = vpack.c.b16 %v297, %v296
    %v380 = vpack.c.b16 %v299, %v298
    %v381 = vpack.c.b16 %v301, %v300
    %v382 = vpack.c.b16 %v303, %v302
    %v383 = vpack.c.b16 %v305, %v304
    %v384 = vpack.c.b16 %v307, %v306
    %v385 = vpack.c.b16 %v309, %v308
    %v386 = vpack.c.b16 %v311, %v310
    %v387 = vpack.c.b16 %v313, %v312
    %v388 = vpack.c.b16 %v315, %v314
    %v389 = vpack.c.b16 %v317, %v316
    %v390 = vpack.c.b16 %v319, %v318
    %v391 = vpack.c.b16 %v321, %v320
    %v392 = vpack.c.b16 %v323, %v322
    %v393 = vpack.c.b16 %v325, %v324
    %v394 = vpack.c.b16 %v327, %v326
    %v395 = vpack.c.b16 %v329, %v328
    %v396 = vpack.c.b16 %v331, %v330
    %v397 = vpack.c.b16 %v333, %v332
    %v398 = vpack.c.b16 %v335, %v334
    %v399 = vpack.c.b16 %v337, %v336
    %v400 = vpack.c.b16 %v339, %v338
    %v401 = vpack.c.b16 %v341, %v340
    %v402 = vpack.c.b16 %v343, %v342
    %v403 = vpack.c.b16 %v345, %v344
    %v404 = vpack.c.b16 %v347, %v346
    %v405 = vpack.c.b16 %v349, %v348
    %v406 = vpack.c.b16 %v351, %v350
    %v407 = vpack.c.b16 %v353, %v352
    %v408 = vpack.c.b16 %v355, %v354
    %v409 = vpack.c.b16 %v357, %v356
    %v410 = vpack.c.b16 %v359, %v358
    %v411 = vpack.c.b16 %v361, %v360
    %v412 = vpack.c.b16 %v363, %v362
    %v413 = vpack.c.b16 %v365, %v364
    %462 = vmatprep.subr.bf16.mxu0 0
    %463 = vmatpush1.bf16.msra.mxu0 %v366
    %464 = vmatprep.subr.bf16.mxu0 0
    %465 = vmatpush1.bf16.msra.mxu0 %v367
    %466 = vmatprep.subr.bf16.mxu0 0
    %467 = vmatpush1.bf16.msra.mxu0 %v368
    %468 = vmatprep.subr.bf16.mxu0 0
    %469 = vmatpush1.bf16.msra.mxu0 %v369
    %470 = vmatprep.subr.bf16.mxu0 0
    %471 = vmatpush1.bf16.msra.mxu0 %v370
    %472 = vmatprep.subr.bf16.mxu0 0
    %473 = vmatpush1.bf16.msra.mxu0 %v371
    %474 = vmatprep.subr.bf16.mxu0 0
    %475 = vmatpush1.bf16.msra.mxu0 %v372
    %476 = vmatprep.subr.bf16.mxu0 0
    %477 = vmatpush1.bf16.msra.mxu0 %v373
    %478 = vmatprep.subr.bf16.mxu0 0
    %479 = vmatpush1.bf16.msra.mxu0 %v374
    %480 = vmatprep.subr.bf16.mxu0 0
    %481 = vmatpush1.bf16.msra.mxu0 %v375
    %482 = vmatprep.subr.bf16.mxu0 0
    %483 = vmatpush1.bf16.msra.mxu0 %v376
    %484 = vmatprep.subr.bf16.mxu0 0
    %485 = vmatpush1.bf16.msra.mxu0 %v377
    %486 = vmatprep.subr.bf16.mxu0 0
    %487 = vmatpush1.bf16.msra.mxu0 %v378
    %488 = vmatprep.subr.bf16.mxu0 0
    %489 = vmatpush1.bf16.msra.mxu0 %v379
    %490 = vmatprep.subr.bf16.mxu0 0
    %491 = vmatpush1.bf16.msra.mxu0 %v380
    %492 = vmatprep.subr.bf16.mxu0 0
    %493 = vmatpush1.bf16.msra.mxu0 %v381
    %494 = vmatprep.mubr.bf16.mxu0 %v163
    %495 = vmatmul.mubr.bf16.gmra.mrb[0].mxu0 %v162
    %v496 = vpop.f32.mrb[0].mxu0
    %v497 = vadd.f32 %v142, %v496
    %v498 = vpop.f32.mrb[0].mxu0
    %v499 = vpop.f32.mrb[0].mxu0
    %v500 = vadd.f32 %v143, %v499
    %v501 = vpop.f32.mrb[0].mxu0
    %502 = vdwg.mxu0
    %503 = vmatprep.subr.bf16.mxu0 0
    %504 = vmatpush1.bf16.msra.mxu0 %v382
    %505 = vmatprep.subr.bf16.mxu0 0
    %506 = vmatpush1.bf16.msra.mxu0 %v383
    %507 = vmatprep.subr.bf16.mxu0 0
    %508 = vmatpush1.bf16.msra.mxu0 %v384
    %509 = vmatprep.subr.bf16.mxu0 0
    %510 = vmatpush1.bf16.msra.mxu0 %v385
    %511 = vmatprep.subr.bf16.mxu0 0
    %512 = vmatpush1.bf16.msra.mxu0 %v386
    %513 = vmatprep.subr.bf16.mxu0 0
    %514 = vmatpush1.bf16.msra.mxu0 %v387
    %515 = vmatprep.subr.bf16.mxu0 0
    %516 = vmatpush1.bf16.msra.mxu0 %v388
    %517 = vmatprep.subr.bf16.mxu0 0
    %518 = vmatpush1.bf16.msra.mxu0 %v389
    %519 = vmatprep.subr.bf16.mxu0 0
    %520 = vmatpush1.bf16.msra.mxu0 %v390
    %521 = vmatprep.subr.bf16.mxu0 0
    %522 = vmatpush1.bf16.msra.mxu0 %v391
    %523 = vmatprep.subr.bf16.mxu0 0
    %524 = vmatpush1.bf16.msra.mxu0 %v392
    %525 = vmatprep.subr.bf16.mxu0 0
    %526 = vmatpush1.bf16.msra.mxu0 %v393
    %527 = vmatprep.subr.bf16.mxu0 0
    %528 = vmatpush1.bf16.msra.mxu0 %v394
    %529 = vmatprep.subr.bf16.mxu0 0
    %530 = vmatpush1.bf16.msra.mxu0 %v395
    %531 = vmatprep.subr.bf16.mxu0 0
    %532 = vmatpush1.bf16.msra.mxu0 %v396
    %533 = vmatprep.subr.bf16.mxu0 0
    %534 = vmatpush1.bf16.msra.mxu0 %v397
    %535 = vmatprep.mubr.bf16.mxu0 %v165
    %536 = vmatmul.mubr.bf16.gmra.mrb[0].mxu0 %v164
    %v537 = vpop.f32.mrb[0].mxu0
    %v538 = vadd.f32 %v497, %v537
    %v539 = vpop.f32.mrb[0].mxu0
    %v540 = vpop.f32.mrb[0].mxu0
    %v541 = vadd.f32 %v500, %v540
    %v542 = vpop.f32.mrb[0].mxu0
    %543 = vdwg.mxu0
    %544 = vmatprep.subr.bf16.mxu0 0
    %545 = vmatpush1.bf16.msra.mxu0 %v398
    %546 = vmatprep.subr.bf16.mxu0 0
    %547 = vmatpush1.bf16.msra.mxu0 %v399
    %548 = vmatprep.subr.bf16.mxu0 0
    %549 = vmatpush1.bf16.msra.mxu0 %v400
    %550 = vmatprep.subr.bf16.mxu0 0
    %551 = vmatpush1.bf16.msra.mxu0 %v401
    %552 = vmatprep.subr.bf16.mxu0 0
    %553 = vmatpush1.bf16.msra.mxu0 %v402
    %554 = vmatprep.subr.bf16.mxu0 0
    %555 = vmatpush1.bf16.msra.mxu0 %v403
    %556 = vmatprep.subr.bf16.mxu0 0
    %557 = vmatpush1.bf16.msra.mxu0 %v404
    %558 = vmatprep.subr.bf16.mxu0 0
    %559 = vmatpush1.bf16.msra.mxu0 %v405
    %560 = vmatprep.subr.bf16.mxu0 0
    %561 = vmatpush1.bf16.msra.mxu0 %v406
    %562 = vmatprep.subr.bf16.mxu0 0
    %563 = vmatpush1.bf16.msra.mxu0 %v407
    %564 = vmatprep.subr.bf16.mxu0 0
    %565 = vmatpush1.bf16.msra.mxu0 %v408
    %566 = vmatprep.subr.bf16.mxu0 0
    %567 = vmatpush1.bf16.msra.mxu0 %v409
    %568 = vmatprep.subr.bf16.mxu0 0
    %569 = vmatpush1.bf16.msra.mxu0 %v410
    %570 = vmatprep.subr.bf16.mxu0 0
    %571 = vmatpush1.bf16.msra.mxu0 %v411
    %572 = vmatprep.subr.bf16.mxu0 0
    %573 = vmatpush1.bf16.msra.mxu0 %v412
    %574 = vmatprep.subr.bf16.mxu0 0
    %575 = vmatpush1.bf16.msra.mxu0 %v413
    %576 = vmatprep.mubr.bf16.mxu0 %v167
    %577 = vmatmul.mubr.bf16.gmra.mrb[0].mxu0 %v166
    %v578 = vpop.f32.mrb[0].mxu0
    %v579 = vadd.f32 %v538, %v578
    %v580 = vpop.f32.mrb[0].mxu0
    %v581 = vpop.f32.mrb[0].mxu0
    %v582 = vadd.f32 %v541, %v581
    %v583 = vpop.f32.mrb[0].mxu0
    %584 = vdwg.mxu0
    %v585 = vlaneseq
    %v586 = vshrl.u32 %v585, 7
    %v587 = vadd.s32 %v586, 8
    %v588 = vlaneseq
    %v589 = vand.u32 %v588, 127
    %v590 = vshrl.u32 %v586, 3
    %v591 = vshrl.u32 %v587, 3
    %v592 = vshrl.u32 %v589, 3
    %vm593 = vcmp.eq.s32.totalorder %v590, %v592
    %vm594 = vcmp.eq.s32.totalorder %v591, %v592
    %v595 = vand.u32 %v589, 7
    %vm596 = vcmp.lt.s32.totalorder %v595, 5
    %vm597 = vmand %vm593, %vm596
    %vm598 = vmand %vm594, %vm596
    %v599 = vld [vmem:[%s7] sm:$0xff]
    %v600 = vld [vmem:[%s8] sm:$0xf]
    %vm601 = vcmask 523264
    %v602 = vsel %vm601, %v579, 0.0
    %603 = vadd.xlane.f32.xlu0 %v602
    %v604 = vpop.xlane.xlu0 %603
    %v605 = vsel %vm601, %v582, 0.0
    %606 = vadd.xlane.f32.xlu0 %v605
    %v607 = vpop.xlane.xlu0 %606
    %v608 = vrcp.pop 64.0
    %v609 = vmul.f32 %v604, %v608
    %v610 = vmul.f32 %v607, %v608
    %v611 = vsub.f32 %v579, %v609
    %v612 = vsub.f32 %v582, %v610
    %v613 = vmul.f32 %v611, %v611
    %v614 = vmul.f32 %v612, %v612
    %v615 = vsel %vm601, %v613, 0.0
    %616 = vadd.xlane.f32.xlu0 %v615
    %v617 = vpop.xlane.xlu0 %616
    %v618 = vsel %vm601, %v614, 0.0
    %619 = vadd.xlane.f32.xlu0 %v618
    %v620 = vpop.xlane.xlu0 %619
    %v621 = vmul.f32 %v617, %v608
    %v622 = vmul.f32 %v620, %v608
    %v623 = vadd.f32 %v621, 1e-06
    %v624 = vadd.f32 %v622, 1e-06
    %v625 = vrsqrt.pop %v623
    %v626 = vrsqrt.pop %v624
    %v627 = vmul.f32 %v611, %v625
    %v628 = vmul.f32 %v612, %v626
    %v629 = vlaneseq
    %v630 = vshrl.u32 %v629, 7
    %v631 = vsub.s32 0, %v630
    %v632 = vrot.slane %v599, %v631
    %v633 = vmul.f32 %v627, %v632
    %v634 = vmul.f32 %v628, %v632
    %v635 = vlaneseq
    %v636 = vshrl.u32 %v635, 7
    %v637 = vsub.s32 1, %v636
    %v638 = vrot.slane %v599, %v637
    %v639 = vadd.f32 %v633, %v638
    %v640 = vadd.f32 %v634, %v638
    %v641 = vpack.c.bf16 %v640, %v639
    %v642 = vld [vmem:[%s3] sm:$0xff]
    %v643 = vld [vmem:[%s3 + $0x8] sm:$0xff]
    %v644 = vld [vmem:[%s3 + $0x10] sm:$0xff]
    %v645 = vld [vmem:[%s3 + $0x18] sm:$0xff]
    %v646 = vld [vmem:[%s3 + $0x20] sm:$0xff]
    %v647 = vld [vmem:[%s3 + $0x28] sm:$0xff]
    %v648 = vld [vmem:[%s3 + $0x30] sm:$0xff]
    %v649 = vld [vmem:[%s3 + $0x38] sm:$0xff]
    %v651 = vlaneseq
    %v652 = vshrl.u32 %v651, 7
    %v653 = vsub.s32 0, %v652
    %v654 = vrot.slane %v600, %v653
    %v655 = vlaneseq
    %v656 = vshrl.u32 %v655, 7
    %v657 = vsub.s32 2, %v656
    %v658 = vrot.slane %v600, %v657
    %v661 = vlaneseq
    %v662 = vshrl.u32 %v661, 7
    %v663 = vsub.s32 0, %v662
    %v664 = vrot.slane %v654, %v663
    %v665 = vlaneseq
    %v666 = vshrl.u32 %v665, 7
    %v667 = vsub.s32 0, %v666
    %v668 = vrot.slane %v658, %v667
    %v677 = vunpack.c.l.b16 %v642
    %v678 = vunpack.c.h.b16 %v642
    %v679 = vunpack.c.l.b16 %v643
    %v680 = vunpack.c.h.b16 %v643
    %v681 = vunpack.c.l.b16 %v644
    %v682 = vunpack.c.h.b16 %v644
    %v683 = vunpack.c.l.b16 %v645
    %v684 = vunpack.c.h.b16 %v645
    %v685 = vunpack.c.l.b16 %v646
    %v686 = vunpack.c.h.b16 %v646
    %v687 = vunpack.c.l.b16 %v647
    %v688 = vunpack.c.h.b16 %v647
    %v689 = vunpack.c.l.b16 %v648
    %v690 = vunpack.c.h.b16 %v648
    %v691 = vunpack.c.l.b16 %v649
    %v692 = vunpack.c.h.b16 %v649
    %v693 = vpack.c.b16 %v679, %v677
    %v694 = vpack.c.b16 %v680, %v678
    %v695 = vpack.c.b16 %v683, %v681
    %v696 = vpack.c.b16 %v684, %v682
    %v697 = vpack.c.b16 %v687, %v685
    %v698 = vpack.c.b16 %v688, %v686
    %v699 = vpack.c.b16 %v691, %v689
    %v700 = vpack.c.b16 %v692, %v690
    %v710 = vsel %vm601, %v641, 0
    %712 = vmatprep.subr.bf16.mxu0 %v694
    %713 = vmatpush1.bf16.msra.mxu0 %v693
    %714 = vmatprep.subr.bf16.mxu0 %v696
    %715 = vmatpush1.bf16.msra.mxu0 %v695
    %716 = vmatprep.subr.bf16.mxu0 %v698
    %717 = vmatpush1.bf16.msra.mxu0 %v697
    %718 = vmatprep.subr.bf16.mxu0 %v700
    %719 = vmatpush1.bf16.msra.mxu0 %v699
    %720 = vmatprep.subr.bf16.mxu0 0
    %721 = vmatpush1.bf16.msra.mxu0 0
    %722 = vmatprep.subr.bf16.mxu0 0
    %723 = vmatpush1.bf16.msra.mxu0 0
    %724 = vmatprep.subr.bf16.mxu0 0
    %725 = vmatpush1.bf16.msra.mxu0 0
    %726 = vmatprep.subr.bf16.mxu0 0
    %727 = vmatpush1.bf16.msra.mxu0 0
    %728 = vmatprep.subr.bf16.mxu0 0
    %729 = vmatpush1.bf16.msra.mxu0 0
    %730 = vmatprep.subr.bf16.mxu0 0
    %731 = vmatpush1.bf16.msra.mxu0 0
    %732 = vmatprep.subr.bf16.mxu0 0
    %733 = vmatpush1.bf16.msra.mxu0 0
    %734 = vmatprep.subr.bf16.mxu0 0
    %735 = vmatpush1.bf16.msra.mxu0 0
    %736 = vmatprep.subr.bf16.mxu0 0
    %737 = vmatpush1.bf16.msra.mxu0 0
    %738 = vmatprep.subr.bf16.mxu0 0
    %739 = vmatpush1.bf16.msra.mxu0 0
    %740 = vmatprep.subr.bf16.mxu0 0
    %741 = vmatpush1.bf16.msra.mxu0 0
    %742 = vmatprep.subr.bf16.mxu0 0
    %743 = vmatpush1.bf16.msra.mxu0 0
    %744 = vmatprep.mubr.bf16.mxu0 0
    %745 = vmatmul.mubr.bf16.gmra.mrb[0].mxu0 %v710
    %v746 = vpop.f32.mrb[0].mxu0
    %v747 = vadd.f32 %v664, %v746
    %v748 = vpop.f32.mrb[0].mxu0
    %v749 = vadd.f32 %v668, %v748
    %v750 = vpop.f32.mrb[0].mxu0
    %v751 = vadd.f32 %v664, %v750
    %v752 = vpop.f32.mrb[0].mxu0
    %v753 = vadd.f32 %v668, %v752
    %754 = vdwg.mxu0
    %757 = vrot.lane.b32.xlu0 %v747, 64
    %v758 = vpop.permute.xlu0 %757
    %759 = vrot.lane.b32.xlu0 %v751, 64
    %v760 = vpop.permute.xlu0 %759
    %vm761 = vcmask 261120
    %v762 = vsel %vm761, %v747, 0
    %v764 = vsel %vm761, %v751, 0
    %v766 = vsel %vm761, %v758, 0
    %v768 = vsel %vm761, %v760, 0
    %770 = vmatprep.subr.mxu0 0.0
    %771 = vmatpush1.xpose.msra.mxu0 %v766
    %772 = vmatprep.subr.mxu0 0.0
    %773 = vmatpush1.xpose.msra.mxu0 %v768
    %774 = vmatprep.subr.mxu0 0.0
    %775 = vmatpush1.xpose.msra.mxu0 0.0
    %776 = vmatprep.subr.mxu0 0.0
    %777 = vmatpush1.xpose.msra.mxu0 0.0
    %778 = vmatprep.subr.mxu0 0.0
    %779 = vmatpush1.xpose.msra.mxu0 0.0
    %780 = vmatprep.subr.mxu0 0.0
    %781 = vmatpush1.xpose.msra.mxu0 0.0
    %782 = vmatprep.subr.mxu0 0.0
    %783 = vmatpush1.xpose.msra.mxu0 0.0
    %784 = vmatprep.subr.mxu0 0.0
    %785 = vmatpush1.xpose.msra.mxu0 0.0
    %786 = vmatprep.subr.mxu0 0.0
    %787 = vmatpush1.xpose.msra.mxu0 0.0
    %788 = vmatprep.subr.mxu0 0.0
    %789 = vmatpush1.xpose.msra.mxu0 0.0
    %790 = vmatprep.subr.mxu0 0.0
    %791 = vmatpush1.xpose.msra.mxu0 0.0
    %792 = vmatprep.subr.mxu0 0.0
    %793 = vmatpush1.xpose.msra.mxu0 0.0
    %794 = vmatprep.subr.mxu0 0.0
    %795 = vmatpush1.xpose.msra.mxu0 0.0
    %796 = vmatprep.subr.mxu0 0.0
    %797 = vmatpush1.xpose.msra.mxu0 0.0
    %798 = vmatprep.subr.mxu0 0.0
    %799 = vmatpush1.xpose.msra.mxu0 0.0
    %800 = vmatprep.subr.mxu0 0.0
    %801 = vmatpush1.xpose.msra.mxu0 0.0
    %802 = vmatprep.subr.mxu0 0.0
    %803 = vmatpush1.xpose.msra.mxu0 0.0
    %804 = vmatprep.subr.mxu0 0.0
    %805 = vmatpush1.xpose.msra.mxu0 0.0
    %806 = vmatprep.subr.mxu0 0.0
    %807 = vmatpush1.xpose.msra.mxu0 0.0
    %808 = vmatprep.subr.mxu0 0.0
    %809 = vmatpush1.xpose.msra.mxu0 0.0
    %810 = vmatprep.subr.mxu0 0.0
    %811 = vmatpush1.xpose.msra.mxu0 0.0
    %812 = vmatprep.subr.mxu0 0.0
    %813 = vmatpush1.xpose.msra.mxu0 0.0
    %814 = vmatprep.subr.mxu0 0.0
    %815 = vmatpush1.xpose.msra.mxu0 0.0
    %816 = vmatprep.subr.mxu0 0.0
    %817 = vmatpush1.xpose.msra.mxu0 0.0
    %818 = vmatprep.subr.mxu0 0.0
    %819 = vmatpush1.xpose.msra.mxu0 0.0
    %820 = vmatprep.subr.mxu0 0.0
    %821 = vmatpush1.xpose.msra.mxu0 0.0
    %822 = vmatprep.subr.mxu0 0.0
    %823 = vmatpush1.xpose.msra.mxu0 0.0
    %824 = vmatprep.subr.mxu0 0.0
    %825 = vmatpush1.xpose.msra.mxu0 0.0
    %826 = vmatprep.subr.mxu0 0.0
    %827 = vmatpush1.xpose.msra.mxu0 0.0
    %828 = vmatprep.subr.mxu0 0.0
    %829 = vmatpush1.xpose.msra.mxu0 0.0
    %830 = vmatprep.subr.mxu0 0.0
    %831 = vmatpush1.xpose.msra.mxu0 0.0
    %832 = vmatprep.subr.mxu0 0.0
    %833 = vmatpush1.xpose.msra.mxu0 0.0
    %834 = vmatprep.mubr.f32.mxu0 0.0
    %835 = vmatmul.mubr.f32.gmra.mrb[0].mxu0 %v762
    %v836 = vpop.f32.mrb[0].mxu0
    %v837 = vadd.f32 0.0, %v836
    %v838 = vpop.f32.mrb[0].mxu0
    %839 = vmatprep.mubr.f32.mxu0 0.0
    %840 = vmatmul.mubr.f32.gmra.mrb[0].mxu0 %v764
    %v841 = vpop.f32.mrb[0].mxu0
    %v842 = vadd.f32 0.0, %v841
    %v843 = vpop.f32.mrb[0].mxu0
    %844 = vdwg.mxu0
    %v845 = vsel %vm597, %v837, -1e+30
    %v846 = vsel %vm598, %v842, -1e+30
    %vm847 = vcmask 130048
    %v848 = vsel %vm847, %v845, -inf
    %849 = vmax.xlane.f32.xlu0 %v848
    %v850 = vpop.xlane.xlu0 %849
    %v851 = vsel %vm847, %v846, -inf
    %852 = vmax.xlane.f32.xlu0 %v851
    %v853 = vpop.xlane.xlu0 %852
    %v854 = vsub.f32 %v845, %v850
    %v855 = vsub.f32 %v846, %v853
    %v856 = vmul.f32 %v854, 1.442695
    %v857 = vpow.pop %v856
    %v858 = vmul.f32 %v855, 1.442695
    %v859 = vpow.pop %v858
    %v860 = vsel %vm847, %v857, 0.0
    %861 = vadd.xlane.f32.xlu0 %v860
    %v862 = vpop.xlane.xlu0 %861
    %v863 = vsel %vm847, %v859, 0.0
    %864 = vadd.xlane.f32.xlu0 %v863
    %v865 = vpop.xlane.xlu0 %864
    %v866 = vrcp.pop %v862
    %v867 = vrcp.pop %v865
    %v868 = vmul.f32 %v857, %v866
    %v869 = vmul.f32 %v859, %v867
    %v871 = vsel %vm847, %v868, 0
    %v874 = vsel %vm847, %v869, 0
    %876 = vmatprep.subr.mxu0 0.0
    %877 = vmatpush1.msra.mxu0 %v749
    %878 = vmatprep.subr.mxu0 0.0
    %879 = vmatpush1.msra.mxu0 %v753
    %880 = vmatprep.subr.mxu0 0.0
    %881 = vmatpush1.msra.mxu0 0.0
    %882 = vmatprep.subr.mxu0 0.0
    %883 = vmatpush1.msra.mxu0 0.0
    %884 = vmatprep.subr.mxu0 0.0
    %885 = vmatpush1.msra.mxu0 0.0
    %886 = vmatprep.subr.mxu0 0.0
    %887 = vmatpush1.msra.mxu0 0.0
    %888 = vmatprep.subr.mxu0 0.0
    %889 = vmatpush1.msra.mxu0 0.0
    %890 = vmatprep.subr.mxu0 0.0
    %891 = vmatpush1.msra.mxu0 0.0
    %892 = vmatprep.subr.mxu0 0.0
    %893 = vmatpush1.msra.mxu0 0.0
    %894 = vmatprep.subr.mxu0 0.0
    %895 = vmatpush1.msra.mxu0 0.0
    %896 = vmatprep.subr.mxu0 0.0
    %897 = vmatpush1.msra.mxu0 0.0
    %898 = vmatprep.subr.mxu0 0.0
    %899 = vmatpush1.msra.mxu0 0.0
    %900 = vmatprep.subr.mxu0 0.0
    %901 = vmatpush1.msra.mxu0 0.0
    %902 = vmatprep.subr.mxu0 0.0
    %903 = vmatpush1.msra.mxu0 0.0
    %904 = vmatprep.subr.mxu0 0.0
    %905 = vmatpush1.msra.mxu0 0.0
    %906 = vmatprep.subr.mxu0 0.0
    %907 = vmatpush1.msra.mxu0 0.0
    %908 = vmatprep.subr.mxu0 0.0
    %909 = vmatpush1.msra.mxu0 0.0
    %910 = vmatprep.subr.mxu0 0.0
    %911 = vmatpush1.msra.mxu0 0.0
    %912 = vmatprep.subr.mxu0 0.0
    %913 = vmatpush1.msra.mxu0 0.0
    %914 = vmatprep.subr.mxu0 0.0
    %915 = vmatpush1.msra.mxu0 0.0
    %916 = vmatprep.subr.mxu0 0.0
    %917 = vmatpush1.msra.mxu0 0.0
    %918 = vmatprep.subr.mxu0 0.0
    %919 = vmatpush1.msra.mxu0 0.0
    %920 = vmatprep.subr.mxu0 0.0
    %921 = vmatpush1.msra.mxu0 0.0
    %922 = vmatprep.subr.mxu0 0.0
    %923 = vmatpush1.msra.mxu0 0.0
    %924 = vmatprep.subr.mxu0 0.0
    %925 = vmatpush1.msra.mxu0 0.0
    %926 = vmatprep.subr.mxu0 0.0
    %927 = vmatpush1.msra.mxu0 0.0
    %928 = vmatprep.subr.mxu0 0.0
    %929 = vmatpush1.msra.mxu0 0.0
    %930 = vmatprep.subr.mxu0 0.0
    %931 = vmatpush1.msra.mxu0 0.0
    %932 = vmatprep.subr.mxu0 0.0
    %933 = vmatpush1.msra.mxu0 0.0
    %934 = vmatprep.subr.mxu0 0.0
    %935 = vmatpush1.msra.mxu0 0.0
    %936 = vmatprep.subr.mxu0 0.0
    %937 = vmatpush1.msra.mxu0 0.0
    %938 = vmatprep.subr.mxu0 0.0
    %939 = vmatpush1.msra.mxu0 0.0
    %940 = vmatprep.mubr.f32.mxu0 0.0
    %941 = vmatmul.mubr.f32.gmra.mrb[0].mxu0 %v871
    %v942 = vpop.f32.mrb[0].mxu0
    %v943 = vadd.f32 0.0, %v942
    %v944 = vpop.f32.mrb[0].mxu0
    %945 = vmatprep.mubr.f32.mxu0 0.0
    %946 = vmatmul.mubr.f32.gmra.mrb[0].mxu0 %v874
    %v947 = vpop.f32.mrb[0].mxu0
    %v948 = vadd.f32 0.0, %v947
    %v949 = vpop.f32.mrb[0].mxu0
    %950 = vdwg.mxu0
    %951 = vrot.lane.b32.xlu0 %v747, 96
    %v952 = vpop.permute.xlu0 %951
    %953 = vrot.lane.b32.xlu0 %v751, 96
    %v954 = vpop.permute.xlu0 %953
    %955 = vrot.lane.b32.xlu0 %v747, 32
    %v956 = vpop.permute.xlu0 %955
    %957 = vrot.lane.b32.xlu0 %v751, 32
    %v958 = vpop.permute.xlu0 %957
    %v959 = vsel %vm761, %v952, 0
    %v961 = vsel %vm761, %v954, 0
    %v963 = vsel %vm761, %v956, 0
    %v965 = vsel %vm761, %v958, 0
    %967 = vmatprep.subr.mxu0 0.0
    %968 = vmatpush1.xpose.msra.mxu0 %v963
    %969 = vmatprep.subr.mxu0 0.0
    %970 = vmatpush1.xpose.msra.mxu0 %v965
    %971 = vmatprep.subr.mxu0 0.0
    %972 = vmatpush1.xpose.msra.mxu0 0.0
    %973 = vmatprep.subr.mxu0 0.0
    %974 = vmatpush1.xpose.msra.mxu0 0.0
    %975 = vmatprep.subr.mxu0 0.0
    %976 = vmatpush1.xpose.msra.mxu0 0.0
    %977 = vmatprep.subr.mxu0 0.0
    %978 = vmatpush1.xpose.msra.mxu0 0.0
    %979 = vmatprep.subr.mxu0 0.0
    %980 = vmatpush1.xpose.msra.mxu0 0.0
    %981 = vmatprep.subr.mxu0 0.0
    %982 = vmatpush1.xpose.msra.mxu0 0.0
    %983 = vmatprep.subr.mxu0 0.0
    %984 = vmatpush1.xpose.msra.mxu0 0.0
    %985 = vmatprep.subr.mxu0 0.0
    %986 = vmatpush1.xpose.msra.mxu0 0.0
    %987 = vmatprep.subr.mxu0 0.0
    %988 = vmatpush1.xpose.msra.mxu0 0.0
    %989 = vmatprep.subr.mxu0 0.0
    %990 = vmatpush1.xpose.msra.mxu0 0.0
    %991 = vmatprep.subr.mxu0 0.0
    %992 = vmatpush1.xpose.msra.mxu0 0.0
    %993 = vmatprep.subr.mxu0 0.0
    %994 = vmatpush1.xpose.msra.mxu0 0.0
    %995 = vmatprep.subr.mxu0 0.0
    %996 = vmatpush1.xpose.msra.mxu0 0.0
    %997 = vmatprep.subr.mxu0 0.0
    %998 = vmatpush1.xpose.msra.mxu0 0.0
    %999 = vmatprep.subr.mxu0 0.0
    %1000 = vmatpush1.xpose.msra.mxu0 0.0
    %1001 = vmatprep.subr.mxu0 0.0
    %1002 = vmatpush1.xpose.msra.mxu0 0.0
    %1003 = vmatprep.subr.mxu0 0.0
    %1004 = vmatpush1.xpose.msra.mxu0 0.0
    %1005 = vmatprep.subr.mxu0 0.0
    %1006 = vmatpush1.xpose.msra.mxu0 0.0
    %1007 = vmatprep.subr.mxu0 0.0
    %1008 = vmatpush1.xpose.msra.mxu0 0.0
    %1009 = vmatprep.subr.mxu0 0.0
    %1010 = vmatpush1.xpose.msra.mxu0 0.0
    %1011 = vmatprep.subr.mxu0 0.0
    %1012 = vmatpush1.xpose.msra.mxu0 0.0
    %1013 = vmatprep.subr.mxu0 0.0
    %1014 = vmatpush1.xpose.msra.mxu0 0.0
    %1015 = vmatprep.subr.mxu0 0.0
    %1016 = vmatpush1.xpose.msra.mxu0 0.0
    %1017 = vmatprep.subr.mxu0 0.0
    %1018 = vmatpush1.xpose.msra.mxu0 0.0
    %1019 = vmatprep.subr.mxu0 0.0
    %1020 = vmatpush1.xpose.msra.mxu0 0.0
    %1021 = vmatprep.subr.mxu0 0.0
    %1022 = vmatpush1.xpose.msra.mxu0 0.0
    %1023 = vmatprep.subr.mxu0 0.0
    %1024 = vmatpush1.xpose.msra.mxu0 0.0
    %1025 = vmatprep.subr.mxu0 0.0
    %1026 = vmatpush1.xpose.msra.mxu0 0.0
    %1027 = vmatprep.subr.mxu0 0.0
    %1028 = vmatpush1.xpose.msra.mxu0 0.0
    %1029 = vmatprep.subr.mxu0 0.0
    %1030 = vmatpush1.xpose.msra.mxu0 0.0
    %1031 = vmatprep.mubr.f32.mxu0 0.0
    %1032 = vmatmul.mubr.f32.gmra.mrb[0].mxu0 %v959
    %v1033 = vpop.f32.mrb[0].mxu0
    %v1034 = vadd.f32 0.0, %v1033
    %v1035 = vpop.f32.mrb[0].mxu0
    %1036 = vmatprep.mubr.f32.mxu0 0.0
    %1037 = vmatmul.mubr.f32.gmra.mrb[0].mxu0 %v961
    %v1038 = vpop.f32.mrb[0].mxu0
    %v1039 = vadd.f32 0.0, %v1038
    %v1040 = vpop.f32.mrb[0].mxu0
    %1041 = vdwg.mxu0
    %v1042 = vsel %vm597, %v1034, -1e+30
    %v1043 = vsel %vm598, %v1039, -1e+30
    %v1044 = vsel %vm847, %v1042, -inf
    %1045 = vmax.xlane.f32.xlu0 %v1044
    %v1046 = vpop.xlane.xlu0 %1045
    %v1047 = vsel %vm847, %v1043, -inf
    %1048 = vmax.xlane.f32.xlu0 %v1047
    %v1049 = vpop.xlane.xlu0 %1048
    %v1050 = vsub.f32 %v1042, %v1046
    %v1051 = vsub.f32 %v1043, %v1049
    %v1052 = vmul.f32 %v1050, 1.442695
    %v1053 = vpow.pop %v1052
    %v1054 = vmul.f32 %v1051, 1.442695
    %v1055 = vpow.pop %v1054
    %v1056 = vsel %vm847, %v1053, 0.0
    %1057 = vadd.xlane.f32.xlu0 %v1056
    %v1058 = vpop.xlane.xlu0 %1057
    %v1059 = vsel %vm847, %v1055, 0.0
    %1060 = vadd.xlane.f32.xlu0 %v1059
    %v1061 = vpop.xlane.xlu0 %1060
    %v1062 = vrcp.pop %v1058
    %v1063 = vrcp.pop %v1061
    %v1064 = vmul.f32 %v1053, %v1062
    %v1065 = vmul.f32 %v1055, %v1063
    %1068 = vrot.lane.b32.xlu0 %v749, 96
    %v1069 = vpop.permute.xlu0 %1068
    %1070 = vrot.lane.b32.xlu0 %v753, 96
    %v1071 = vpop.permute.xlu0 %1070
    %v1075 = vsel %vm847, %v1064, 0
    %v1078 = vsel %vm847, %v1065, 0
    %1080 = vmatprep.subr.mxu0 0.0
    %1081 = vmatpush1.msra.mxu0 %v1069
    %1082 = vmatprep.subr.mxu0 0.0
    %1083 = vmatpush1.msra.mxu0 %v1071
    %1084 = vmatprep.subr.mxu0 0.0
    %1085 = vmatpush1.msra.mxu0 0.0
    %1086 = vmatprep.subr.mxu0 0.0
    %1087 = vmatpush1.msra.mxu0 0.0
    %1088 = vmatprep.subr.mxu0 0.0
    %1089 = vmatpush1.msra.mxu0 0.0
    %1090 = vmatprep.subr.mxu0 0.0
    %1091 = vmatpush1.msra.mxu0 0.0
    %1092 = vmatprep.subr.mxu0 0.0
    %1093 = vmatpush1.msra.mxu0 0.0
    %1094 = vmatprep.subr.mxu0 0.0
    %1095 = vmatpush1.msra.mxu0 0.0
    %1096 = vmatprep.subr.mxu0 0.0
    %1097 = vmatpush1.msra.mxu0 0.0
    %1098 = vmatprep.subr.mxu0 0.0
    %1099 = vmatpush1.msra.mxu0 0.0
    %1100 = vmatprep.subr.mxu0 0.0
    %1101 = vmatpush1.msra.mxu0 0.0
    %1102 = vmatprep.subr.mxu0 0.0
    %1103 = vmatpush1.msra.mxu0 0.0
    %1104 = vmatprep.subr.mxu0 0.0
    %1105 = vmatpush1.msra.mxu0 0.0
    %1106 = vmatprep.subr.mxu0 0.0
    %1107 = vmatpush1.msra.mxu0 0.0
    %1108 = vmatprep.subr.mxu0 0.0
    %1109 = vmatpush1.msra.mxu0 0.0
    %1110 = vmatprep.subr.mxu0 0.0
    %1111 = vmatpush1.msra.mxu0 0.0
    %1112 = vmatprep.subr.mxu0 0.0
    %1113 = vmatpush1.msra.mxu0 0.0
    %1114 = vmatprep.subr.mxu0 0.0
    %1115 = vmatpush1.msra.mxu0 0.0
    %1116 = vmatprep.subr.mxu0 0.0
    %1117 = vmatpush1.msra.mxu0 0.0
    %1118 = vmatprep.subr.mxu0 0.0
    %1119 = vmatpush1.msra.mxu0 0.0
    %1120 = vmatprep.subr.mxu0 0.0
    %1121 = vmatpush1.msra.mxu0 0.0
    %1122 = vmatprep.subr.mxu0 0.0
    %1123 = vmatpush1.msra.mxu0 0.0
    %1124 = vmatprep.subr.mxu0 0.0
    %1125 = vmatpush1.msra.mxu0 0.0
    %1126 = vmatprep.subr.mxu0 0.0
    %1127 = vmatpush1.msra.mxu0 0.0
    %1128 = vmatprep.subr.mxu0 0.0
    %1129 = vmatpush1.msra.mxu0 0.0
    %1130 = vmatprep.subr.mxu0 0.0
    %1131 = vmatpush1.msra.mxu0 0.0
    %1132 = vmatprep.subr.mxu0 0.0
    %1133 = vmatpush1.msra.mxu0 0.0
    %1134 = vmatprep.subr.mxu0 0.0
    %1135 = vmatpush1.msra.mxu0 0.0
    %1136 = vmatprep.subr.mxu0 0.0
    %1137 = vmatpush1.msra.mxu0 0.0
    %1138 = vmatprep.subr.mxu0 0.0
    %1139 = vmatpush1.msra.mxu0 0.0
    %1140 = vmatprep.subr.mxu0 0.0
    %1141 = vmatpush1.msra.mxu0 0.0
    %1142 = vmatprep.subr.mxu0 0.0
    %1143 = vmatpush1.msra.mxu0 0.0
    %1144 = vmatprep.mubr.f32.mxu0 0.0
    %1145 = vmatmul.mubr.f32.gmra.mrb[0].mxu0 %v1075
    %v1146 = vpop.f32.mrb[0].mxu0
    %v1147 = vadd.f32 0.0, %v1146
    %v1148 = vpop.f32.mrb[0].mxu0
    %1149 = vmatprep.mubr.f32.mxu0 0.0
    %1150 = vmatmul.mubr.f32.gmra.mrb[0].mxu0 %v1078
    %v1151 = vpop.f32.mrb[0].mxu0
    %v1152 = vadd.f32 0.0, %v1151
    %v1153 = vpop.f32.mrb[0].mxu0
    %1154 = vdwg.mxu0
    %1157 = vrot.lane.b32.xlu0 %v1147, 32
    %v1158 = vpop.permute.xlu0 %1157
    %1159 = vrot.lane.b32.xlu0 %v1152, 32
    %v1160 = vpop.permute.xlu0 %1159
    %v1163 = vsel %vm761, %v943, %v1158
    %v1164 = vsel %vm761, %v948, %v1160
    %v1165 = vpack.c.bf16 %v1164, %v1163
    %v1166 = vld [vmem:[%s4] sm:$0xf]
    %v1167 = vld [vmem:[%s4 + $0x4] sm:$0xf]
    %v1168 = vld [vmem:[%s4 + $0x8] sm:$0xf]
    %v1169 = vld [vmem:[%s4 + $0xc] sm:$0xf]
    %v1170 = vld [vmem:[%s4 + $0x10] sm:$0xf]
    %v1171 = vld [vmem:[%s4 + $0x14] sm:$0xf]
    %v1172 = vld [vmem:[%s4 + $0x18] sm:$0xf]
    %v1173 = vld [vmem:[%s4 + $0x1c] sm:$0xf]
    %v1174 = vlaneseq
    %v1175 = vshrl.u32 %v1174, 7
    %v1176 = vsub.s32 2, %v1175
    %v1177 = vrot.slane %v599, %v1176
    %v1186 = vunpack.c.l.b16 %v1166
    %v1187 = vunpack.c.l.b16 %v1167
    %v1188 = vunpack.c.l.b16 %v1168
    %v1189 = vunpack.c.l.b16 %v1169
    %v1190 = vunpack.c.l.b16 %v1170
    %v1191 = vunpack.c.l.b16 %v1171
    %v1192 = vunpack.c.l.b16 %v1172
    %v1193 = vunpack.c.l.b16 %v1173
    %v1194 = vpack.c.b16 %v1187, %v1186
    %v1195 = vpack.c.b16 %v1189, %v1188
    %v1196 = vpack.c.b16 %v1191, %v1190
    %v1197 = vpack.c.b16 %v1193, %v1192
    %v1203 = vsel %vm601, %v1165, 0
    %1205 = vmatprep.subr.bf16.mxu0 0
    %1206 = vmatpush1.bf16.msra.mxu0 %v1194
    %1207 = vmatprep.subr.bf16.mxu0 0
    %1208 = vmatpush1.bf16.msra.mxu0 %v1195
    %1209 = vmatprep.subr.bf16.mxu0 0
    %1210 = vmatpush1.bf16.msra.mxu0 %v1196
    %1211 = vmatprep.subr.bf16.mxu0 0
    %1212 = vmatpush1.bf16.msra.mxu0 %v1197
    %1213 = vmatprep.subr.bf16.mxu0 0
    %1214 = vmatpush1.bf16.msra.mxu0 0
    %1215 = vmatprep.subr.bf16.mxu0 0
    %1216 = vmatpush1.bf16.msra.mxu0 0
    %1217 = vmatprep.subr.bf16.mxu0 0
    %1218 = vmatpush1.bf16.msra.mxu0 0
    %1219 = vmatprep.subr.bf16.mxu0 0
    %1220 = vmatpush1.bf16.msra.mxu0 0
    %1221 = vmatprep.subr.bf16.mxu0 0
    %1222 = vmatpush1.bf16.msra.mxu0 0
    %1223 = vmatprep.subr.bf16.mxu0 0
    %1224 = vmatpush1.bf16.msra.mxu0 0
    %1225 = vmatprep.subr.bf16.mxu0 0
    %1226 = vmatpush1.bf16.msra.mxu0 0
    %1227 = vmatprep.subr.bf16.mxu0 0
    %1228 = vmatpush1.bf16.msra.mxu0 0
    %1229 = vmatprep.subr.bf16.mxu0 0
    %1230 = vmatpush1.bf16.msra.mxu0 0
    %1231 = vmatprep.subr.bf16.mxu0 0
    %1232 = vmatpush1.bf16.msra.mxu0 0
    %1233 = vmatprep.subr.bf16.mxu0 0
    %1234 = vmatpush1.bf16.msra.mxu0 0
    %1235 = vmatprep.subr.bf16.mxu0 0
    %1236 = vmatpush1.bf16.msra.mxu0 0
    %1237 = vmatprep.mubr.bf16.mxu0 0
    %1238 = vmatmul.mubr.bf16.gmra.mrb[0].mxu0 %v1203
    %v1239 = vpop.f32.mrb[0].mxu0
    %v1240 = vadd.f32 %v1177, %v1239
    %v1241 = vpop.f32.mrb[0].mxu0
    %v1242 = vpop.f32.mrb[0].mxu0
    %v1243 = vadd.f32 %v1177, %v1242
    %v1244 = vpop.f32.mrb[0].mxu0
    %1245 = vdwg.mxu0
    %v1246 = vlaneseq
    %v1247 = vshrl.u32 %v1246, 7
    %v1248 = vsub.s32 3, %v1247
    %v1249 = vrot.slane %v599, %v1248
    %v1250 = vmul.f32 %v1249, %v1240
    %v1251 = vmul.f32 %v1249, %v1243
    %v1252 = vadd.f32 %v579, %v1250
    %v1253 = vadd.f32 %v582, %v1251
    %v1254 = vsel %vm601, %v1252, 0.0
    %1255 = vadd.xlane.f32.xlu0 %v1254
    %v1256 = vpop.xlane.xlu0 %1255
    %v1257 = vsel %vm601, %v1253, 0.0
    %1258 = vadd.xlane.f32.xlu0 %v1257
    %v1259 = vpop.xlane.xlu0 %1258
    %v1260 = vmul.f32 %v1256, %v608
    %v1261 = vmul.f32 %v1259, %v608
    %v1262 = vsub.f32 %v1252, %v1260
    %v1263 = vsub.f32 %v1253, %v1261
    %v1264 = vmul.f32 %v1262, %v1262
    %v1265 = vmul.f32 %v1263, %v1263
    %v1266 = vsel %vm601, %v1264, 0.0
    %1267 = vadd.xlane.f32.xlu0 %v1266
    %v1268 = vpop.xlane.xlu0 %1267
    %v1269 = vsel %vm601, %v1265, 0.0
    %1270 = vadd.xlane.f32.xlu0 %v1269
    %v1271 = vpop.xlane.xlu0 %1270
    %v1272 = vmul.f32 %v1268, %v608
    %v1273 = vmul.f32 %v1271, %v608
    %v1274 = vadd.f32 %v1272, 1e-06
    %v1275 = vadd.f32 %v1273, 1e-06
    %v1276 = vrsqrt.pop %v1274
    %v1277 = vrsqrt.pop %v1275
    %v1278 = vmul.f32 %v1262, %v1276
    %v1279 = vmul.f32 %v1263, %v1277
    %v1280 = vlaneseq
    %v1281 = vshrl.u32 %v1280, 7
    %v1282 = vsub.s32 4, %v1281
    %v1283 = vrot.slane %v599, %v1282
    %v1284 = vmul.f32 %v1278, %v1283
    %v1285 = vmul.f32 %v1279, %v1283
    %v1286 = vlaneseq
    %v1287 = vshrl.u32 %v1286, 7
    %v1288 = vsub.s32 5, %v1287
    %v1289 = vrot.slane %v599, %v1288
    %v1290 = vadd.f32 %v1284, %v1289
    %v1291 = vadd.f32 %v1285, %v1289
    %v1292 = vpack.c.bf16 %v1291, %v1290
    %v1293 = vld [vmem:[%s5] sm:$0xff]
    %v1294 = vld [vmem:[%s5 + $0x8] sm:$0xff]
    %v1295 = vld [vmem:[%s5 + $0x10] sm:$0xff]
    %v1296 = vld [vmem:[%s5 + $0x18] sm:$0xff]
    %v1297 = vld [vmem:[%s5 + $0x20] sm:$0xff]
    %v1298 = vld [vmem:[%s5 + $0x28] sm:$0xff]
    %v1299 = vld [vmem:[%s5 + $0x30] sm:$0xff]
    %v1300 = vld [vmem:[%s5 + $0x38] sm:$0xff]
    %v1301 = vlaneseq
    %v1302 = vshrl.u32 %v1301, 7
    %v1303 = vsub.s32 1, %v1302
    %v1304 = vrot.slane %v600, %v1303
    %v1305 = vlaneseq
    %v1306 = vshrl.u32 %v1305, 7
    %v1307 = vsub.s32 3, %v1306
    %v1308 = vrot.slane %v600, %v1307
    %v1311 = vlaneseq
    %v1312 = vshrl.u32 %v1311, 7
    %v1313 = vsub.s32 1, %v1312
    %v1314 = vrot.slane %v1304, %v1313
    %v1315 = vlaneseq
    %v1316 = vshrl.u32 %v1315, 7
    %v1317 = vsub.s32 1, %v1316
    %v1318 = vrot.slane %v1308, %v1317
    %v1327 = vunpack.c.l.b16 %v1293
    %v1328 = vunpack.c.h.b16 %v1293
    %v1329 = vunpack.c.l.b16 %v1294
    %v1330 = vunpack.c.h.b16 %v1294
    %v1331 = vunpack.c.l.b16 %v1295
    %v1332 = vunpack.c.h.b16 %v1295
    %v1333 = vunpack.c.l.b16 %v1296
    %v1334 = vunpack.c.h.b16 %v1296
    %v1335 = vunpack.c.l.b16 %v1297
    %v1336 = vunpack.c.h.b16 %v1297
    %v1337 = vunpack.c.l.b16 %v1298
    %v1338 = vunpack.c.h.b16 %v1298
    %v1339 = vunpack.c.l.b16 %v1299
    %v1340 = vunpack.c.h.b16 %v1299
    %v1341 = vunpack.c.l.b16 %v1300
    %v1342 = vunpack.c.h.b16 %v1300
    %v1343 = vpack.c.b16 %v1329, %v1327
    %v1344 = vpack.c.b16 %v1330, %v1328
    %v1345 = vpack.c.b16 %v1333, %v1331
    %v1346 = vpack.c.b16 %v1334, %v1332
    %v1347 = vpack.c.b16 %v1337, %v1335
    %v1348 = vpack.c.b16 %v1338, %v1336
    %v1349 = vpack.c.b16 %v1341, %v1339
    %v1350 = vpack.c.b16 %v1342, %v1340
    %v1360 = vsel %vm601, %v1292, 0
    %1362 = vmatprep.subr.bf16.mxu0 %v1344
    %1363 = vmatpush1.bf16.msra.mxu0 %v1343
    %1364 = vmatprep.subr.bf16.mxu0 %v1346
    %1365 = vmatpush1.bf16.msra.mxu0 %v1345
    %1366 = vmatprep.subr.bf16.mxu0 %v1348
    %1367 = vmatpush1.bf16.msra.mxu0 %v1347
    %1368 = vmatprep.subr.bf16.mxu0 %v1350
    %1369 = vmatpush1.bf16.msra.mxu0 %v1349
    %1370 = vmatprep.subr.bf16.mxu0 0
    %1371 = vmatpush1.bf16.msra.mxu0 0
    %1372 = vmatprep.subr.bf16.mxu0 0
    %1373 = vmatpush1.bf16.msra.mxu0 0
    %1374 = vmatprep.subr.bf16.mxu0 0
    %1375 = vmatpush1.bf16.msra.mxu0 0
    %1376 = vmatprep.subr.bf16.mxu0 0
    %1377 = vmatpush1.bf16.msra.mxu0 0
    %1378 = vmatprep.subr.bf16.mxu0 0
    %1379 = vmatpush1.bf16.msra.mxu0 0
    %1380 = vmatprep.subr.bf16.mxu0 0
    %1381 = vmatpush1.bf16.msra.mxu0 0
    %1382 = vmatprep.subr.bf16.mxu0 0
    %1383 = vmatpush1.bf16.msra.mxu0 0
    %1384 = vmatprep.subr.bf16.mxu0 0
    %1385 = vmatpush1.bf16.msra.mxu0 0
    %1386 = vmatprep.subr.bf16.mxu0 0
    %1387 = vmatpush1.bf16.msra.mxu0 0
    %1388 = vmatprep.subr.bf16.mxu0 0
    %1389 = vmatpush1.bf16.msra.mxu0 0
    %1390 = vmatprep.subr.bf16.mxu0 0
    %1391 = vmatpush1.bf16.msra.mxu0 0
    %1392 = vmatprep.subr.bf16.mxu0 0
    %1393 = vmatpush1.bf16.msra.mxu0 0
    %1394 = vmatprep.mubr.bf16.mxu0 0
    %1395 = vmatmul.mubr.bf16.gmra.mrb[0].mxu0 %v1360
    %v1396 = vpop.f32.mrb[0].mxu0
    %v1397 = vadd.f32 %v1314, %v1396
    %v1398 = vpop.f32.mrb[0].mxu0
    %v1399 = vadd.f32 %v1318, %v1398
    %v1400 = vpop.f32.mrb[0].mxu0
    %v1401 = vadd.f32 %v1314, %v1400
    %v1402 = vpop.f32.mrb[0].mxu0
    %v1403 = vadd.f32 %v1318, %v1402
    %1404 = vdwg.mxu0
    %v1405 = vmul.f32 %v1397, 0.5
    %v1406 = vmul.f32 %v1399, 0.5
    %v1407 = vmul.f32 %v1401, 0.5
    %v1408 = vmul.f32 %v1403, 0.5
    %v1409 = vmul.f32 %v1397, 0.70710677
    %v1410 = vmul.f32 %v1399, 0.70710677
    %v1411 = vmul.f32 %v1401, 0.70710677
    %v1412 = vmul.f32 %v1403, 0.70710677
    %v1413 = verf.f32.pop %v1409
    %v1414 = verf.f32.pop %v1410
    %v1415 = verf.f32.pop %v1411
    %v1416 = verf.f32.pop %v1412
    %v1417 = vadd.f32 %v1413, 1.0
    %v1418 = vadd.f32 %v1414, 1.0
    %v1419 = vadd.f32 %v1415, 1.0
    %v1420 = vadd.f32 %v1416, 1.0
    %v1421 = vmul.f32 %v1405, %v1417
    %v1422 = vmul.f32 %v1406, %v1418
    %v1423 = vmul.f32 %v1407, %v1419
    %v1424 = vmul.f32 %v1408, %v1420
    %v1425 = vpack.c.bf16 %v1423, %v1421
    %v1426 = vpack.c.bf16 %v1424, %v1422
    %v1427 = vld [vmem:[%s6] sm:$0xf]
    %v1428 = vld [vmem:[%s6 + $0x4] sm:$0xf]
    %v1429 = vld [vmem:[%s6 + $0x8] sm:$0xf]
    %v1430 = vld [vmem:[%s6 + $0xc] sm:$0xf]
    %v1431 = vld [vmem:[%s6 + $0x10] sm:$0xf]
    %v1432 = vld [vmem:[%s6 + $0x14] sm:$0xf]
    %v1433 = vld [vmem:[%s6 + $0x18] sm:$0xf]
    %v1434 = vld [vmem:[%s6 + $0x1c] sm:$0xf]
    %v1435 = vld [vmem:[%s6 + $0x20] sm:$0xf]
    %v1436 = vld [vmem:[%s6 + $0x24] sm:$0xf]
    %v1437 = vld [vmem:[%s6 + $0x28] sm:$0xf]
    %v1438 = vld [vmem:[%s6 + $0x2c] sm:$0xf]
    %v1439 = vld [vmem:[%s6 + $0x30] sm:$0xf]
    %v1440 = vld [vmem:[%s6 + $0x34] sm:$0xf]
    %v1441 = vld [vmem:[%s6 + $0x38] sm:$0xf]
    %v1442 = vld [vmem:[%s6 + $0x3c] sm:$0xf]
    %v1443 = vld [vmem:[%s6 + $0x40] sm:$0xf]
    %v1444 = vld [vmem:[%s6 + $0x44] sm:$0xf]
    %v1445 = vld [vmem:[%s6 + $0x48] sm:$0xf]
    %v1446 = vld [vmem:[%s6 + $0x4c] sm:$0xf]
    %v1447 = vld [vmem:[%s6 + $0x50] sm:$0xf]
    %v1448 = vld [vmem:[%s6 + $0x54] sm:$0xf]
    %v1449 = vld [vmem:[%s6 + $0x58] sm:$0xf]
    %v1450 = vld [vmem:[%s6 + $0x5c] sm:$0xf]
    %v1451 = vld [vmem:[%s6 + $0x60] sm:$0xf]
    %v1452 = vld [vmem:[%s6 + $0x64] sm:$0xf]
    %v1453 = vld [vmem:[%s6 + $0x68] sm:$0xf]
    %v1454 = vld [vmem:[%s6 + $0x6c] sm:$0xf]
    %v1455 = vld [vmem:[%s6 + $0x70] sm:$0xf]
    %v1456 = vld [vmem:[%s6 + $0x74] sm:$0xf]
    %v1457 = vld [vmem:[%s6 + $0x78] sm:$0xf]
    %v1458 = vld [vmem:[%s6 + $0x7c] sm:$0xf]
    %v1459 = vlaneseq
    %v1460 = vshrl.u32 %v1459, 7
    %v1461 = vsub.s32 6, %v1460
    %v1462 = vrot.slane %v599, %v1461
    %v1495 = vunpack.c.l.b16 %v1427
    %v1496 = vunpack.c.l.b16 %v1428
    %v1497 = vunpack.c.l.b16 %v1429
    %v1498 = vunpack.c.l.b16 %v1430
    %v1499 = vunpack.c.l.b16 %v1431
    %v1500 = vunpack.c.l.b16 %v1432
    %v1501 = vunpack.c.l.b16 %v1433
    %v1502 = vunpack.c.l.b16 %v1434
    %v1503 = vunpack.c.l.b16 %v1435
    %v1504 = vunpack.c.l.b16 %v1436
    %v1505 = vunpack.c.l.b16 %v1437
    %v1506 = vunpack.c.l.b16 %v1438
    %v1507 = vunpack.c.l.b16 %v1439
    %v1508 = vunpack.c.l.b16 %v1440
    %v1509 = vunpack.c.l.b16 %v1441
    %v1510 = vunpack.c.l.b16 %v1442
    %v1511 = vunpack.c.l.b16 %v1443
    %v1512 = vunpack.c.l.b16 %v1444
    %v1513 = vunpack.c.l.b16 %v1445
    %v1514 = vunpack.c.l.b16 %v1446
    %v1515 = vunpack.c.l.b16 %v1447
    %v1516 = vunpack.c.l.b16 %v1448
    %v1517 = vunpack.c.l.b16 %v1449
    %v1518 = vunpack.c.l.b16 %v1450
    %v1519 = vunpack.c.l.b16 %v1451
    %v1520 = vunpack.c.l.b16 %v1452
    %v1521 = vunpack.c.l.b16 %v1453
    %v1522 = vunpack.c.l.b16 %v1454
    %v1523 = vunpack.c.l.b16 %v1455
    %v1524 = vunpack.c.l.b16 %v1456
    %v1525 = vunpack.c.l.b16 %v1457
    %v1526 = vunpack.c.l.b16 %v1458
    %v1527 = vpack.c.b16 %v1496, %v1495
    %v1528 = vpack.c.b16 %v1498, %v1497
    %v1529 = vpack.c.b16 %v1500, %v1499
    %v1530 = vpack.c.b16 %v1502, %v1501
    %v1531 = vpack.c.b16 %v1504, %v1503
    %v1532 = vpack.c.b16 %v1506, %v1505
    %v1533 = vpack.c.b16 %v1508, %v1507
    %v1534 = vpack.c.b16 %v1510, %v1509
    %v1535 = vpack.c.b16 %v1512, %v1511
    %v1536 = vpack.c.b16 %v1514, %v1513
    %v1537 = vpack.c.b16 %v1516, %v1515
    %v1538 = vpack.c.b16 %v1518, %v1517
    %v1539 = vpack.c.b16 %v1520, %v1519
    %v1540 = vpack.c.b16 %v1522, %v1521
    %v1541 = vpack.c.b16 %v1524, %v1523
    %v1542 = vpack.c.b16 %v1526, %v1525
    %1559 = vmatprep.subr.bf16.mxu0 0
    %1560 = vmatpush1.bf16.msra.mxu0 %v1527
    %1561 = vmatprep.subr.bf16.mxu0 0
    %1562 = vmatpush1.bf16.msra.mxu0 %v1528
    %1563 = vmatprep.subr.bf16.mxu0 0
    %1564 = vmatpush1.bf16.msra.mxu0 %v1529
    %1565 = vmatprep.subr.bf16.mxu0 0
    %1566 = vmatpush1.bf16.msra.mxu0 %v1530
    %1567 = vmatprep.subr.bf16.mxu0 0
    %1568 = vmatpush1.bf16.msra.mxu0 %v1531
    %1569 = vmatprep.subr.bf16.mxu0 0
    %1570 = vmatpush1.bf16.msra.mxu0 %v1532
    %1571 = vmatprep.subr.bf16.mxu0 0
    %1572 = vmatpush1.bf16.msra.mxu0 %v1533
    %1573 = vmatprep.subr.bf16.mxu0 0
    %1574 = vmatpush1.bf16.msra.mxu0 %v1534
    %1575 = vmatprep.subr.bf16.mxu0 0
    %1576 = vmatpush1.bf16.msra.mxu0 %v1535
    %1577 = vmatprep.subr.bf16.mxu0 0
    %1578 = vmatpush1.bf16.msra.mxu0 %v1536
    %1579 = vmatprep.subr.bf16.mxu0 0
    %1580 = vmatpush1.bf16.msra.mxu0 %v1537
    %1581 = vmatprep.subr.bf16.mxu0 0
    %1582 = vmatpush1.bf16.msra.mxu0 %v1538
    %1583 = vmatprep.subr.bf16.mxu0 0
    %1584 = vmatpush1.bf16.msra.mxu0 %v1539
    %1585 = vmatprep.subr.bf16.mxu0 0
    %1586 = vmatpush1.bf16.msra.mxu0 %v1540
    %1587 = vmatprep.subr.bf16.mxu0 0
    %1588 = vmatpush1.bf16.msra.mxu0 %v1541
    %1589 = vmatprep.subr.bf16.mxu0 0
    %1590 = vmatpush1.bf16.msra.mxu0 %v1542
    %1591 = vmatprep.mubr.bf16.mxu0 %v1426
    %1592 = vmatmul.mubr.bf16.gmra.mrb[0].mxu0 %v1425
    %v1593 = vpop.f32.mrb[0].mxu0
    %v1594 = vadd.f32 %v1462, %v1593
    %v1595 = vpop.f32.mrb[0].mxu0
    %v1596 = vpop.f32.mrb[0].mxu0
    %v1597 = vadd.f32 %v1462, %v1596
    %v1598 = vpop.f32.mrb[0].mxu0
    %1599 = vdwg.mxu0
    %v1600 = vlaneseq
    %v1601 = vshrl.u32 %v1600, 7
    %v1602 = vsub.s32 7, %v1601
    %v1603 = vrot.slane %v599, %v1602
    %v1604 = vmul.f32 %v1603, %v1594
    %v1605 = vmul.f32 %v1603, %v1597
    %v1606 = vadd.f32 %v1252, %v1604
    %v1607 = vadd.f32 %v1253, %v1605
    %s1608 = scalar_lea.vmem %s7, 8
    %v1609 = vld [vmem:[%s1608] sm:$0xff]
    %s1610 = scalar_lea.vmem %s8, 4
    %v1611 = vld [vmem:[%s1610] sm:$0xf]
    %v1612 = vsel %vm601, %v1606, 0.0
    %1613 = vadd.xlane.f32.xlu0 %v1612
    %v1614 = vpop.xlane.xlu0 %1613
    %v1615 = vsel %vm601, %v1607, 0.0
    %1616 = vadd.xlane.f32.xlu0 %v1615
    %v1617 = vpop.xlane.xlu0 %1616
    %v1618 = vmul.f32 %v1614, %v608
    %v1619 = vmul.f32 %v1617, %v608
    %v1620 = vsub.f32 %v1606, %v1618
    %v1621 = vsub.f32 %v1607, %v1619
    %v1622 = vmul.f32 %v1620, %v1620
    %v1623 = vmul.f32 %v1621, %v1621
    %v1624 = vsel %vm601, %v1622, 0.0
    %1625 = vadd.xlane.f32.xlu0 %v1624
    %v1626 = vpop.xlane.xlu0 %1625
    %v1627 = vsel %vm601, %v1623, 0.0
    %1628 = vadd.xlane.f32.xlu0 %v1627
    %v1629 = vpop.xlane.xlu0 %1628
    %v1630 = vmul.f32 %v1626, %v608
    %v1631 = vmul.f32 %v1629, %v608
    %v1632 = vadd.f32 %v1630, 1e-06
    %v1633 = vadd.f32 %v1631, 1e-06
    %v1634 = vrsqrt.pop %v1632
    %v1635 = vrsqrt.pop %v1633
    %v1636 = vmul.f32 %v1620, %v1634
    %v1637 = vmul.f32 %v1621, %v1635
    %v1638 = vlaneseq
    %v1639 = vshrl.u32 %v1638, 7
    %v1640 = vsub.s32 0, %v1639
    %v1641 = vrot.slane %v1609, %v1640
    %v1642 = vmul.f32 %v1636, %v1641
    %v1643 = vmul.f32 %v1637, %v1641
    %v1644 = vlaneseq
    %v1645 = vshrl.u32 %v1644, 7
    %v1646 = vsub.s32 1, %v1645
    %v1647 = vrot.slane %v1609, %v1646
    %v1648 = vadd.f32 %v1642, %v1647
    %v1649 = vadd.f32 %v1643, %v1647
    %v1650 = vpack.c.bf16 %v1649, %v1648
    %s1651 = scalar_lea.vmem %s3, 64
    %v1652 = vld [vmem:[%s1651] sm:$0xff]
    %v1653 = vld [vmem:[%s1651 + $0x8] sm:$0xff]
    %v1654 = vld [vmem:[%s1651 + $0x10] sm:$0xff]
    %v1655 = vld [vmem:[%s1651 + $0x18] sm:$0xff]
    %v1656 = vld [vmem:[%s1651 + $0x20] sm:$0xff]
    %v1657 = vld [vmem:[%s1651 + $0x28] sm:$0xff]
    %v1658 = vld [vmem:[%s1651 + $0x30] sm:$0xff]
    %v1659 = vld [vmem:[%s1651 + $0x38] sm:$0xff]
    %v1661 = vlaneseq
    %v1662 = vshrl.u32 %v1661, 7
    %v1663 = vsub.s32 0, %v1662
    %v1664 = vrot.slane %v1611, %v1663
    %v1665 = vlaneseq
    %v1666 = vshrl.u32 %v1665, 7
    %v1667 = vsub.s32 2, %v1666
    %v1668 = vrot.slane %v1611, %v1667
    %v1671 = vlaneseq
    %v1672 = vshrl.u32 %v1671, 7
    %v1673 = vsub.s32 0, %v1672
    %v1674 = vrot.slane %v1664, %v1673
    %v1675 = vlaneseq
    %v1676 = vshrl.u32 %v1675, 7
    %v1677 = vsub.s32 0, %v1676
    %v1678 = vrot.slane %v1668, %v1677
    %v1687 = vunpack.c.l.b16 %v1652
    %v1688 = vunpack.c.h.b16 %v1652
    %v1689 = vunpack.c.l.b16 %v1653
    %v1690 = vunpack.c.h.b16 %v1653
    %v1691 = vunpack.c.l.b16 %v1654
    %v1692 = vunpack.c.h.b16 %v1654
    %v1693 = vunpack.c.l.b16 %v1655
    %v1694 = vunpack.c.h.b16 %v1655
    %v1695 = vunpack.c.l.b16 %v1656
    %v1696 = vunpack.c.h.b16 %v1656
    %v1697 = vunpack.c.l.b16 %v1657
    %v1698 = vunpack.c.h.b16 %v1657
    %v1699 = vunpack.c.l.b16 %v1658
    %v1700 = vunpack.c.h.b16 %v1658
    %v1701 = vunpack.c.l.b16 %v1659
    %v1702 = vunpack.c.h.b16 %v1659
    %v1703 = vpack.c.b16 %v1689, %v1687
    %v1704 = vpack.c.b16 %v1690, %v1688
    %v1705 = vpack.c.b16 %v1693, %v1691
    %v1706 = vpack.c.b16 %v1694, %v1692
    %v1707 = vpack.c.b16 %v1697, %v1695
    %v1708 = vpack.c.b16 %v1698, %v1696
    %v1709 = vpack.c.b16 %v1701, %v1699
    %v1710 = vpack.c.b16 %v1702, %v1700
    %v1720 = vsel %vm601, %v1650, 0
    %1722 = vmatprep.subr.bf16.mxu0 %v1704
    %1723 = vmatpush1.bf16.msra.mxu0 %v1703
    %1724 = vmatprep.subr.bf16.mxu0 %v1706
    %1725 = vmatpush1.bf16.msra.mxu0 %v1705
    %1726 = vmatprep.subr.bf16.mxu0 %v1708
    %1727 = vmatpush1.bf16.msra.mxu0 %v1707
    %1728 = vmatprep.subr.bf16.mxu0 %v1710
    %1729 = vmatpush1.bf16.msra.mxu0 %v1709
    %1730 = vmatprep.subr.bf16.mxu0 0
    %1731 = vmatpush1.bf16.msra.mxu0 0
    %1732 = vmatprep.subr.bf16.mxu0 0
    %1733 = vmatpush1.bf16.msra.mxu0 0
    %1734 = vmatprep.subr.bf16.mxu0 0
    %1735 = vmatpush1.bf16.msra.mxu0 0
    %1736 = vmatprep.subr.bf16.mxu0 0
    %1737 = vmatpush1.bf16.msra.mxu0 0
    %1738 = vmatprep.subr.bf16.mxu0 0
    %1739 = vmatpush1.bf16.msra.mxu0 0
    %1740 = vmatprep.subr.bf16.mxu0 0
    %1741 = vmatpush1.bf16.msra.mxu0 0
    %1742 = vmatprep.subr.bf16.mxu0 0
    %1743 = vmatpush1.bf16.msra.mxu0 0
    %1744 = vmatprep.subr.bf16.mxu0 0
    %1745 = vmatpush1.bf16.msra.mxu0 0
    %1746 = vmatprep.subr.bf16.mxu0 0
    %1747 = vmatpush1.bf16.msra.mxu0 0
    %1748 = vmatprep.subr.bf16.mxu0 0
    %1749 = vmatpush1.bf16.msra.mxu0 0
    %1750 = vmatprep.subr.bf16.mxu0 0
    %1751 = vmatpush1.bf16.msra.mxu0 0
    %1752 = vmatprep.subr.bf16.mxu0 0
    %1753 = vmatpush1.bf16.msra.mxu0 0
    %1754 = vmatprep.mubr.bf16.mxu0 0
    %1755 = vmatmul.mubr.bf16.gmra.mrb[0].mxu0 %v1720
    %v1756 = vpop.f32.mrb[0].mxu0
    %v1757 = vadd.f32 %v1674, %v1756
    %v1758 = vpop.f32.mrb[0].mxu0
    %v1759 = vadd.f32 %v1678, %v1758
    %v1760 = vpop.f32.mrb[0].mxu0
    %v1761 = vadd.f32 %v1674, %v1760
    %v1762 = vpop.f32.mrb[0].mxu0
    %v1763 = vadd.f32 %v1678, %v1762
    %1764 = vdwg.mxu0
    %1767 = vrot.lane.b32.xlu0 %v1757, 64
    %v1768 = vpop.permute.xlu0 %1767
    %1769 = vrot.lane.b32.xlu0 %v1761, 64
    %v1770 = vpop.permute.xlu0 %1769
    %v1771 = vsel %vm761, %v1757, 0
    %v1773 = vsel %vm761, %v1761, 0
    %v1775 = vsel %vm761, %v1768, 0
    %v1777 = vsel %vm761, %v1770, 0
    %1779 = vmatprep.subr.mxu0 0.0
    %1780 = vmatpush1.xpose.msra.mxu0 %v1775
    %1781 = vmatprep.subr.mxu0 0.0
    %1782 = vmatpush1.xpose.msra.mxu0 %v1777
    %1783 = vmatprep.subr.mxu0 0.0
    %1784 = vmatpush1.xpose.msra.mxu0 0.0
    %1785 = vmatprep.subr.mxu0 0.0
    %1786 = vmatpush1.xpose.msra.mxu0 0.0
    %1787 = vmatprep.subr.mxu0 0.0
    %1788 = vmatpush1.xpose.msra.mxu0 0.0
    %1789 = vmatprep.subr.mxu0 0.0
    %1790 = vmatpush1.xpose.msra.mxu0 0.0
    %1791 = vmatprep.subr.mxu0 0.0
    %1792 = vmatpush1.xpose.msra.mxu0 0.0
    %1793 = vmatprep.subr.mxu0 0.0
    %1794 = vmatpush1.xpose.msra.mxu0 0.0
    %1795 = vmatprep.subr.mxu0 0.0
    %1796 = vmatpush1.xpose.msra.mxu0 0.0
    %1797 = vmatprep.subr.mxu0 0.0
    %1798 = vmatpush1.xpose.msra.mxu0 0.0
    %1799 = vmatprep.subr.mxu0 0.0
    %1800 = vmatpush1.xpose.msra.mxu0 0.0
    %1801 = vmatprep.subr.mxu0 0.0
    %1802 = vmatpush1.xpose.msra.mxu0 0.0
    %1803 = vmatprep.subr.mxu0 0.0
    %1804 = vmatpush1.xpose.msra.mxu0 0.0
    %1805 = vmatprep.subr.mxu0 0.0
    %1806 = vmatpush1.xpose.msra.mxu0 0.0
    %1807 = vmatprep.subr.mxu0 0.0
    %1808 = vmatpush1.xpose.msra.mxu0 0.0
    %1809 = vmatprep.subr.mxu0 0.0
    %1810 = vmatpush1.xpose.msra.mxu0 0.0
    %1811 = vmatprep.subr.mxu0 0.0
    %1812 = vmatpush1.xpose.msra.mxu0 0.0
    %1813 = vmatprep.subr.mxu0 0.0
    %1814 = vmatpush1.xpose.msra.mxu0 0.0
    %1815 = vmatprep.subr.mxu0 0.0
    %1816 = vmatpush1.xpose.msra.mxu0 0.0
    %1817 = vmatprep.subr.mxu0 0.0
    %1818 = vmatpush1.xpose.msra.mxu0 0.0
    %1819 = vmatprep.subr.mxu0 0.0
    %1820 = vmatpush1.xpose.msra.mxu0 0.0
    %1821 = vmatprep.subr.mxu0 0.0
    %1822 = vmatpush1.xpose.msra.mxu0 0.0
    %1823 = vmatprep.subr.mxu0 0.0
    %1824 = vmatpush1.xpose.msra.mxu0 0.0
    %1825 = vmatprep.subr.mxu0 0.0
    %1826 = vmatpush1.xpose.msra.mxu0 0.0
    %1827 = vmatprep.subr.mxu0 0.0
    %1828 = vmatpush1.xpose.msra.mxu0 0.0
    %1829 = vmatprep.subr.mxu0 0.0
    %1830 = vmatpush1.xpose.msra.mxu0 0.0
    %1831 = vmatprep.subr.mxu0 0.0
    %1832 = vmatpush1.xpose.msra.mxu0 0.0
    %1833 = vmatprep.subr.mxu0 0.0
    %1834 = vmatpush1.xpose.msra.mxu0 0.0
    %1835 = vmatprep.subr.mxu0 0.0
    %1836 = vmatpush1.xpose.msra.mxu0 0.0
    %1837 = vmatprep.subr.mxu0 0.0
    %1838 = vmatpush1.xpose.msra.mxu0 0.0
    %1839 = vmatprep.subr.mxu0 0.0
    %1840 = vmatpush1.xpose.msra.mxu0 0.0
    %1841 = vmatprep.subr.mxu0 0.0
    %1842 = vmatpush1.xpose.msra.mxu0 0.0
    %1843 = vmatprep.mubr.f32.mxu0 0.0
    %1844 = vmatmul.mubr.f32.gmra.mrb[0].mxu0 %v1771
    %v1845 = vpop.f32.mrb[0].mxu0
    %v1846 = vadd.f32 0.0, %v1845
    %v1847 = vpop.f32.mrb[0].mxu0
    %1848 = vmatprep.mubr.f32.mxu0 0.0
    %1849 = vmatmul.mubr.f32.gmra.mrb[0].mxu0 %v1773
    %v1850 = vpop.f32.mrb[0].mxu0
    %v1851 = vadd.f32 0.0, %v1850
    %v1852 = vpop.f32.mrb[0].mxu0
    %1853 = vdwg.mxu0
    %v1854 = vsel %vm597, %v1846, -1e+30
    %v1855 = vsel %vm598, %v1851, -1e+30
    %v1856 = vsel %vm847, %v1854, -inf
    %1857 = vmax.xlane.f32.xlu0 %v1856
    %v1858 = vpop.xlane.xlu0 %1857
    %v1859 = vsel %vm847, %v1855, -inf
    %1860 = vmax.xlane.f32.xlu0 %v1859
    %v1861 = vpop.xlane.xlu0 %1860
    %v1862 = vsub.f32 %v1854, %v1858
    %v1863 = vsub.f32 %v1855, %v1861
    %v1864 = vmul.f32 %v1862, 1.442695
    %v1865 = vpow.pop %v1864
    %v1866 = vmul.f32 %v1863, 1.442695
    %v1867 = vpow.pop %v1866
    %v1868 = vsel %vm847, %v1865, 0.0
    %1869 = vadd.xlane.f32.xlu0 %v1868
    %v1870 = vpop.xlane.xlu0 %1869
    %v1871 = vsel %vm847, %v1867, 0.0
    %1872 = vadd.xlane.f32.xlu0 %v1871
    %v1873 = vpop.xlane.xlu0 %1872
    %v1874 = vrcp.pop %v1870
    %v1875 = vrcp.pop %v1873
    %v1876 = vmul.f32 %v1865, %v1874
    %v1877 = vmul.f32 %v1867, %v1875
    %v1879 = vsel %vm847, %v1876, 0
    %v1882 = vsel %vm847, %v1877, 0
    %1884 = vmatprep.subr.mxu0 0.0
    %1885 = vmatpush1.msra.mxu0 %v1759
    %1886 = vmatprep.subr.mxu0 0.0
    %1887 = vmatpush1.msra.mxu0 %v1763
    %1888 = vmatprep.subr.mxu0 0.0
    %1889 = vmatpush1.msra.mxu0 0.0
    %1890 = vmatprep.subr.mxu0 0.0
    %1891 = vmatpush1.msra.mxu0 0.0
    %1892 = vmatprep.subr.mxu0 0.0
    %1893 = vmatpush1.msra.mxu0 0.0
    %1894 = vmatprep.subr.mxu0 0.0
    %1895 = vmatpush1.msra.mxu0 0.0
    %1896 = vmatprep.subr.mxu0 0.0
    %1897 = vmatpush1.msra.mxu0 0.0
    %1898 = vmatprep.subr.mxu0 0.0
    %1899 = vmatpush1.msra.mxu0 0.0
    %1900 = vmatprep.subr.mxu0 0.0
    %1901 = vmatpush1.msra.mxu0 0.0
    %1902 = vmatprep.subr.mxu0 0.0
    %1903 = vmatpush1.msra.mxu0 0.0
    %1904 = vmatprep.subr.mxu0 0.0
    %1905 = vmatpush1.msra.mxu0 0.0
    %1906 = vmatprep.subr.mxu0 0.0
    %1907 = vmatpush1.msra.mxu0 0.0
    %1908 = vmatprep.subr.mxu0 0.0
    %1909 = vmatpush1.msra.mxu0 0.0
    %1910 = vmatprep.subr.mxu0 0.0
    %1911 = vmatpush1.msra.mxu0 0.0
    %1912 = vmatprep.subr.mxu0 0.0
    %1913 = vmatpush1.msra.mxu0 0.0
    %1914 = vmatprep.subr.mxu0 0.0
    %1915 = vmatpush1.msra.mxu0 0.0
    %1916 = vmatprep.subr.mxu0 0.0
    %1917 = vmatpush1.msra.mxu0 0.0
    %1918 = vmatprep.subr.mxu0 0.0
    %1919 = vmatpush1.msra.mxu0 0.0
    %1920 = vmatprep.subr.mxu0 0.0
    %1921 = vmatpush1.msra.mxu0 0.0
    %1922 = vmatprep.subr.mxu0 0.0
    %1923 = vmatpush1.msra.mxu0 0.0
    %1924 = vmatprep.subr.mxu0 0.0
    %1925 = vmatpush1.msra.mxu0 0.0
    %1926 = vmatprep.subr.mxu0 0.0
    %1927 = vmatpush1.msra.mxu0 0.0
    %1928 = vmatprep.subr.mxu0 0.0
    %1929 = vmatpush1.msra.mxu0 0.0
    %1930 = vmatprep.subr.mxu0 0.0
    %1931 = vmatpush1.msra.mxu0 0.0
    %1932 = vmatprep.subr.mxu0 0.0
    %1933 = vmatpush1.msra.mxu0 0.0
    %1934 = vmatprep.subr.mxu0 0.0
    %1935 = vmatpush1.msra.mxu0 0.0
    %1936 = vmatprep.subr.mxu0 0.0
    %1937 = vmatpush1.msra.mxu0 0.0
    %1938 = vmatprep.subr.mxu0 0.0
    %1939 = vmatpush1.msra.mxu0 0.0
    %1940 = vmatprep.subr.mxu0 0.0
    %1941 = vmatpush1.msra.mxu0 0.0
    %1942 = vmatprep.subr.mxu0 0.0
    %1943 = vmatpush1.msra.mxu0 0.0
    %1944 = vmatprep.subr.mxu0 0.0
    %1945 = vmatpush1.msra.mxu0 0.0
    %1946 = vmatprep.subr.mxu0 0.0
    %1947 = vmatpush1.msra.mxu0 0.0
    %1948 = vmatprep.mubr.f32.mxu0 0.0
    %1949 = vmatmul.mubr.f32.gmra.mrb[0].mxu0 %v1879
    %v1950 = vpop.f32.mrb[0].mxu0
    %v1951 = vadd.f32 0.0, %v1950
    %v1952 = vpop.f32.mrb[0].mxu0
    %1953 = vmatprep.mubr.f32.mxu0 0.0
    %1954 = vmatmul.mubr.f32.gmra.mrb[0].mxu0 %v1882
    %v1955 = vpop.f32.mrb[0].mxu0
    %v1956 = vadd.f32 0.0, %v1955
    %v1957 = vpop.f32.mrb[0].mxu0
    %1958 = vdwg.mxu0
    %1959 = vrot.lane.b32.xlu0 %v1757, 96
    %v1960 = vpop.permute.xlu0 %1959
    %1961 = vrot.lane.b32.xlu0 %v1761, 96
    %v1962 = vpop.permute.xlu0 %1961
    %1963 = vrot.lane.b32.xlu0 %v1757, 32
    %v1964 = vpop.permute.xlu0 %1963
    %1965 = vrot.lane.b32.xlu0 %v1761, 32
    %v1966 = vpop.permute.xlu0 %1965
    %v1967 = vsel %vm761, %v1960, 0
    %v1969 = vsel %vm761, %v1962, 0
    %v1971 = vsel %vm761, %v1964, 0
    %v1973 = vsel %vm761, %v1966, 0
    %1975 = vmatprep.subr.mxu0 0.0
    %1976 = vmatpush1.xpose.msra.mxu0 %v1971
    %1977 = vmatprep.subr.mxu0 0.0
    %1978 = vmatpush1.xpose.msra.mxu0 %v1973
    %1979 = vmatprep.subr.mxu0 0.0
    %1980 = vmatpush1.xpose.msra.mxu0 0.0
    %1981 = vmatprep.subr.mxu0 0.0
    %1982 = vmatpush1.xpose.msra.mxu0 0.0
    %1983 = vmatprep.subr.mxu0 0.0
    %1984 = vmatpush1.xpose.msra.mxu0 0.0
    %1985 = vmatprep.subr.mxu0 0.0
    %1986 = vmatpush1.xpose.msra.mxu0 0.0
    %1987 = vmatprep.subr.mxu0 0.0
    %1988 = vmatpush1.xpose.msra.mxu0 0.0
    %1989 = vmatprep.subr.mxu0 0.0
    %1990 = vmatpush1.xpose.msra.mxu0 0.0
    %1991 = vmatprep.subr.mxu0 0.0
    %1992 = vmatpush1.xpose.msra.mxu0 0.0
    %1993 = vmatprep.subr.mxu0 0.0
    %1994 = vmatpush1.xpose.msra.mxu0 0.0
    %1995 = vmatprep.subr.mxu0 0.0
    %1996 = vmatpush1.xpose.msra.mxu0 0.0
    %1997 = vmatprep.subr.mxu0 0.0
    %1998 = vmatpush1.xpose.msra.mxu0 0.0
    %1999 = vmatprep.subr.mxu0 0.0
    %2000 = vmatpush1.xpose.msra.mxu0 0.0
    %2001 = vmatprep.subr.mxu0 0.0
    %2002 = vmatpush1.xpose.msra.mxu0 0.0
    %2003 = vmatprep.subr.mxu0 0.0
    %2004 = vmatpush1.xpose.msra.mxu0 0.0
    %2005 = vmatprep.subr.mxu0 0.0
    %2006 = vmatpush1.xpose.msra.mxu0 0.0
    %2007 = vmatprep.subr.mxu0 0.0
    %2008 = vmatpush1.xpose.msra.mxu0 0.0
    %2009 = vmatprep.subr.mxu0 0.0
    %2010 = vmatpush1.xpose.msra.mxu0 0.0
    %2011 = vmatprep.subr.mxu0 0.0
    %2012 = vmatpush1.xpose.msra.mxu0 0.0
    %2013 = vmatprep.subr.mxu0 0.0
    %2014 = vmatpush1.xpose.msra.mxu0 0.0
    %2015 = vmatprep.subr.mxu0 0.0
    %2016 = vmatpush1.xpose.msra.mxu0 0.0
    %2017 = vmatprep.subr.mxu0 0.0
    %2018 = vmatpush1.xpose.msra.mxu0 0.0
    %2019 = vmatprep.subr.mxu0 0.0
    %2020 = vmatpush1.xpose.msra.mxu0 0.0
    %2021 = vmatprep.subr.mxu0 0.0
    %2022 = vmatpush1.xpose.msra.mxu0 0.0
    %2023 = vmatprep.subr.mxu0 0.0
    %2024 = vmatpush1.xpose.msra.mxu0 0.0
    %2025 = vmatprep.subr.mxu0 0.0
    %2026 = vmatpush1.xpose.msra.mxu0 0.0
    %2027 = vmatprep.subr.mxu0 0.0
    %2028 = vmatpush1.xpose.msra.mxu0 0.0
    %2029 = vmatprep.subr.mxu0 0.0
    %2030 = vmatpush1.xpose.msra.mxu0 0.0
    %2031 = vmatprep.subr.mxu0 0.0
    %2032 = vmatpush1.xpose.msra.mxu0 0.0
    %2033 = vmatprep.subr.mxu0 0.0
    %2034 = vmatpush1.xpose.msra.mxu0 0.0
    %2035 = vmatprep.subr.mxu0 0.0
    %2036 = vmatpush1.xpose.msra.mxu0 0.0
    %2037 = vmatprep.subr.mxu0 0.0
    %2038 = vmatpush1.xpose.msra.mxu0 0.0
    %2039 = vmatprep.mubr.f32.mxu0 0.0
    %2040 = vmatmul.mubr.f32.gmra.mrb[0].mxu0 %v1967
    %v2041 = vpop.f32.mrb[0].mxu0
    %v2042 = vadd.f32 0.0, %v2041
    %v2043 = vpop.f32.mrb[0].mxu0
    %2044 = vmatprep.mubr.f32.mxu0 0.0
    %2045 = vmatmul.mubr.f32.gmra.mrb[0].mxu0 %v1969
    %v2046 = vpop.f32.mrb[0].mxu0
    %v2047 = vadd.f32 0.0, %v2046
    %v2048 = vpop.f32.mrb[0].mxu0
    %2049 = vdwg.mxu0
    %v2050 = vsel %vm597, %v2042, -1e+30
    %v2051 = vsel %vm598, %v2047, -1e+30
    %v2052 = vsel %vm847, %v2050, -inf
    %2053 = vmax.xlane.f32.xlu0 %v2052
    %v2054 = vpop.xlane.xlu0 %2053
    %v2055 = vsel %vm847, %v2051, -inf
    %2056 = vmax.xlane.f32.xlu0 %v2055
    %v2057 = vpop.xlane.xlu0 %2056
    %v2058 = vsub.f32 %v2050, %v2054
    %v2059 = vsub.f32 %v2051, %v2057
    %v2060 = vmul.f32 %v2058, 1.442695
    %v2061 = vpow.pop %v2060
    %v2062 = vmul.f32 %v2059, 1.442695
    %v2063 = vpow.pop %v2062
    %v2064 = vsel %vm847, %v2061, 0.0
    %2065 = vadd.xlane.f32.xlu0 %v2064
    %v2066 = vpop.xlane.xlu0 %2065
    %v2067 = vsel %vm847, %v2063, 0.0
    %2068 = vadd.xlane.f32.xlu0 %v2067
    %v2069 = vpop.xlane.xlu0 %2068
    %v2070 = vrcp.pop %v2066
    %v2071 = vrcp.pop %v2069
    %v2072 = vmul.f32 %v2061, %v2070
    %v2073 = vmul.f32 %v2063, %v2071
    %2076 = vrot.lane.b32.xlu0 %v1759, 96
    %v2077 = vpop.permute.xlu0 %2076
    %2078 = vrot.lane.b32.xlu0 %v1763, 96
    %v2079 = vpop.permute.xlu0 %2078
    %v2083 = vsel %vm847, %v2072, 0
    %v2086 = vsel %vm847, %v2073, 0
    %2088 = vmatprep.subr.mxu0 0.0
    %2089 = vmatpush1.msra.mxu0 %v2077
    %2090 = vmatprep.subr.mxu0 0.0
    %2091 = vmatpush1.msra.mxu0 %v2079
    %2092 = vmatprep.subr.mxu0 0.0
    %2093 = vmatpush1.msra.mxu0 0.0
    %2094 = vmatprep.subr.mxu0 0.0
    %2095 = vmatpush1.msra.mxu0 0.0
    %2096 = vmatprep.subr.mxu0 0.0
    %2097 = vmatpush1.msra.mxu0 0.0
    %2098 = vmatprep.subr.mxu0 0.0
    %2099 = vmatpush1.msra.mxu0 0.0
    %2100 = vmatprep.subr.mxu0 0.0
    %2101 = vmatpush1.msra.mxu0 0.0
    %2102 = vmatprep.subr.mxu0 0.0
    %2103 = vmatpush1.msra.mxu0 0.0
    %2104 = vmatprep.subr.mxu0 0.0
    %2105 = vmatpush1.msra.mxu0 0.0
    %2106 = vmatprep.subr.mxu0 0.0
    %2107 = vmatpush1.msra.mxu0 0.0
    %2108 = vmatprep.subr.mxu0 0.0
    %2109 = vmatpush1.msra.mxu0 0.0
    %2110 = vmatprep.subr.mxu0 0.0
    %2111 = vmatpush1.msra.mxu0 0.0
    %2112 = vmatprep.subr.mxu0 0.0
    %2113 = vmatpush1.msra.mxu0 0.0
    %2114 = vmatprep.subr.mxu0 0.0
    %2115 = vmatpush1.msra.mxu0 0.0
    %2116 = vmatprep.subr.mxu0 0.0
    %2117 = vmatpush1.msra.mxu0 0.0
    %2118 = vmatprep.subr.mxu0 0.0
    %2119 = vmatpush1.msra.mxu0 0.0
    %2120 = vmatprep.subr.mxu0 0.0
    %2121 = vmatpush1.msra.mxu0 0.0
    %2122 = vmatprep.subr.mxu0 0.0
    %2123 = vmatpush1.msra.mxu0 0.0
    %2124 = vmatprep.subr.mxu0 0.0
    %2125 = vmatpush1.msra.mxu0 0.0
    %2126 = vmatprep.subr.mxu0 0.0
    %2127 = vmatpush1.msra.mxu0 0.0
    %2128 = vmatprep.subr.mxu0 0.0
    %2129 = vmatpush1.msra.mxu0 0.0
    %2130 = vmatprep.subr.mxu0 0.0
    %2131 = vmatpush1.msra.mxu0 0.0
    %2132 = vmatprep.subr.mxu0 0.0
    %2133 = vmatpush1.msra.mxu0 0.0
    %2134 = vmatprep.subr.mxu0 0.0
    %2135 = vmatpush1.msra.mxu0 0.0
    %2136 = vmatprep.subr.mxu0 0.0
    %2137 = vmatpush1.msra.mxu0 0.0
    %2138 = vmatprep.subr.mxu0 0.0
    %2139 = vmatpush1.msra.mxu0 0.0
    %2140 = vmatprep.subr.mxu0 0.0
    %2141 = vmatpush1.msra.mxu0 0.0
    %2142 = vmatprep.subr.mxu0 0.0
    %2143 = vmatpush1.msra.mxu0 0.0
    %2144 = vmatprep.subr.mxu0 0.0
    %2145 = vmatpush1.msra.mxu0 0.0
    %2146 = vmatprep.subr.mxu0 0.0
    %2147 = vmatpush1.msra.mxu0 0.0
    %2148 = vmatprep.subr.mxu0 0.0
    %2149 = vmatpush1.msra.mxu0 0.0
    %2150 = vmatprep.subr.mxu0 0.0
    %2151 = vmatpush1.msra.mxu0 0.0
    %2152 = vmatprep.mubr.f32.mxu0 0.0
    %2153 = vmatmul.mubr.f32.gmra.mrb[0].mxu0 %v2083
    %v2154 = vpop.f32.mrb[0].mxu0
    %v2155 = vadd.f32 0.0, %v2154
    %v2156 = vpop.f32.mrb[0].mxu0
    %2157 = vmatprep.mubr.f32.mxu0 0.0
    %2158 = vmatmul.mubr.f32.gmra.mrb[0].mxu0 %v2086
    %v2159 = vpop.f32.mrb[0].mxu0
    %v2160 = vadd.f32 0.0, %v2159
    %v2161 = vpop.f32.mrb[0].mxu0
    %2162 = vdwg.mxu0
    %2165 = vrot.lane.b32.xlu0 %v2155, 32
    %v2166 = vpop.permute.xlu0 %2165
    %2167 = vrot.lane.b32.xlu0 %v2160, 32
    %v2168 = vpop.permute.xlu0 %2167
    %v2171 = vsel %vm761, %v1951, %v2166
    %v2172 = vsel %vm761, %v1956, %v2168
    %v2173 = vpack.c.bf16 %v2172, %v2171
    %s2174 = scalar_lea.vmem %s4, 32
    %v2175 = vld [vmem:[%s2174] sm:$0xf]
    %v2176 = vld [vmem:[%s2174 + $0x4] sm:$0xf]
    %v2177 = vld [vmem:[%s2174 + $0x8] sm:$0xf]
    %v2178 = vld [vmem:[%s2174 + $0xc] sm:$0xf]
    %v2179 = vld [vmem:[%s2174 + $0x10] sm:$0xf]
    %v2180 = vld [vmem:[%s2174 + $0x14] sm:$0xf]
    %v2181 = vld [vmem:[%s2174 + $0x18] sm:$0xf]
    %v2182 = vld [vmem:[%s2174 + $0x1c] sm:$0xf]
    %v2183 = vlaneseq
    %v2184 = vshrl.u32 %v2183, 7
    %v2185 = vsub.s32 2, %v2184
    %v2186 = vrot.slane %v1609, %v2185
    %v2195 = vunpack.c.l.b16 %v2175
    %v2196 = vunpack.c.l.b16 %v2176
    %v2197 = vunpack.c.l.b16 %v2177
    %v2198 = vunpack.c.l.b16 %v2178
    %v2199 = vunpack.c.l.b16 %v2179
    %v2200 = vunpack.c.l.b16 %v2180
    %v2201 = vunpack.c.l.b16 %v2181
    %v2202 = vunpack.c.l.b16 %v2182
    %v2203 = vpack.c.b16 %v2196, %v2195
    %v2204 = vpack.c.b16 %v2198, %v2197
    %v2205 = vpack.c.b16 %v2200, %v2199
    %v2206 = vpack.c.b16 %v2202, %v2201
    %v2212 = vsel %vm601, %v2173, 0
    %2214 = vmatprep.subr.bf16.mxu0 0
    %2215 = vmatpush1.bf16.msra.mxu0 %v2203
    %2216 = vmatprep.subr.bf16.mxu0 0
    %2217 = vmatpush1.bf16.msra.mxu0 %v2204
    %2218 = vmatprep.subr.bf16.mxu0 0
    %2219 = vmatpush1.bf16.msra.mxu0 %v2205
    %2220 = vmatprep.subr.bf16.mxu0 0
    %2221 = vmatpush1.bf16.msra.mxu0 %v2206
    %2222 = vmatprep.subr.bf16.mxu0 0
    %2223 = vmatpush1.bf16.msra.mxu0 0
    %2224 = vmatprep.subr.bf16.mxu0 0
    %2225 = vmatpush1.bf16.msra.mxu0 0
    %2226 = vmatprep.subr.bf16.mxu0 0
    %2227 = vmatpush1.bf16.msra.mxu0 0
    %2228 = vmatprep.subr.bf16.mxu0 0
    %2229 = vmatpush1.bf16.msra.mxu0 0
    %2230 = vmatprep.subr.bf16.mxu0 0
    %2231 = vmatpush1.bf16.msra.mxu0 0
    %2232 = vmatprep.subr.bf16.mxu0 0
    %2233 = vmatpush1.bf16.msra.mxu0 0
    %2234 = vmatprep.subr.bf16.mxu0 0
    %2235 = vmatpush1.bf16.msra.mxu0 0
    %2236 = vmatprep.subr.bf16.mxu0 0
    %2237 = vmatpush1.bf16.msra.mxu0 0
    %2238 = vmatprep.subr.bf16.mxu0 0
    %2239 = vmatpush1.bf16.msra.mxu0 0
    %2240 = vmatprep.subr.bf16.mxu0 0
    %2241 = vmatpush1.bf16.msra.mxu0 0
    %2242 = vmatprep.subr.bf16.mxu0 0
    %2243 = vmatpush1.bf16.msra.mxu0 0
    %2244 = vmatprep.subr.bf16.mxu0 0
    %2245 = vmatpush1.bf16.msra.mxu0 0
    %2246 = vmatprep.mubr.bf16.mxu0 0
    %2247 = vmatmul.mubr.bf16.gmra.mrb[0].mxu0 %v2212
    %v2248 = vpop.f32.mrb[0].mxu0
    %v2249 = vadd.f32 %v2186, %v2248
    %v2250 = vpop.f32.mrb[0].mxu0
    %v2251 = vpop.f32.mrb[0].mxu0
    %v2252 = vadd.f32 %v2186, %v2251
    %v2253 = vpop.f32.mrb[0].mxu0
    %2254 = vdwg.mxu0
    %v2255 = vlaneseq
    %v2256 = vshrl.u32 %v2255, 7
    %v2257 = vsub.s32 3, %v2256
    %v2258 = vrot.slane %v1609, %v2257
    %v2259 = vmul.f32 %v2258, %v2249
    %v2260 = vmul.f32 %v2258, %v2252
    %v2261 = vadd.f32 %v1606, %v2259
    %v2262 = vadd.f32 %v1607, %v2260
    %v2263 = vsel %vm601, %v2261, 0.0
    %2264 = vadd.xlane.f32.xlu0 %v2263
    %v2265 = vpop.xlane.xlu0 %2264
    %v2266 = vsel %vm601, %v2262, 0.0
    %2267 = vadd.xlane.f32.xlu0 %v2266
    %v2268 = vpop.xlane.xlu0 %2267
    %v2269 = vmul.f32 %v2265, %v608
    %v2270 = vmul.f32 %v2268, %v608
    %v2271 = vsub.f32 %v2261, %v2269
    %v2272 = vsub.f32 %v2262, %v2270
    %v2273 = vmul.f32 %v2271, %v2271
    %v2274 = vmul.f32 %v2272, %v2272
    %v2275 = vsel %vm601, %v2273, 0.0
    %2276 = vadd.xlane.f32.xlu0 %v2275
    %v2277 = vpop.xlane.xlu0 %2276
    %v2278 = vsel %vm601, %v2274, 0.0
    %2279 = vadd.xlane.f32.xlu0 %v2278
    %v2280 = vpop.xlane.xlu0 %2279
    %v2281 = vmul.f32 %v2277, %v608
    %v2282 = vmul.f32 %v2280, %v608
    %v2283 = vadd.f32 %v2281, 1e-06
    %v2284 = vadd.f32 %v2282, 1e-06
    %v2285 = vrsqrt.pop %v2283
    %v2286 = vrsqrt.pop %v2284
    %v2287 = vmul.f32 %v2271, %v2285
    %v2288 = vmul.f32 %v2272, %v2286
    %v2289 = vlaneseq
    %v2290 = vshrl.u32 %v2289, 7
    %v2291 = vsub.s32 4, %v2290
    %v2292 = vrot.slane %v1609, %v2291
    %v2293 = vmul.f32 %v2287, %v2292
    %v2294 = vmul.f32 %v2288, %v2292
    %v2295 = vlaneseq
    %v2296 = vshrl.u32 %v2295, 7
    %v2297 = vsub.s32 5, %v2296
    %v2298 = vrot.slane %v1609, %v2297
    %v2299 = vadd.f32 %v2293, %v2298
    %v2300 = vadd.f32 %v2294, %v2298
    %v2301 = vpack.c.bf16 %v2300, %v2299
    %s2302 = scalar_lea.vmem %s5, 64
    %v2303 = vld [vmem:[%s2302] sm:$0xff]
    %v2304 = vld [vmem:[%s2302 + $0x8] sm:$0xff]
    %v2305 = vld [vmem:[%s2302 + $0x10] sm:$0xff]
    %v2306 = vld [vmem:[%s2302 + $0x18] sm:$0xff]
    %v2307 = vld [vmem:[%s2302 + $0x20] sm:$0xff]
    %v2308 = vld [vmem:[%s2302 + $0x28] sm:$0xff]
    %v2309 = vld [vmem:[%s2302 + $0x30] sm:$0xff]
    %v2310 = vld [vmem:[%s2302 + $0x38] sm:$0xff]
    %v2311 = vlaneseq
    %v2312 = vshrl.u32 %v2311, 7
    %v2313 = vsub.s32 1, %v2312
    %v2314 = vrot.slane %v1611, %v2313
    %v2315 = vlaneseq
    %v2316 = vshrl.u32 %v2315, 7
    %v2317 = vsub.s32 3, %v2316
    %v2318 = vrot.slane %v1611, %v2317
    %v2321 = vlaneseq
    %v2322 = vshrl.u32 %v2321, 7
    %v2323 = vsub.s32 1, %v2322
    %v2324 = vrot.slane %v2314, %v2323
    %v2325 = vlaneseq
    %v2326 = vshrl.u32 %v2325, 7
    %v2327 = vsub.s32 1, %v2326
    %v2328 = vrot.slane %v2318, %v2327
    %v2337 = vunpack.c.l.b16 %v2303
    %v2338 = vunpack.c.h.b16 %v2303
    %v2339 = vunpack.c.l.b16 %v2304
    %v2340 = vunpack.c.h.b16 %v2304
    %v2341 = vunpack.c.l.b16 %v2305
    %v2342 = vunpack.c.h.b16 %v2305
    %v2343 = vunpack.c.l.b16 %v2306
    %v2344 = vunpack.c.h.b16 %v2306
    %v2345 = vunpack.c.l.b16 %v2307
    %v2346 = vunpack.c.h.b16 %v2307
    %v2347 = vunpack.c.l.b16 %v2308
    %v2348 = vunpack.c.h.b16 %v2308
    %v2349 = vunpack.c.l.b16 %v2309
    %v2350 = vunpack.c.h.b16 %v2309
    %v2351 = vunpack.c.l.b16 %v2310
    %v2352 = vunpack.c.h.b16 %v2310
    %v2353 = vpack.c.b16 %v2339, %v2337
    %v2354 = vpack.c.b16 %v2340, %v2338
    %v2355 = vpack.c.b16 %v2343, %v2341
    %v2356 = vpack.c.b16 %v2344, %v2342
    %v2357 = vpack.c.b16 %v2347, %v2345
    %v2358 = vpack.c.b16 %v2348, %v2346
    %v2359 = vpack.c.b16 %v2351, %v2349
    %v2360 = vpack.c.b16 %v2352, %v2350
    %v2370 = vsel %vm601, %v2301, 0
    %2372 = vmatprep.subr.bf16.mxu0 %v2354
    %2373 = vmatpush1.bf16.msra.mxu0 %v2353
    %2374 = vmatprep.subr.bf16.mxu0 %v2356
    %2375 = vmatpush1.bf16.msra.mxu0 %v2355
    %2376 = vmatprep.subr.bf16.mxu0 %v2358
    %2377 = vmatpush1.bf16.msra.mxu0 %v2357
    %2378 = vmatprep.subr.bf16.mxu0 %v2360
    %2379 = vmatpush1.bf16.msra.mxu0 %v2359
    %2380 = vmatprep.subr.bf16.mxu0 0
    %2381 = vmatpush1.bf16.msra.mxu0 0
    %2382 = vmatprep.subr.bf16.mxu0 0
    %2383 = vmatpush1.bf16.msra.mxu0 0
    %2384 = vmatprep.subr.bf16.mxu0 0
    %2385 = vmatpush1.bf16.msra.mxu0 0
    %2386 = vmatprep.subr.bf16.mxu0 0
    %2387 = vmatpush1.bf16.msra.mxu0 0
    %2388 = vmatprep.subr.bf16.mxu0 0
    %2389 = vmatpush1.bf16.msra.mxu0 0
    %2390 = vmatprep.subr.bf16.mxu0 0
    %2391 = vmatpush1.bf16.msra.mxu0 0
    %2392 = vmatprep.subr.bf16.mxu0 0
    %2393 = vmatpush1.bf16.msra.mxu0 0
    %2394 = vmatprep.subr.bf16.mxu0 0
    %2395 = vmatpush1.bf16.msra.mxu0 0
    %2396 = vmatprep.subr.bf16.mxu0 0
    %2397 = vmatpush1.bf16.msra.mxu0 0
    %2398 = vmatprep.subr.bf16.mxu0 0
    %2399 = vmatpush1.bf16.msra.mxu0 0
    %2400 = vmatprep.subr.bf16.mxu0 0
    %2401 = vmatpush1.bf16.msra.mxu0 0
    %2402 = vmatprep.subr.bf16.mxu0 0
    %2403 = vmatpush1.bf16.msra.mxu0 0
    %2404 = vmatprep.mubr.bf16.mxu0 0
    %2405 = vmatmul.mubr.bf16.gmra.mrb[0].mxu0 %v2370
    %v2406 = vpop.f32.mrb[0].mxu0
    %v2407 = vadd.f32 %v2324, %v2406
    %v2408 = vpop.f32.mrb[0].mxu0
    %v2409 = vadd.f32 %v2328, %v2408
    %v2410 = vpop.f32.mrb[0].mxu0
    %v2411 = vadd.f32 %v2324, %v2410
    %v2412 = vpop.f32.mrb[0].mxu0
    %v2413 = vadd.f32 %v2328, %v2412
    %2414 = vdwg.mxu0
    %v2415 = vmul.f32 %v2407, 0.5
    %v2416 = vmul.f32 %v2409, 0.5
    %v2417 = vmul.f32 %v2411, 0.5
    %v2418 = vmul.f32 %v2413, 0.5
    %v2419 = vmul.f32 %v2407, 0.70710677
    %v2420 = vmul.f32 %v2409, 0.70710677
    %v2421 = vmul.f32 %v2411, 0.70710677
    %v2422 = vmul.f32 %v2413, 0.70710677
    %v2423 = verf.f32.pop %v2419
    %v2424 = verf.f32.pop %v2420
    %v2425 = verf.f32.pop %v2421
    %v2426 = verf.f32.pop %v2422
    %v2427 = vadd.f32 %v2423, 1.0
    %v2428 = vadd.f32 %v2424, 1.0
    %v2429 = vadd.f32 %v2425, 1.0
    %v2430 = vadd.f32 %v2426, 1.0
    %v2431 = vmul.f32 %v2415, %v2427
    %v2432 = vmul.f32 %v2416, %v2428
    %v2433 = vmul.f32 %v2417, %v2429
    %v2434 = vmul.f32 %v2418, %v2430
    %v2435 = vpack.c.bf16 %v2433, %v2431
    %v2436 = vpack.c.bf16 %v2434, %v2432
    %s2437 = scalar_lea.vmem %s6, 128
    %v2438 = vld [vmem:[%s2437] sm:$0xf]
    %v2439 = vld [vmem:[%s2437 + $0x4] sm:$0xf]
    %v2440 = vld [vmem:[%s2437 + $0x8] sm:$0xf]
    %v2441 = vld [vmem:[%s2437 + $0xc] sm:$0xf]
    %v2442 = vld [vmem:[%s2437 + $0x10] sm:$0xf]
    %v2443 = vld [vmem:[%s2437 + $0x14] sm:$0xf]
    %v2444 = vld [vmem:[%s2437 + $0x18] sm:$0xf]
    %v2445 = vld [vmem:[%s2437 + $0x1c] sm:$0xf]
    %v2446 = vld [vmem:[%s2437 + $0x20] sm:$0xf]
    %v2447 = vld [vmem:[%s2437 + $0x24] sm:$0xf]
    %v2448 = vld [vmem:[%s2437 + $0x28] sm:$0xf]
    %v2449 = vld [vmem:[%s2437 + $0x2c] sm:$0xf]
    %v2450 = vld [vmem:[%s2437 + $0x30] sm:$0xf]
    %v2451 = vld [vmem:[%s2437 + $0x34] sm:$0xf]
    %v2452 = vld [vmem:[%s2437 + $0x38] sm:$0xf]
    %v2453 = vld [vmem:[%s2437 + $0x3c] sm:$0xf]
    %v2454 = vld [vmem:[%s2437 + $0x40] sm:$0xf]
    %v2455 = vld [vmem:[%s2437 + $0x44] sm:$0xf]
    %v2456 = vld [vmem:[%s2437 + $0x48] sm:$0xf]
    %v2457 = vld [vmem:[%s2437 + $0x4c] sm:$0xf]
    %v2458 = vld [vmem:[%s2437 + $0x50] sm:$0xf]
    %v2459 = vld [vmem:[%s2437 + $0x54] sm:$0xf]
    %v2460 = vld [vmem:[%s2437 + $0x58] sm:$0xf]
    %v2461 = vld [vmem:[%s2437 + $0x5c] sm:$0xf]
    %v2462 = vld [vmem:[%s2437 + $0x60] sm:$0xf]
    %v2463 = vld [vmem:[%s2437 + $0x64] sm:$0xf]
    %v2464 = vld [vmem:[%s2437 + $0x68] sm:$0xf]
    %v2465 = vld [vmem:[%s2437 + $0x6c] sm:$0xf]
    %v2466 = vld [vmem:[%s2437 + $0x70] sm:$0xf]
    %v2467 = vld [vmem:[%s2437 + $0x74] sm:$0xf]
    %v2468 = vld [vmem:[%s2437 + $0x78] sm:$0xf]
    %v2469 = vld [vmem:[%s2437 + $0x7c] sm:$0xf]
    %v2470 = vlaneseq
    %v2471 = vshrl.u32 %v2470, 7
    %v2472 = vsub.s32 6, %v2471
    %v2473 = vrot.slane %v1609, %v2472
    %v2506 = vunpack.c.l.b16 %v2438
    %v2507 = vunpack.c.l.b16 %v2439
    %v2508 = vunpack.c.l.b16 %v2440
    %v2509 = vunpack.c.l.b16 %v2441
    %v2510 = vunpack.c.l.b16 %v2442
    %v2511 = vunpack.c.l.b16 %v2443
    %v2512 = vunpack.c.l.b16 %v2444
    %v2513 = vunpack.c.l.b16 %v2445
    %v2514 = vunpack.c.l.b16 %v2446
    %v2515 = vunpack.c.l.b16 %v2447
    %v2516 = vunpack.c.l.b16 %v2448
    %v2517 = vunpack.c.l.b16 %v2449
    %v2518 = vunpack.c.l.b16 %v2450
    %v2519 = vunpack.c.l.b16 %v2451
    %v2520 = vunpack.c.l.b16 %v2452
    %v2521 = vunpack.c.l.b16 %v2453
    %v2522 = vunpack.c.l.b16 %v2454
    %v2523 = vunpack.c.l.b16 %v2455
    %v2524 = vunpack.c.l.b16 %v2456
    %v2525 = vunpack.c.l.b16 %v2457
    %v2526 = vunpack.c.l.b16 %v2458
    %v2527 = vunpack.c.l.b16 %v2459
    %v2528 = vunpack.c.l.b16 %v2460
    %v2529 = vunpack.c.l.b16 %v2461
    %v2530 = vunpack.c.l.b16 %v2462
    %v2531 = vunpack.c.l.b16 %v2463
    %v2532 = vunpack.c.l.b16 %v2464
    %v2533 = vunpack.c.l.b16 %v2465
    %v2534 = vunpack.c.l.b16 %v2466
    %v2535 = vunpack.c.l.b16 %v2467
    %v2536 = vunpack.c.l.b16 %v2468
    %v2537 = vunpack.c.l.b16 %v2469
    %v2538 = vpack.c.b16 %v2507, %v2506
    %v2539 = vpack.c.b16 %v2509, %v2508
    %v2540 = vpack.c.b16 %v2511, %v2510
    %v2541 = vpack.c.b16 %v2513, %v2512
    %v2542 = vpack.c.b16 %v2515, %v2514
    %v2543 = vpack.c.b16 %v2517, %v2516
    %v2544 = vpack.c.b16 %v2519, %v2518
    %v2545 = vpack.c.b16 %v2521, %v2520
    %v2546 = vpack.c.b16 %v2523, %v2522
    %v2547 = vpack.c.b16 %v2525, %v2524
    %v2548 = vpack.c.b16 %v2527, %v2526
    %v2549 = vpack.c.b16 %v2529, %v2528
    %v2550 = vpack.c.b16 %v2531, %v2530
    %v2551 = vpack.c.b16 %v2533, %v2532
    %v2552 = vpack.c.b16 %v2535, %v2534
    %v2553 = vpack.c.b16 %v2537, %v2536
    %2570 = vmatprep.subr.bf16.mxu0 0
    %2571 = vmatpush1.bf16.msra.mxu0 %v2538
    %2572 = vmatprep.subr.bf16.mxu0 0
    %2573 = vmatpush1.bf16.msra.mxu0 %v2539
    %2574 = vmatprep.subr.bf16.mxu0 0
    %2575 = vmatpush1.bf16.msra.mxu0 %v2540
    %2576 = vmatprep.subr.bf16.mxu0 0
    %2577 = vmatpush1.bf16.msra.mxu0 %v2541
    %2578 = vmatprep.subr.bf16.mxu0 0
    %2579 = vmatpush1.bf16.msra.mxu0 %v2542
    %2580 = vmatprep.subr.bf16.mxu0 0
    %2581 = vmatpush1.bf16.msra.mxu0 %v2543
    %2582 = vmatprep.subr.bf16.mxu0 0
    %2583 = vmatpush1.bf16.msra.mxu0 %v2544
    %2584 = vmatprep.subr.bf16.mxu0 0
    %2585 = vmatpush1.bf16.msra.mxu0 %v2545
    %2586 = vmatprep.subr.bf16.mxu0 0
    %2587 = vmatpush1.bf16.msra.mxu0 %v2546
    %2588 = vmatprep.subr.bf16.mxu0 0
    %2589 = vmatpush1.bf16.msra.mxu0 %v2547
    %2590 = vmatprep.subr.bf16.mxu0 0
    %2591 = vmatpush1.bf16.msra.mxu0 %v2548
    %2592 = vmatprep.subr.bf16.mxu0 0
    %2593 = vmatpush1.bf16.msra.mxu0 %v2549
    %2594 = vmatprep.subr.bf16.mxu0 0
    %2595 = vmatpush1.bf16.msra.mxu0 %v2550
    %2596 = vmatprep.subr.bf16.mxu0 0
    %2597 = vmatpush1.bf16.msra.mxu0 %v2551
    %2598 = vmatprep.subr.bf16.mxu0 0
    %2599 = vmatpush1.bf16.msra.mxu0 %v2552
    %2600 = vmatprep.subr.bf16.mxu0 0
    %2601 = vmatpush1.bf16.msra.mxu0 %v2553
    %2602 = vmatprep.mubr.bf16.mxu0 %v2436
    %2603 = vmatmul.mubr.bf16.gmra.mrb[0].mxu0 %v2435
    %v2604 = vpop.f32.mrb[0].mxu0
    %v2605 = vadd.f32 %v2473, %v2604
    %v2606 = vpop.f32.mrb[0].mxu0
    %v2607 = vpop.f32.mrb[0].mxu0
    %v2608 = vadd.f32 %v2473, %v2607
    %v2609 = vpop.f32.mrb[0].mxu0
    %2610 = vdwg.mxu0
    %v2611 = vlaneseq
    %v2612 = vshrl.u32 %v2611, 7
    %v2613 = vsub.s32 7, %v2612
    %v2614 = vrot.slane %v1609, %v2613
    %v2615 = vmul.f32 %v2614, %v2605
    %v2616 = vmul.f32 %v2614, %v2608
    %v2617 = vadd.f32 %v2261, %v2615
    %v2618 = vadd.f32 %v2262, %v2616
    %v2619 = vld [vmem:[%s10] sm:$0x7]
    %v2620 = vsel %vm601, %v2617, 0.0
    %2621 = vadd.xlane.f32.xlu0 %v2620
    %v2622 = vpop.xlane.xlu0 %2621
    %v2623 = vsel %vm601, %v2618, 0.0
    %2624 = vadd.xlane.f32.xlu0 %v2623
    %v2625 = vpop.xlane.xlu0 %2624
    %v2626 = vmul.f32 %v2622, %v608
    %v2627 = vmul.f32 %v2625, %v608
    %v2628 = vsub.f32 %v2617, %v2626
    %v2629 = vsub.f32 %v2618, %v2627
    %v2630 = vmul.f32 %v2628, %v2628
    %v2631 = vmul.f32 %v2629, %v2629
    %v2632 = vsel %vm601, %v2630, 0.0
    %2633 = vadd.xlane.f32.xlu0 %v2632
    %v2634 = vpop.xlane.xlu0 %2633
    %v2635 = vsel %vm601, %v2631, 0.0
    %2636 = vadd.xlane.f32.xlu0 %v2635
    %v2637 = vpop.xlane.xlu0 %2636
    %v2638 = vmul.f32 %v2634, %v608
    %v2639 = vmul.f32 %v2637, %v608
    %v2640 = vadd.f32 %v2638, 1e-06
    %v2641 = vadd.f32 %v2639, 1e-06
    %v2642 = vrsqrt.pop %v2640
    %v2643 = vrsqrt.pop %v2641
    %v2644 = vmul.f32 %v2628, %v2642
    %v2645 = vmul.f32 %v2629, %v2643
    %v2646 = vlaneseq
    %v2647 = vshrl.u32 %v2646, 7
    %v2648 = vsub.s32 0, %v2647
    %v2649 = vrot.slane %v2619, %v2648
    %v2650 = vmul.f32 %v2644, %v2649
    %v2651 = vmul.f32 %v2645, %v2649
    %v2652 = vlaneseq
    %v2653 = vshrl.u32 %v2652, 7
    %v2654 = vsub.s32 1, %v2653
    %v2655 = vrot.slane %v2619, %v2654
    %v2656 = vadd.f32 %v2650, %v2655
    %v2657 = vadd.f32 %v2651, %v2655
    %v2658 = vld [vmem:[%s9] sm:$0xff]
    %v2659 = vld [vmem:[%s9 + $0x8] sm:$0xff]
    %v2660 = vld [vmem:[%s9 + $0x10] sm:$0xff]
    %v2661 = vld [vmem:[%s9 + $0x18] sm:$0xff]
    %v2662 = vld [vmem:[%s9 + $0x20] sm:$0xff]
    %v2663 = vld [vmem:[%s9 + $0x28] sm:$0xff]
    %v2664 = vld [vmem:[%s9 + $0x30] sm:$0xff]
    %v2665 = vld [vmem:[%s9 + $0x38] sm:$0xff]
    %v2666 = vlaneseq
    %v2667 = vshrl.u32 %v2666, 7
    %v2668 = vsub.s32 2, %v2667
    %v2669 = vrot.slane %v2619, %v2668
    %v2671 = vsel %vm601, %v2656, 0
    %v2674 = vsel %vm601, %v2657, 0
    %2676 = vmatprep.subr.mxu0 0.0
    %2677 = vmatpush1.msra.mxu0 %v2658
    %2678 = vmatprep.subr.mxu0 0.0
    %2679 = vmatpush1.msra.mxu0 %v2659
    %2680 = vmatprep.subr.mxu0 0.0
    %2681 = vmatpush1.msra.mxu0 %v2660
    %2682 = vmatprep.subr.mxu0 0.0
    %2683 = vmatpush1.msra.mxu0 %v2661
    %2684 = vmatprep.subr.mxu0 0.0
    %2685 = vmatpush1.msra.mxu0 %v2662
    %2686 = vmatprep.subr.mxu0 0.0
    %2687 = vmatpush1.msra.mxu0 %v2663
    %2688 = vmatprep.subr.mxu0 0.0
    %2689 = vmatpush1.msra.mxu0 %v2664
    %2690 = vmatprep.subr.mxu0 0.0
    %2691 = vmatpush1.msra.mxu0 %v2665
    %2692 = vmatprep.subr.mxu0 0.0
    %2693 = vmatpush1.msra.mxu0 0.0
    %2694 = vmatprep.subr.mxu0 0.0
    %2695 = vmatpush1.msra.mxu0 0.0
    %2696 = vmatprep.subr.mxu0 0.0
    %2697 = vmatpush1.msra.mxu0 0.0
    %2698 = vmatprep.subr.mxu0 0.0
    %2699 = vmatpush1.msra.mxu0 0.0
    %2700 = vmatprep.subr.mxu0 0.0
    %2701 = vmatpush1.msra.mxu0 0.0
    %2702 = vmatprep.subr.mxu0 0.0
    %2703 = vmatpush1.msra.mxu0 0.0
    %2704 = vmatprep.subr.mxu0 0.0
    %2705 = vmatpush1.msra.mxu0 0.0
    %2706 = vmatprep.subr.mxu0 0.0
    %2707 = vmatpush1.msra.mxu0 0.0
    %2708 = vmatprep.subr.mxu0 0.0
    %2709 = vmatpush1.msra.mxu0 0.0
    %2710 = vmatprep.subr.mxu0 0.0
    %2711 = vmatpush1.msra.mxu0 0.0
    %2712 = vmatprep.subr.mxu0 0.0
    %2713 = vmatpush1.msra.mxu0 0.0
    %2714 = vmatprep.subr.mxu0 0.0
    %2715 = vmatpush1.msra.mxu0 0.0
    %2716 = vmatprep.subr.mxu0 0.0
    %2717 = vmatpush1.msra.mxu0 0.0
    %2718 = vmatprep.subr.mxu0 0.0
    %2719 = vmatpush1.msra.mxu0 0.0
    %2720 = vmatprep.subr.mxu0 0.0
    %2721 = vmatpush1.msra.mxu0 0.0
    %2722 = vmatprep.subr.mxu0 0.0
    %2723 = vmatpush1.msra.mxu0 0.0
    %2724 = vmatprep.subr.mxu0 0.0
    %2725 = vmatpush1.msra.mxu0 0.0
    %2726 = vmatprep.subr.mxu0 0.0
    %2727 = vmatpush1.msra.mxu0 0.0
    %2728 = vmatprep.subr.mxu0 0.0
    %2729 = vmatpush1.msra.mxu0 0.0
    %2730 = vmatprep.subr.mxu0 0.0
    %2731 = vmatpush1.msra.mxu0 0.0
    %2732 = vmatprep.subr.mxu0 0.0
    %2733 = vmatpush1.msra.mxu0 0.0
    %2734 = vmatprep.subr.mxu0 0.0
    %2735 = vmatpush1.msra.mxu0 0.0
    %2736 = vmatprep.subr.mxu0 0.0
    %2737 = vmatpush1.msra.mxu0 0.0
    %2738 = vmatprep.subr.mxu0 0.0
    %2739 = vmatpush1.msra.mxu0 0.0
    %2740 = vmatprep.mubr.f32.mxu0 0.0
    %2741 = vmatmul.mubr.f32.gmra.mrb[0].mxu0 %v2671
    %v2742 = vpop.f32.mrb[0].mxu0
    %v2743 = vadd.f32 %v2669, %v2742
    %v2744 = vpop.f32.mrb[0].mxu0
    %2745 = vmatprep.mubr.f32.mxu0 0.0
    %2746 = vmatmul.mubr.f32.gmra.mrb[0].mxu0 %v2674
    %v2747 = vpop.f32.mrb[0].mxu0
    %v2748 = vadd.f32 %v2669, %v2747
    %v2749 = vpop.f32.mrb[0].mxu0
    %2750 = vdwg.mxu0
    %v2752 = vrot.slane %v2748, 7
    %vm2754 = vcmask 1040384
    %v2755 = vsel %vm2754, %v2743, %v2752
    %vm2756 = vcmask 345088
    %v2757 = vsel %vm2756, %v2755, -inf
    %v2758 = vrot.slane %v2757, 4
    %v2759 = vmax.f32 %v2757, %v2758
    %v2760 = vrot.slane %v2759, 2
    %v2761 = vmax.f32 %v2759, %v2760
    %v2762 = vrot.slane %v2761, 1
    %v2763 = vmax.f32 %v2761, %v2762
    %v2764 = vsub.f32 %v2755, %v2763
    %v2765 = vmul.f32 %v2764, 1.442695
    %v2766 = vpow.pop %v2765
    %v2767 = vsel %vm2756, %v2766, 0.0
    %v2768 = vrot.slane %v2767, 4
    %v2769 = vadd.f32 %v2767, %v2768
    %v2770 = vrot.slane %v2769, 2
    %v2771 = vadd.f32 %v2769, %v2770
    %v2772 = vrot.slane %v2771, 1
    %v2773 = vadd.f32 %v2771, %v2772
    %v2774 = vrcp.pop %v2773
    %v2775 = vmul.f32 %v2766, %v2774
    %2776 = vst.msk [vmem:[#allocation2] sm:$0x3] %vm2756, %v2775
    // Predicated region
    $region46: #{deit_forward.1} parent=1 // pred_check
      _
    $region47: #{deit_forward.1} parent=1 // pred_check_branch
      %2778 = sbr.rel (0) target = $region49
    $region48: #{deit_forward.1} parent=1 // pred_region
      %s2780 = ssub.s32 32, 32
      %2781 = vsyncadd [#allocation3], %s2780
      %s2783 = sshll.u32 [#allocation2], 4
      %s2784 = int_to_ptr.vmem [resolvable:$true] %s2783
      %2786 = dma.vmem_to_hbm [thread:$0]  %s2784, 32, %s11, [#allocation3]
    $region49: #{deit_forward.1} parent=1 // pred_fallthru
      _
    // Predicated region
    $region50: #{deit_forward.1} parent=1 // pred_check
      _
    $region51: #{deit_forward.1} parent=1 // pred_check_branch
      %2788 = sbr.rel (0) target = $region53
    $region52: #{deit_forward.1} parent=1 // pred_region
      %2789 = dma.done [#allocation3], 32
    $region53: #{deit_forward.1} parent=1 // pred_fallthru
      _
    %2790 = vsyncpa [#allocation3], 1

</llo_original>
